<compile_context>
chip_gen: v6e
topology: v6e:2x2x1
jax: 0.10.0
libtpu: 0.0.40
codegen_flags: <defaults>
</compile_context>

<pallas_src>
import functools

import jax
import jax.numpy as jnp
from jax import lax
from jax.experimental import pallas as pl
from jax.experimental.pallas import tpu as pltpu

NUM_CLASSES = 12

# single-buffer budget for the padded-image block of the direct conv path
_X_BLOCK_BUDGET = 4 * 1024 * 1024


def _round_up(v, m):
    return -(-v // m) * m


def _divisor_tile(dim, cap, q):
    """Largest multiple of q that is <= cap and divides dim, else None."""
    d = (cap // q) * q
    while d >= q:
        if dim % d == 0:
            return d
        d -= q
    return None


@functools.lru_cache(maxsize=None)
def _hw_config():
    """Per-generation GEMM tile caps and a physically safe VMEM limit."""
    kind = ""
    try:
        kind = jax.devices()[0].device_kind.lower()
    except Exception:
        pass
    if "v5 lite" in kind or "v5e" in kind or "v5lite" in kind:
        # 197 TF/s / ~0.82 TB/s -> TN=512 already makes big GEMMs MXU-bound.
        return {"tm": 1024, "tn": 512, "tk": 1024, "vmem_cap": 100 * 2**20}
    if "v6" in kind:
        # 918 TF/s / ~1.4 TB/s -> TM=2048/TN=1024 gives ~683 FLOP/byte reuse.
        return {"tm": 2048, "tn": 1024, "tk": 1024, "vmem_cap": 96 * 2**20}
    if "v7" in kind or "7x" in kind:
        # only 64 MiB physical VMEM per core -> clamp scoped limit to 48 MiB.
        return {"tm": 2048, "tn": 1024, "tk": 1024, "vmem_cap": 48 * 2**20}
    # Unknown part: VMEM-conservative (v7x-safe) settings.
    return {"tm": 1024, "tn": 512, "tk": 1024, "vmem_cap": 48 * 2**20}


# ---------------------------------------------------------------------------
# Fused tiled GEMM kernel:  out = act( (X @ W) * scale + bias [+ residual] )
# ---------------------------------------------------------------------------
def _fused_gemm_kernel(*refs, relu, has_res):
    if has_res:
        x_ref, w_ref, s_ref, b_ref, r_ref, o_ref, acc_ref = refs
    else:
        x_ref, w_ref, s_ref, b_ref, o_ref, acc_ref = refs

    k = pl.program_id(2)

    @pl.when(k == 0)
    def _init():
        acc_ref[...] = jnp.zeros_like(acc_ref)

    acc_ref[...] += jnp.dot(x_ref[...], w_ref[...],
                            preferred_element_type=jnp.float32)

    @pl.when(k == pl.num_programs(2) - 1)
    def _finalize():
        y = acc_ref[...] * s_ref[...] + b_ref[...]
        if has_res:
            y = y + r_ref[...].astype(jnp.float32)
        if relu:
            y = jnp.maximum(y, 0.0)
        o_ref[...] = y.astype(o_ref.dtype)


@functools.lru_cache(maxsize=None)
def _gemm_call(M, K, Nc, TM, TK, TN, relu, has_res, out_dtype_name):
    cfg = _hw_config()
    out_dtype = jnp.dtype(out_dtype_name)
    kernel = functools.partial(_fused_gemm_kernel, relu=relu, has_res=has_res)

    in_specs = [
        pl.BlockSpec((TM, TK), lambda i, j, k: (i, k)),     # X tile
        pl.BlockSpec((TK, TN), lambda i, j, k: (k, j)),     # W tile
        pl.BlockSpec((1, TN), lambda i, j, k: (0, j)),      # scale
        pl.BlockSpec((1, TN), lambda i, j, k: (0, j)),      # bias
    ]
    if has_res:
        in_specs.append(pl.BlockSpec((TM, TN), lambda i, j, k: (i, j)))

    ob = out_dtype.itemsize
    need = (2 * TM * TK * 2 + 2 * TK * TN * 2 + 2 * TM * TN * ob
            + TM * TN * 4 + 4 * TN * 4 * 2)
    if has_res:
        need += 2 * TM * TN * 2
    vmem_limit = max(min(int(need * 1.25) + (2 << 20), cfg["vmem_cap"]),
                     24 * 1024 * 1024)

    bytes_accessed = (M * K * 2 * max(1, Nc // TN) + K * Nc * 2 * max(1, M // TM)
                      + M * Nc * ob + (M * Nc * 2 if has_res else 0) + 2 * Nc * 4)

    return pl.pallas_call(
        kernel,
        out_shape=jax.ShapeDtypeStruct((M, Nc), out_dtype),
        grid_spec=pltpu.PrefetchScalarGridSpec(
            num_scalar_prefetch=0,
            grid=(M // TM, Nc // TN, K // TK),
            in_specs=in_specs,
            out_specs=pl.BlockSpec((TM, TN), lambda i, j, k: (i, j)),
            scratch_shapes=[pltpu.VMEM((TM, TN), jnp.float32)],
        ),
        compiler_params=pltpu.CompilerParams(
            dimension_semantics=("parallel", "parallel", "arbitrary"),
            vmem_limit_bytes=vmem_limit),
        cost_estimate=pl.CostEstimate(
            flops=2 * M * K * Nc, transcendentals=0,
            bytes_accessed=int(bytes_accessed)),
    )


def _fused_gemm(x2, w2, scale, bias, residual=None, *, relu,
                out_dtype=jnp.bfloat16):
    cfg = _hw_config()
    M, K = x2.shape
    Nc = w2.shape[1]

    # --- M tiling: pad rows (8-quantum for small M, cap multiple of 256) ----
    TM = cfg["tm"] if M > cfg["tm"] else _round_up(M, 8)
    Mp = _round_up(M, TM)

    # --- K tiling: divisor tile if possible, else zero-pad up to a tile -----
    if K <= cfg["tk"]:
        TK, Kp = K, K
    else:
        TK = _divisor_tile(K, cfg["tk"], 128)
        if TK is None:
            TK = cfg["tk"]
            Kp = _round_up(K, TK)
        else:
            Kp = K

    # --- N tiling (same policy) ---------------------------------------------
    if Nc <= cfg["tn"]:
        TN, Np = Nc, Nc
    else:
        TN = _divisor_tile(Nc, cfg["tn"], 128)
        if TN is None:
            TN = cfg["tn"]
            Np = _round_up(Nc, TN)
        else:
            Np = Nc
    # megacore (v7x has 2 TCs): make sure at least one parallel axis has >=2 tiles
    if Mp // TM == 1 and Np // TN == 1 and Np % 256 == 0:
        TN = Np // 2

    x2 = x2.astype(jnp.bfloat16)
    w2 = w2.astype(jnp.bfloat16)
    if residual is not None:
        residual = residual.astype(jnp.bfloat16)

    if Mp != M or Kp != K:
        x2 = jnp.pad(x2, ((0, Mp - M), (0, Kp - K)))
    if Kp != K or Np != Nc:
        w2 = jnp.pad(w2, ((0, Kp - K), (0, Np - Nc)))
    scale2 = scale.reshape(1, Nc).astype(jnp.float32)
    bias2 = bias.reshape(1, Nc).astype(jnp.float32)
    if Np != Nc:
        scale2 = jnp.pad(scale2, ((0, 0), (0, Np - Nc)))
        bias2 = jnp.pad(bias2, ((0, 0), (0, Np - Nc)))
    if residual is not None and (Mp != M or Np != Nc):
        residual = jnp.pad(residual, ((0, Mp - M), (0, Np - Nc)))

    call = _gemm_call(Mp, Kp, Np, TM, TK, TN, bool(relu),
                      residual is not None, jnp.dtype(out_dtype).name)
    args = [x2, w2, scale2, bias2]
    if residual is not None:
        args.append(residual)
    out = call(*args)
    if Mp != M or Np != Nc:
        out = out[:M, :Nc]
    return out


def pallas_matmul(a, b, out_dtype=jnp.bfloat16):
    n = b.shape[1]
    return _fused_gemm(a, b,
                       jnp.ones((n,), jnp.float32),
                       jnp.zeros((n,), jnp.float32),
                       relu=False, out_dtype=out_dtype)


# ---------------------------------------------------------------------------
# Direct (im2col-free) stride-1 KxK conv, BN/bias/ReLU fused.
# The padded image lives once in HBM; a (full spatial) x (channel slab) block
# is streamed to VMEM, the KH*KW taps are gathered in-VMEM and accumulated on
# the MXU into an f32 scratch.
# ---------------------------------------------------------------------------
def _conv_s1_kernel(x_ref, w_ref, s_ref, b_ref, o_ref, xcol_ref, acc_ref,
                    *, taps, dil, OH, OW, relu):
    c = pl.program_id(2)

    @pl.when(c == 0)
    def _init():
        acc_ref[...] = jnp.zeros_like(acc_ref)

    for t, (kh, kw) in enumerate(taps):
        h0 = kh * dil
        w0 = kw * dil

        def copy_row(oh, carry, h0=h0, w0=w0):
            row = pl.multiple_of(oh * OW, 8)
            # in-VMEM tap gather (no HBM im2col duplication)
            xcol_ref[pl.ds(row, OW), :] = x_ref[h0 + oh, pl.ds(w0, OW), :]
            return carry

        lax.fori_loop(0, OH, copy_row, 0, unroll=min(OH, 8))
        acc_ref[...] += jnp.dot(xcol_ref[...], w_ref[t],
                                preferred_element_type=jnp.float32)

    @pl.when(c == pl.num_programs(2) - 1)
    def _finalize():
        y = acc_ref[...] * s_ref[...] + b_ref[...]
        if relu:
            y = jnp.maximum(y, 0.0)
        o_ref[...] = y.astype(o_ref.dtype)


def _pick_cin_tile(cin, hp, wp):
    """Channel-slab size for the direct conv path, or None (-> im2col path)."""
    if hp * wp * cin * 2 <= _X_BLOCK_BUDGET:
        return cin
    if cin % 128:
        return None
    t = min(cin, (_X_BLOCK_BUDGET // (hp * wp * 2)) // 128 * 128)
    while t >= 128:
        if cin % t == 0:
            return t
        t -= 128
    return None


@functools.lru_cache(maxsize=None)
def _conv_s1_call(N, Hp, Wp, Cin, Cout, OH, OW, KH, KW, dil, TCin, TN, relu):
    cfg = _hw_config()
    taps = tuple((kh, kw) for kh in range(KH) for kw in range(KW))
    kernel = functools.partial(_conv_s1_kernel, taps=taps, dil=dil,
                               OH=OH, OW=OW, relu=relu)
    OHW = OH * OW
    in_specs = [
        pl.BlockSpec((None, Hp, Wp, TCin), lambda n, j, c: (n, 0, 0, c)),
        pl.BlockSpec((KH * KW, TCin, TN), lambda n, j, c: (0, c, j)),
        pl.BlockSpec((1, TN), lambda n, j, c: (0, j)),
        pl.BlockSpec((1, TN), lambda n, j, c: (0, j)),
    ]
    out_spec = pl.BlockSpec((None, OHW, TN), lambda n, j, c: (n, 0, j))

    need = (2 * Hp * Wp * TCin * 2 + 2 * KH * KW * TCin * TN * 2
            + 2 * OHW * TN * 2 + OHW * TCin * 2 + OHW * TN * 4 + 4 * TN * 4 * 2)
    vmem_limit = max(min(int(need * 1.25) + (2 << 20), cfg["vmem_cap"]),
                     24 * 1024 * 1024)

    flops = 2 * N * OHW * KH * KW * Cin * Cout
    bytes_accessed = (N * Hp * Wp * Cin * 2 * max(1, Cout // TN)
                      + N * KH * KW * Cin * Cout * 2 + N * OHW * Cout * 2)

    return pl.pallas_call(
        kernel,
        out_shape=jax.ShapeDtypeStruct((N, OHW, Cout), jnp.bfloat16),
        grid_spec=pltpu.PrefetchScalarGridSpec(
            num_scalar_prefetch=0,
            grid=(N, Cout // TN, Cin // TCin),
            in_specs=in_specs,
            out_specs=out_spec,
            scratch_shapes=[pltpu.VMEM((OHW, TCin), jnp.bfloat16),
                            pltpu.VMEM((OHW, TN), jnp.float32)]),
        compiler_params=pltpu.CompilerParams(
            dimension_semantics=("parallel", "parallel", "arbitrary"),
            vmem_limit_bytes=vmem_limit),
        cost_estimate=pl.CostEstimate(flops=int(flops), transcendentals=0,
                                      bytes_accessed=int(bytes_accessed)),
    )


def _conv_s1(xp, w3, scale, bias, *, KH, KW, OH, OW, dil, relu, tcin):
    N, Hp, Wp, Cin = xp.shape
    Cout = w3.shape[-1]
    TN = Cout
    if N < 2 and Cout % 256 == 0:   # keep both v7x TensorCores busy
        TN = Cout // 2
    call = _conv_s1_call(N, Hp, Wp, Cin, Cout, OH, OW, KH, KW, dil,
                         tcin, TN, bool(relu))
    return call(xp.astype(jnp.bfloat16), w3.astype(jnp.bfloat16),
                scale.reshape(1, Cout).astype(jnp.float32),
                bias.reshape(1, Cout).astype(jnp.float32))


# ---------------------------------------------------------------------------
# Conv2d + folded BN / bias + optional ReLU / residual
# ---------------------------------------------------------------------------
@functools.partial(jax.jit,
                   static_argnames=("stride", "dilation", "padding", "relu"))
def conv2d(x, w, scale, bias, residual=None, *, stride=1, dilation=1,
           padding=0, relu=True):
    """x: (N,H,W,Cin) NHWC; w: (KH,KW,Cin,Cout); scale/bias: (Cout,)."""
    N, H, W_, Cin = x.shape
    KH, KW, _, Cout = w.shape
    OH = (H + 2 * padding - dilation * (KH - 1) - 1) // stride + 1
    OW = (W_ + 2 * padding - dilation * (KW - 1) - 1) // stride + 1
    M = N * OH * OW
    x = x.astype(jnp.bfloat16)

    # --- 1x1 conv: plain fused GEMM ----------------------------------------
    if KH == 1 and KW == 1 and padding == 0:
        xs = x[:, ::stride, ::stride, :] if stride != 1 else x
        x2 = xs.reshape(M, Cin)
        w2 = w.reshape(Cin, Cout)
        res2 = None if residual is None else residual.reshape(M, Cout)
        out = _fused_gemm(x2, w2, scale, bias, res2, relu=relu)
        return out.reshape(N, OH, OW, Cout)

    Hp, Wp = H + 2 * padding, W_ + 2 * padding

    # --- stride-1 KxK conv: direct (im2col-free) Pallas conv ----------------
    tcin = None
    if stride == 1 and OW % 8 == 0 and residual is None:
        tcin = _pick_cin_tile(Cin, Hp, Wp)
    if tcin is not None:
        xp = jnp.pad(x, ((0, 0), (padding, padding), (padding, padding), (0, 0)))
        w3 = w.reshape(KH * KW, Cin, Cout)
        out = _conv_s1(xp, w3, scale, bias, KH=KH, KW=KW, OH=OH, OW=OW,
                       dil=dilation, relu=relu, tcin=tcin)
        return out.reshape(N, OH, OW, Cout)

    # --- fallback (7x7/s2 stem, the single stride-2 3x3): im2col + GEMM -----
    xp = jnp.pad(x, ((0, 0), (padding, padding), (padding, padding), (0, 0)))
    cols = []
    for kh in range(KH):
        for kw in range(KW):
            h0, w0 = kh * dilation, kw * dilation
            cols.append(xp[:, h0:h0 + (OH - 1) * stride + 1:stride,
                           w0:w0 + (OW - 1) * stride + 1:stride, :])
    x2 = jnp.concatenate(cols, axis=-1).reshape(M, KH * KW * Cin)
    w2 = w.reshape(KH * KW * Cin, Cout)
    res2 = None if residual is None else residual.reshape(M, Cout)
    out = _fused_gemm(x2, w2, scale, bias, res2, relu=relu)
    return out.reshape(N, OH, OW, Cout)


# ---------------------------------------------------------------------------
# Max pool 3x3 / stride 2 / pad 1: running pairwise maximum over the 9 taps
# (XLA-fused; no duplicated-tap tensor is materialized in HBM).
# ---------------------------------------------------------------------------
@jax.jit
def maxpool2d_3x3_s2_p1(x):
    N, H, W, C = x.shape
    OH = (H + 2 - 3) // 2 + 1
    OW = (W + 2 - 3) // 2 + 1
    xp = jnp.pad(x, ((0, 0), (1, 1), (1, 1), (0, 0)),
                 constant_values=-jnp.inf)
    out = None
    for kh in range(3):
        for kw in range(3):
            v = xp[:, kh:kh + 2 * (OH - 1) + 1:2,
                   kw:kw + 2 * (OW - 1) + 1:2, :]
            out = v if out is None else jnp.maximum(out, v)
    return out


# ---------------------------------------------------------------------------
# Global average pool: tiled over H*W with an accumulating grid axis
# ---------------------------------------------------------------------------
def _gap_kernel(x_ref, o_ref, acc_ref, *, inv_hw):
    h = pl.program_id(1)

    @pl.when(h == 0)
    def _init():
        acc_ref[...] = jnp.zeros_like(acc_ref)

    acc_ref[...] += jnp.sum(x_ref[...].astype(jnp.float32), axis=1)

    @pl.when(h == pl.num_programs(1) - 1)
    def _finalize():
        o_ref[...] = acc_ref[...] * inv_hw


@functools.lru_cache(maxsize=None)
def _gap_call(N, HWp, C, THW, TC, inv_hw):
    cfg = _hw_config()
    kernel = functools.partial(_gap_kernel, inv_hw=inv_hw)
    need = 2 * N * THW * TC * 2 + 2 * N * TC * 4 + N * TC * 4
    vmem_limit = max(min(int(need * 1.5) + (2 << 20), cfg["vmem_cap"]),
                     16 * 1024 * 1024)
    return pl.pallas_call(
        kernel,
        out_shape=jax.ShapeDtypeStruct((N, C), jnp.float32),
        grid_spec=pltpu.PrefetchScalarGridSpec(
            num_scalar_prefetch=0,
            grid=(C // TC, HWp // THW),
            in_specs=[pl.BlockSpec((N, THW, TC), lambda c, h: (0, h, c))],
            out_specs=pl.BlockSpec((N, TC), lambda c, h: (0, c)),
            scratch_shapes=[pltpu.VMEM((N, TC), jnp.float32)]),
        compiler_params=pltpu.CompilerParams(
            dimension_semantics=("parallel", "arbitrary"),
            vmem_limit_bytes=vmem_limit),
    )


@jax.jit
def global_avg_pool(x):
    N, H, W, C = x.shape
    HW = H * W
    x2 = x.reshape(N, HW, C).astype(jnp.bfloat16)
    THW = 512 if HW >= 512 else _round_up(HW, 8)
    HWp = _round_up(HW, THW)
    if HWp != HW:
        x2 = jnp.pad(x2, ((0, 0), (0, HWp - HW), (0, 0)))
    TC = C if C <= 512 else (_divisor_tile(C, 512, 128) or C)
    return _gap_call(N, HWp, C, THW, TC, 1.0 / float(HW))(x2)


# ---------------------------------------------------------------------------
# Bilinear upsample (align_corners=True) via two Pallas GEMMs, NCHW output
# ---------------------------------------------------------------------------
def _interp_matrix_align_corners(out_size, in_size):
    if in_size == 1:
        return jnp.ones((out_size, 1), jnp.float32)
    src = jnp.arange(out_size, dtype=jnp.float32) * (in_size - 1) / (out_size - 1)
    lo = jnp.clip(jnp.floor(src).astype(jnp.int32), 0, in_size - 1)
    hi = jnp.minimum(lo + 1, in_size - 1)
    frac = src - lo.astype(jnp.float32)
    idx = jnp.arange(out_size)
    m = jnp.zeros((out_size, in_size), jnp.float32)
    m = m.at[idx, lo].add(1.0 - frac)
    m = m.at[idx, hi].add(frac)
    return m


@functools.partial(jax.jit, static_argnames=("scale",))
def bilinear_upsample_to_nchw(x, scale):
    """nn.UpsamplingBilinear2d(scale_factor=scale) on NHWC -> NCHW float32.
    Both GEMMs keep the flattened (N*spatial*C) axis as the lane/store axis
    and stay bf16; a single transpose produces NCHW (cast fused into it)."""
    N, H, W, C = x.shape
    OH, OW = H * scale, W * scale
    Wh = _interp_matrix_align_corners(OH, H)
    Ww = _interp_matrix_align_corners(OW, W)
    t = jnp.transpose(x, (1, 0, 2, 3)).reshape(H, N * W * C)
    t = pallas_matmul(Wh, t).reshape(OH, N, W, C)
    t = jnp.transpose(t, (2, 1, 0, 3)).reshape(W, N * OH * C)
    t = pallas_matmul(Ww, t).reshape(OW, N, OH, C)
    return jnp.transpose(t, (1, 3, 2, 0)).astype(jnp.float32)   # (N, C, OH, OW)


# ---------------------------------------------------------------------------
# Deterministic parameter construction (ResNet-101 + ASPP + head)
# ---------------------------------------------------------------------------
class _ParamGen:
    def __init__(self, key):
        self._key = key
        self._i = 0

    def _next(self):
        k = jax.random.fold_in(self._key, self._i)
        self._i += 1
        return k

    def conv(self, kh, kw, cin, cout):
        fan_in = kh * kw * cin
        std = (2.0 / fan_in) ** 0.5
        return std * jax.random.normal(self._next(), (kh, kw, cin, cout),
                                       jnp.float32)

    def bn(self, c):
        gamma = 1.0 + 0.1 * jax.random.normal(self._next(), (c,), jnp.float32)
        beta = 0.1 * jax.random.normal(self._next(), (c,), jnp.float32)
        running_mean = jnp.zeros((c,), jnp.float32)
        running_var = jnp.ones((c,), jnp.float32)
        eps = 1e-5
        scale = gamma / jnp.sqrt(running_var + eps)
        bias = beta - running_mean * scale
        return scale, bias

    def bias(self, c):
        return 0.01 * jax.random.normal(self._next(), (c,), jnp.float32)


def build_params(key):
    g = _ParamGen(key)
    P = {}
    # --- ResNet-101 encoder (output_stride = 8, smp-style dilation) ---
    P["conv1_w"] = g.conv(7, 7, 3, 64)
    P["bn1"] = g.bn(64)
    stage_defs = [(64, 3, 1, 1), (128, 4, 2, 1), (256, 23, 1, 2), (512, 3, 1, 4)]
    inplanes = 64
    stages = []
    for planes, blocks, stride, dilation in stage_defs:
        blocks_p = []
        for b in range(blocks):
            cin = inplanes if b == 0 else planes * 4
            has_ds = (b == 0) and (stride != 1 or cin != planes * 4)
            bp = {
                "w1": g.conv(1, 1, cin, planes), "bn1": g.bn(planes),
                "w2": g.conv(3, 3, planes, planes), "bn2": g.bn(planes),
                "w3": g.conv(1, 1, planes, planes * 4), "bn3": g.bn(planes * 4),
                "stride": stride if b == 0 else 1,
                "dilation": dilation,
                "has_ds": has_ds,
            }
            if has_ds:
                bp["wd"] = g.conv(1, 1, cin, planes * 4)
                bp["bnd"] = g.bn(planes * 4)
            blocks_p.append(bp)
        inplanes = planes * 4
        stages.append(blocks_p)
    P["stages"] = stages
    # --- ASPP decoder (2048 -> 256) ---
    enc_out, dc = 2048, 256
    P["aspp_c0_w"], P["aspp_c0_bn"] = g.conv(1, 1, enc_out, dc), g.bn(dc)
    for i in range(3):
        P[f"aspp_c{i+1}_w"], P[f"aspp_c{i+1}_bn"] = g.conv(3, 3, enc_out, dc), g.bn(dc)
    P["aspp_pool_w"], P["aspp_pool_bn"] = g.conv(1, 1, enc_out, dc), g.bn(dc)
    P["aspp_proj_w"], P["aspp_proj_bn"] = g.conv(1, 1, 5 * dc, dc), g.bn(dc)
    P["dec_conv_w"], P["dec_conv_bn"] = g.conv(3, 3, dc, dc), g.bn(dc)
    # --- segmentation head (1x1 conv with bias, 12 classes) ---
    P["head_w"] = g.conv(1, 1, dc, NUM_CLASSES)
    P["head_b"] = g.bias(NUM_CLASSES)
    return P


# ---------------------------------------------------------------------------
# Forward pass
# ---------------------------------------------------------------------------
def _bottleneck(x, bp):
    out = conv2d(x, bp["w1"], *bp["bn1"], relu=True)
    out = conv2d(out, bp["w2"], *bp["bn2"], stride=bp["stride"],
                 dilation=bp["dilation"], padding=bp["dilation"], relu=True)
    if bp["has_ds"]:
        identity = conv2d(x, bp["wd"], *bp["bnd"], stride=bp["stride"],
                          relu=False)
    else:
        identity = x
    # residual add + ReLU fused into the last 1x1 conv
    return conv2d(out, bp["w3"], *bp["bn3"], residual=identity, relu=True)


def deeplabv3_forward(x_nchw, P):
    x = jnp.transpose(x_nchw, (0, 2, 3, 1)).astype(jnp.bfloat16)   # -> NHWC
    # stem
    x = conv2d(x, P["conv1_w"], *P["bn1"], stride=2, padding=3, relu=True)
    x = maxpool2d_3x3_s2_p1(x)
    # residual stages
    for stage in P["stages"]:
        for bp in stage:
            x = _bottleneck(x, bp)
    # ASPP
    branches = [conv2d(x, P["aspp_c0_w"], *P["aspp_c0_bn"], relu=True)]
    for i, r in enumerate((12, 24, 36)):
        branches.append(conv2d(x, P[f"aspp_c{i+1}_w"], *P[f"aspp_c{i+1}_bn"],
                               dilation=r, padding=r, relu=True))
    N, H, W, C = x.shape
    pooled = global_avg_pool(x).reshape(N, 1, 1, C)
    pooled = conv2d(pooled, P["aspp_pool_w"], *P["aspp_pool_bn"], relu=True)
    # bilinear upsample from a 1x1 map == broadcast
    pooled = jnp.broadcast_to(pooled, (N, H, W, pooled.shape[-1]))
    branches.append(pooled.astype(jnp.bfloat16))
    y = jnp.concatenate(branches, axis=-1)
    y = conv2d(y, P["aspp_proj_w"], *P["aspp_proj_bn"], relu=True)
    y = conv2d(y, P["dec_conv_w"], *P["dec_conv_bn"], padding=1, relu=True)
    # segmentation head: pad 12 -> 128 classes for a lane-dense GEMM, slice back
    cpad = 128
    head_w = jnp.pad(P["head_w"],
                     ((0, 0), (0, 0), (0, 0), (0, cpad - NUM_CLASSES)))
    head_b = jnp.pad(P["head_b"], ((0, cpad - NUM_CLASSES),))
    y = conv2d(y, head_w, jnp.ones((cpad,), jnp.float32), head_b, relu=False)
    y = y[..., :NUM_CLASSES]
    # bilinear x8 upsample -> NCHW float32 (single tail transpose)
    return bilinear_upsample_to_nchw(y, scale=8)


if __name__ == "__main__":
    key = jax.random.PRNGKey(0)
    pkey, xkey = jax.random.split(key)
    params = build_params(pkey)
    x = jax.random.normal(xkey, (2, 3, 64, 64), jnp.float32)  # small NCHW input
    y = deeplabv3_forward(x, params)
    y = jax.block_until_ready(y)
    assert y.shape == (2, NUM_CLASSES, 64, 64), y.shape
    assert bool(jnp.all(jnp.isfinite(y)))
    print("KERNEL_OK")
</pallas_src>

<mosaic_0001>
module attributes {stable_mosaic.version = 11 : i64} {
  func.func @_fused_gemm_kernel(%arg0: i32, %arg1: i32, %arg2: i32, %arg3: memref<1024x147xbf16, #tpu.memory_space<vmem>>, %arg4: memref<147x64xbf16, #tpu.memory_space<vmem>>, %arg5: memref<1x64xf32, #tpu.memory_space<vmem>>, %arg6: memref<1x64xf32, #tpu.memory_space<vmem>>, %arg7: memref<1024x64xbf16, #tpu.memory_space<vmem>>, %arg8: memref<1024x64xf32, #tpu.memory_space<vmem>>) attributes {dimension_semantics = [#tpu.dimension_semantics<parallel>, #tpu.dimension_semantics<parallel>, #tpu.dimension_semantics<arbitrary>], iteration_bounds = array<i64: 2, 1, 1>, scalar_prefetch = 0 : i64, scratch_operands = 1 : i64, tpu.core_type = #tpu.core_type<tc>, window_params = [{transform_indices = @transform_0, window_bounds = array<i64: 1024, 147>}, {transform_indices = @transform_1, window_bounds = array<i64: 147, 64>}, {transform_indices = @transform_2, window_bounds = array<i64: 1, 64>}, {transform_indices = @transform_3, window_bounds = array<i64: 1, 64>}, {transform_indices = @transform_4, window_bounds = array<i64: 1024, 64>}]} {
    %c0_i32 = arith.constant 0 : i32
    %0 = arith.cmpi eq, %arg2, %c0_i32 : i32
    %1 = arith.extui %0 : i1 to i32
    %c0_i32_0 = arith.constant 0 : i32
    %2 = arith.cmpi ne, %1, %c0_i32_0 : i32
    scf.if %2 {
      %cst_10 = arith.constant 0.000000e+00 : f32
      %12 = vector.broadcast %cst_10 : f32 to vector<1024x64xf32>
      %c0_11 = arith.constant 0 : index
      %c0_12 = arith.constant 0 : index
      %13 = vector.load %arg8[%c0_11, %c0_12] : memref<1024x64xf32, #tpu.memory_space<vmem>>, vector<1024x64xf32>
      tpu.vector_store %arg8[%c0_11, %c0_12], %12 {strides = array<i32>} : memref<1024x64xf32, #tpu.memory_space<vmem>>, vector<1024x64xf32>,
    } else {
    }
    %c0 = arith.constant 0 : index
    %c0_1 = arith.constant 0 : index
    %3 = vector.load %arg8[%c0, %c0_1] : memref<1024x64xf32, #tpu.memory_space<vmem>>, vector<1024x64xf32>
    %c0_2 = arith.constant 0 : index
    %c0_3 = arith.constant 0 : index
    %4 = vector.load %arg3[%c0_2, %c0_3] : memref<1024x147xbf16, #tpu.memory_space<vmem>>, vector<1024x147xbf16>
    %c0_4 = arith.constant 0 : index
    %c0_5 = arith.constant 0 : index
    %5 = vector.load %arg4[%c0_4, %c0_5] : memref<147x64xbf16, #tpu.memory_space<vmem>>, vector<147x64xbf16>
    %cst = arith.constant dense<0.000000e+00> : vector<1024x64xf32>
    %6 = tpu.matmul %4, %5, %cst {dimension_numbers = #tpu.dot_dimension_numbers<[1], [0], [0], [1], [0, 0, 1, 1], [], []>} : vector<1024x147xbf16>, vector<147x64xbf16>, vector<1024x64xf32> -> vector<1024x64xf32>
    %7 = arith.addf %3, %6 : vector<1024x64xf32>
    %c0_6 = arith.constant 0 : index
    %c0_7 = arith.constant 0 : index
    %8 = vector.load %arg8[%c0_6, %c0_7] : memref<1024x64xf32, #tpu.memory_space<vmem>>, vector<1024x64xf32>
    tpu.vector_store %arg8[%c0_6, %c0_7], %7 {strides = array<i32>} : memref<1024x64xf32, #tpu.memory_space<vmem>>, vector<1024x64xf32>,
    %c0_i32_8 = arith.constant 0 : i32
    %9 = arith.cmpi eq, %arg2, %c0_i32_8 : i32
    %10 = arith.extui %9 : i1 to i32
    %c0_i32_9 = arith.constant 0 : i32
    %11 = arith.cmpi ne, %10, %c0_i32_9 : i32
    scf.if %11 {
      %c0_10 = arith.constant 0 : index
      %c0_11 = arith.constant 0 : index
      %12 = vector.load %arg8[%c0_10, %c0_11] : memref<1024x64xf32, #tpu.memory_space<vmem>>, vector<1024x64xf32>
      %c0_12 = arith.constant 0 : index
      %c0_13 = arith.constant 0 : index
      %13 = vector.load %arg5[%c0_12, %c0_13] : memref<1x64xf32, #tpu.memory_space<vmem>>, vector<1x64xf32>
      %14 = vector.broadcast %13 : vector<1x64xf32> to vector<1024x64xf32>
      %15 = arith.mulf %12, %14 : vector<1024x64xf32>
      %c0_14 = arith.constant 0 : index
      %c0_15 = arith.constant 0 : index
      %16 = vector.load %arg6[%c0_14, %c0_15] : memref<1x64xf32, #tpu.memory_space<vmem>>, vector<1x64xf32>
      %17 = vector.broadcast %16 : vector<1x64xf32> to vector<1024x64xf32>
      %18 = arith.addf %15, %17 : vector<1024x64xf32>
      %cst_16 = arith.constant 0.000000e+00 : f32
      %19 = vector.broadcast %cst_16 : f32 to vector<1024x64xf32>
      %20 = arith.maximumf %18, %19 : vector<1024x64xf32>
      %21 = arith.truncf %20 : vector<1024x64xf32> to vector<1024x64xbf16>
      %c0_17 = arith.constant 0 : index
      %c0_18 = arith.constant 0 : index
      %22 = vector.load %arg7[%c0_17, %c0_18] : memref<1024x64xbf16, #tpu.memory_space<vmem>>, vector<1024x64xbf16>
      tpu.vector_store %arg7[%c0_17, %c0_18], %21 {strides = array<i32>} : memref<1024x64xbf16, #tpu.memory_space<vmem>>, vector<1024x64xbf16>,
    } else {
    }
    return
  }
  func.func @transform_0(%arg0: i32, %arg1: i32, %arg2: i32) -> (i32, i32) {
    %c0_i32 = arith.constant 0 : i32
    return %arg0, %arg2 : i32, i32
  }
  func.func @transform_1(%arg0: i32, %arg1: i32, %arg2: i32) -> (i32, i32) {
    %c0_i32 = arith.constant 0 : i32
    return %arg2, %arg1 : i32, i32
  }
  func.func @transform_2(%arg0: i32, %arg1: i32, %arg2: i32) -> (i32, i32) {
    %c0_i32 = arith.constant 0 : i32
    %c0_i32_0 = arith.constant 0 : i32
    return %c0_i32, %arg1 : i32, i32
  }
  func.func @transform_3(%arg0: i32, %arg1: i32, %arg2: i32) -> (i32, i32) {
    %c0_i32 = arith.constant 0 : i32
    %c0_i32_0 = arith.constant 0 : i32
    return %c0_i32, %arg1 : i32, i32
  }
  func.func @transform_4(%arg0: i32, %arg1: i32, %arg2: i32) -> (i32, i32) {
    %c0_i32 = arith.constant 0 : i32
    return %arg0, %arg1 : i32, i32
  }
}

</mosaic_0001>

<llo_original>
// kernel: conv2d.1
$region0: #{conv2d.1}
  #allocation0 [shape = 'u32[]', space=smem, size = 0x4, offset = 0x4, fixed_abs, tag = 'smem constant byte address 0x4 - core index']
  #allocation1 [shape = 'u32[144,128]{1,0:T(1,128)}', space=vmem, size = 0x12000, scoped, tag = 'internal scratch']
  #allocation2 [shape = 'f32[1024,64]{1,0:T(8,128)}', space=vmem, size = 0x80000, scoped, tag = 'scratch operand']
  %s0 = inlined_call_operand.vmem [shape: bf16[2048,147], index: 0, kind: input, shape index: {}]
  %s1 = inlined_call_operand.vmem [shape: bf16[147,64], index: 1, kind: input, shape index: {}]
  %s2 = inlined_call_operand.vmem [shape: f32[1,64], index: 2, kind: input, shape index: {}]
  %s3 = inlined_call_operand.vmem [shape: f32[1,64], index: 3, kind: input, shape index: {}]
  %s4 = inlined_call_operand.hbm [shape: bf16[2048,64], index: 4, kind: output, shape index: {}]
  %s5 = sld [smem:[#allocation0]]
  $region57: #{conv2d.1} parent=0
    _
  %s7 = ssub.s32 1, %s5
  %s8 = scalar_select 0, %s7, %s5
  $region1: #{conv2d.1} parent=0
    #allocation3 [shape = 'u8[524288]{0}', space=vmem, size = 0x80000, scoped, tag = 'output window, operand 0']
    #allocation4 [shape = 's32[2]{0}', space=sflag, size = 0x8, scoped, tag = 'scoped memory for conv2d.1']
    %9 = vsyncpa [#allocation4], 0
    %s10 = scalar_lea.sflag [#allocation4], 1
    %11 = vsyncpa %s10, 0
    loop: start=0, step=1, limit=4
    $region2: #{conv2d.1} parent=1 // loop_pre_header
      _
    $region3: #{conv2d.1} parent=1 // loop_header
      %s13 = sphi 0, %s17
      %p14 = scmp.ge.s32.totalorder %s13, 4
      %s20 = sphi 0, %s39
      %s21 = sphi 0, %s35
      %s22 = sphi 0, %s31
      %s23 = sphi 0, %s20
      %s24 = sphi 0, %s21
      %s25 = sphi 0, %s22
      %s26 = sphi 0, %s23
      %s27 = sphi 0, %s24
      %s28 = sphi 0, %s25
      %s44 = sphi 0, %s46
      %s47 = sphi 0, %s44
      %s48 = sphi 0, %s47
      %s64 = sphi 0, %s48
      %s72 = sphi 0, %s74
      %s75 = sphi 0, %s72
      %s76 = sphi 0, %s75
      %s92 = sphi 0, %s76
      %s98 = sphi 0, %s100
      %s101 = sphi 0, %s98
      %s102 = sphi 0, %s101
      %s118 = sphi 0, %s102
      %s124 = sphi 0, %s126
      %s127 = sphi 0, %s124
      %s128 = sphi 0, %s127
      %s144 = sphi 0, %s128
      %s152 = sphi 0, %s154
      %s155 = sphi 0, %s152
      %s156 = sphi 0, %s155
      %s172 = sphi 0, %s156
    $region4: #{conv2d.1} parent=1 // loop_header_branch
      %16 = sbr.rel (%p14) target = $region8
    $region5: #{conv2d.1} parent=1 // loop_body
      %s18 = ssub.s32 %s13, 1
      %s19 = ssub.s32 %s13, 2
      %s29 = sadd.s32 1, %s22
      %p30 = scmp.ge.s32.totalorder %s29, 1
      %s31 = scalar_select %p30, 0, %s29
      %s32 = sadd.s32 1, %s21
      %s33 = scalar_select %p30, %s32, %s21
      %p34 = scmp.ge.s32.totalorder %s33, 1
      %s35 = scalar_select %p34, 0, %s33
      %s36 = sadd.s32 1, %s20
      %s37 = scalar_select %p34, %s36, %s20
      %p38 = scmp.ge.s32.totalorder %s37, 2
      %s39 = scalar_select %p38, 0, %s37
      %s40 = ssub.s32 %s20, %s39
      %s41 = ssub.s32 %s22, %s31
      %s42 = sor.u32 %s40, %s41
      %p43 = scmp.eq.s32.totalorder %s42, 0
      %s45 = sadd.s32 %s44, 1
      %s46 = scalar_select %p43, %s44, %s45
      %p49 = pneg %p43
      %p50 = scmp.eq.s32.totalorder %s13, 1
      %p51 = por %p49, %p50
      %p52 = scmp.ne.s32.totalorder %s44, %s47
      %p53 = scmp.eq.s32.totalorder %s13, 0
      %p54 = por %p52, %p53
      %p55 = scmp.ne.s32.totalorder %s44, %s47
      %p56 = scmp.eq.s32.totalorder %s18, 1
      %p57 = por %p55, %p56
      %p58 = scmp.ne.s32.totalorder %s47, %s48
      %p59 = scmp.eq.s32.totalorder %s18, 0
      %p60 = por %p58, %p59
      %p61 = scmp.ne.s32.totalorder %s47, %s48
      %p62 = scmp.eq.s32.totalorder %s19, 1
      %p63 = por %p61, %p62
      %p65 = scmp.ne.s32.totalorder %s48, %s64
      %p66 = scmp.eq.s32.totalorder %s19, 0
      %p67 = por %p65, %p66
      %s68 = ssub.s32 %s22, %s31
      %s69 = ssub.s32 %s21, %s35
      %s70 = sor.u32 %s68, %s69
      %p71 = scmp.eq.s32.totalorder %s70, 0
      %s73 = sadd.s32 %s72, 1
      %s74 = scalar_select %p71, %s72, %s73
      %p77 = pneg %p71
      %p78 = scmp.eq.s32.totalorder %s13, 1
      %p79 = por %p77, %p78
      %p80 = scmp.ne.s32.totalorder %s72, %s75
      %p81 = scmp.eq.s32.totalorder %s13, 0
      %p82 = por %p80, %p81
      %p83 = scmp.ne.s32.totalorder %s72, %s75
      %p84 = scmp.eq.s32.totalorder %s18, 1
      %p85 = por %p83, %p84
      %p86 = scmp.ne.s32.totalorder %s75, %s76
      %p87 = scmp.eq.s32.totalorder %s18, 0
      %p88 = por %p86, %p87
      %p89 = scmp.ne.s32.totalorder %s75, %s76
      %p90 = scmp.eq.s32.totalorder %s19, 1
      %p91 = por %p89, %p90
      %p93 = scmp.ne.s32.totalorder %s76, %s92
      %p94 = scmp.eq.s32.totalorder %s19, 0
      %p95 = por %p93, %p94
      %s96 = ssub.s32 %s21, %s35
      %p97 = scmp.eq.s32.totalorder %s96, 0
      %s99 = sadd.s32 %s98, 1
      %s100 = scalar_select %p97, %s98, %s99
      %p103 = pneg %p97
      %p104 = scmp.eq.s32.totalorder %s13, 1
      %p105 = por %p103, %p104
      %p106 = scmp.ne.s32.totalorder %s98, %s101
      %p107 = scmp.eq.s32.totalorder %s13, 0
      %p108 = por %p106, %p107
      %p109 = scmp.ne.s32.totalorder %s98, %s101
      %p110 = scmp.eq.s32.totalorder %s18, 1
      %p111 = por %p109, %p110
      %p112 = scmp.ne.s32.totalorder %s101, %s102
      %p113 = scmp.eq.s32.totalorder %s18, 0
      %p114 = por %p112, %p113
      %p115 = scmp.ne.s32.totalorder %s101, %s102
      %p116 = scmp.eq.s32.totalorder %s19, 1
      %p117 = por %p115, %p116
      %p119 = scmp.ne.s32.totalorder %s102, %s118
      %p120 = scmp.eq.s32.totalorder %s19, 0
      %p121 = por %p119, %p120
      %s122 = ssub.s32 %s21, %s35
      %p123 = scmp.eq.s32.totalorder %s122, 0
      %s125 = sadd.s32 %s124, 1
      %s126 = scalar_select %p123, %s124, %s125
      %p129 = pneg %p123
      %p130 = scmp.eq.s32.totalorder %s13, 1
      %p131 = por %p129, %p130
      %p132 = scmp.ne.s32.totalorder %s124, %s127
      %p133 = scmp.eq.s32.totalorder %s13, 0
      %p134 = por %p132, %p133
      %p135 = scmp.ne.s32.totalorder %s124, %s127
      %p136 = scmp.eq.s32.totalorder %s18, 1
      %p137 = por %p135, %p136
      %p138 = scmp.ne.s32.totalorder %s127, %s128
      %p139 = scmp.eq.s32.totalorder %s18, 0
      %p140 = por %p138, %p139
      %p141 = scmp.ne.s32.totalorder %s127, %s128
      %p142 = scmp.eq.s32.totalorder %s19, 1
      %p143 = por %p141, %p142
      %p145 = scmp.ne.s32.totalorder %s128, %s144
      %p146 = scmp.eq.s32.totalorder %s19, 0
      %p147 = por %p145, %p146
      %s148 = ssub.s32 %s20, %s39
      %s149 = ssub.s32 %s21, %s35
      %s150 = sor.u32 %s148, %s149
      %p151 = scmp.eq.s32.totalorder %s150, 0
      %s153 = sadd.s32 %s152, 1
      %s154 = scalar_select %p151, %s152, %s153
      %p157 = pneg %p151
      %p158 = scmp.eq.s32.totalorder %s13, 1
      %p159 = por %p157, %p158
      %p160 = scmp.ne.s32.totalorder %s152, %s155
      %p161 = scmp.eq.s32.totalorder %s13, 0
      %p162 = por %p160, %p161
      %p163 = scmp.ne.s32.totalorder %s152, %s155
      %p164 = scmp.eq.s32.totalorder %s18, 1
      %p165 = por %p163, %p164
      %p166 = scmp.ne.s32.totalorder %s155, %s156
      %p167 = scmp.eq.s32.totalorder %s18, 0
      %p168 = por %p166, %p167
      %p169 = scmp.ne.s32.totalorder %s155, %s156
      %p170 = scmp.eq.s32.totalorder %s19, 1
      %p171 = por %p169, %p170
      %p173 = scmp.ne.s32.totalorder %s156, %s172
      %p174 = scmp.eq.s32.totalorder %s19, 0
      %p175 = por %p173, %p174
      %p176 = scmp.le.s32.totalorder 1, %s13
      %p177 = scmp.lt.s32.totalorder %s13, 3
      %p178 = pnand %p176, %p177
      %p179 = pneg %p178
      // Predicated region
      $region9: #{conv2d.1} parent=5 // pred_check
        _
      $region10: #{conv2d.1} parent=5 // pred_check_branch
        %181 = sbr.rel (%p178) target = $region12
      $region11: #{conv2d.1} parent=5 // pred_region
        %s182 = ssub.s32 %s13, 1
        // Predicated region
        $region13: #{conv2d.1} parent=11 // pred_check
          %p183 = pneg %p88
        $region14: #{conv2d.1} parent=11 // pred_check_branch
          %185 = sbr.rel (%p183) target = $region16
        $region15: #{conv2d.1} parent=11 // pred_region
          %s186 = smul.u32 19, %s25
          %p187 = scmp.lt.s32.totalorder %s186, 18
          %s188 = scalar_select %p187, %s186, 18
          %p189 = scmp.lt.s32.totalorder %s24, 0
          %s190 = scalar_select %p189, %s24, 0
          %s191 = sadd.s32 %s190, %s188
          %s192 = smul.addr %s191, 4
          %s193 = scalar_lea.vmem %s1, %s192
          %s194 = smul.u32 19, %s25
        $region16: #{conv2d.1} parent=11 // pred_fallthru
          _
        // Predicated region
        $region17: #{conv2d.1} parent=11 // pred_check
          %p195 = pneg %p114
        $region18: #{conv2d.1} parent=11 // pred_check_branch
          %197 = sbr.rel (%p195) target = $region20
        $region19: #{conv2d.1} parent=11 // pred_region
          %p198 = scmp.lt.s32.totalorder %s24, 0
          %s199 = scalar_select %p198, %s24, 0
          %s200 = scalar_lea.vmem %s2, %s199
        $region20: #{conv2d.1} parent=11 // pred_fallthru
          _
        // Predicated region
        $region21: #{conv2d.1} parent=11 // pred_check
          %p201 = pneg %p140
        $region22: #{conv2d.1} parent=11 // pred_check_branch
          %203 = sbr.rel (%p201) target = $region24
        $region23: #{conv2d.1} parent=11 // pred_region
          %p204 = scmp.lt.s32.totalorder %s24, 0
          %s205 = scalar_select %p204, %s24, 0
          %s206 = scalar_lea.vmem %s3, %s205
        $region24: #{conv2d.1} parent=11 // pred_fallthru
          _
      $region12: #{conv2d.1} parent=5 // pred_fallthru
        _
      %p207 = scmp.lt.s32.totalorder %s13, 2
      // Predicated region
      $region25: #{conv2d.1} parent=5 // pred_check
        %p208 = pneg %p207
      $region26: #{conv2d.1} parent=5 // pred_check_branch
        %210 = sbr.rel (%p208) target = $region28
      $region27: #{conv2d.1} parent=5 // pred_region
        // Predicated region
        $region29: #{conv2d.1} parent=27 // pred_check
          %p211 = pneg %p54
        $region30: #{conv2d.1} parent=27 // pred_check_branch
          %213 = sbr.rel (%p211) target = $region32
        $region31: #{conv2d.1} parent=27 // pred_region
          %s214 = smul.u32 128, %s20
          %s215 = smul.u32 2, %s22
          %p216 = scmp.lt.s32.totalorder %s214, 255
          %s217 = scalar_select %p216, %s214, 255
          %p218 = scmp.lt.s32.totalorder %s215, 1
          %s219 = scalar_select %p218, %s215, 1
          %s220 = smul.addr %s217, 2
          %s221 = sadd.s32 %s219, %s220
          %s222 = smul.addr %s221, 4
          %s223 = scalar_lea.vmem %s0, %s222
          %s224 = smul.u32 128, %s20
          %s225 = smul.u32 2, %s22
        $region32: #{conv2d.1} parent=27 // pred_fallthru
          _
      $region28: #{conv2d.1} parent=5 // pred_fallthru
        _
      %p226 = scmp.le.s32.totalorder 1, %s13
      %p227 = scmp.lt.s32.totalorder %s13, 3
      %p228 = pnand %p226, %p227
      %p229 = pneg %p228
      // Predicated region
      $region33: #{conv2d.1} parent=5 // pred_check
        _
      $region34: #{conv2d.1} parent=5 // pred_check_branch
        %231 = sbr.rel (%p228) target = $region36
      $region35: #{conv2d.1} parent=5 // pred_region
        %s232 = ssub.s32 %s13, 1
        %s233 = smul.u32 128, %s23
        %s234 = smul.u32 2, %s25
        %p235 = scmp.lt.s32.totalorder %s233, 255
        %s236 = scalar_select %p235, %s233, 255
        %p237 = scmp.lt.s32.totalorder %s234, 1
        %s238 = scalar_select %p237, %s234, 1
        %s239 = smul.addr %s236, 2
        %s240 = sadd.s32 %s238, %s239
        %s241 = smul.addr %s240, 4
        %s242 = scalar_lea.vmem %s0, %s241
        %p243 = pneg %p60
        %p244 = pneg %p57
        %s245 = smul.u32 19, %s25
        %p246 = scmp.lt.s32.totalorder %s245, 18
        %s247 = scalar_select %p246, %s245, 18
        %p248 = scmp.lt.s32.totalorder %s24, 0
        %s249 = scalar_select %p248, %s24, 0
        %s250 = sadd.s32 %s249, %s247
        %s251 = smul.addr %s250, 4
        %s252 = scalar_lea.vmem %s1, %s251
        %p253 = pneg %p88
        %p254 = pneg %p85
        %p255 = scmp.lt.s32.totalorder %s24, 0
        %s256 = scalar_select %p255, %s24, 0
        %s257 = scalar_lea.vmem %s2, %s256
        %p258 = pneg %p114
        %p259 = pneg %p111
        %p260 = scmp.lt.s32.totalorder %s24, 0
        %s261 = scalar_select %p260, %s24, 0
        %s262 = scalar_lea.vmem %s3, %s261
        %p263 = pneg %p140
        %p264 = pneg %p137
        %p265 = pneg %p168
        %p266 = pneg %p165
        %s267 = sand.u32 %s155, 1
        %s268 = scalar_lea.sflag [#allocation4], %s267
        %s269 = sand.u32 %s155, 1
        %s270 = smul.addr %s269, 512
        %s271 = scalar_lea.vmem [#allocation3], %s270
        %s272 = smul.u32 128, %s23
        %s273 = smul.u32 2, %s25
        %p274 = scmp.lt.s32.totalorder %s272, 255
        %s275 = scalar_select %p274, %s272, 255
        %p276 = scmp.lt.s32.totalorder %s273, 1
        %s277 = scalar_select %p276, %s273, 1
        %s278 = smul.addr %s275, 2
        %s279 = sadd.s32 %s277, %s278
        %s280 = smul.addr %s279, 4
        %s281 = scalar_lea.vmem %s0, %s280
        %s282 = smul.u32 128, %s23
        %s283 = smul.u32 2, %s25
        %s284 = smul.u32 19, %s25
        %p285 = scmp.lt.s32.totalorder %s284, 18
        %s286 = scalar_select %p285, %s284, 18
        %p287 = scmp.lt.s32.totalorder %s24, 0
        %s288 = scalar_select %p287, %s24, 0
        %s289 = sadd.s32 %s288, %s286
        %s290 = smul.addr %s289, 4
        %s291 = scalar_lea.vmem %s1, %s290
        %s292 = smul.u32 19, %s25
        %p293 = scmp.lt.s32.totalorder %s24, 0
        %s294 = scalar_select %p293, %s24, 0
        %s295 = scalar_lea.vmem %s2, %s294
        %p296 = scmp.lt.s32.totalorder %s24, 0
        %s297 = scalar_select %p296, %s24, 0
        %s298 = scalar_lea.vmem %s3, %s297
        %s299 = smul.u32 128, %s23
        %p301 = scmp.eq.s32.totalorder %s25, 0
        // Predicated region
        $region37: #{conv2d.1} parent=35 // pred_check
          %p302 = pneg %p301
        $region38: #{conv2d.1} parent=35 // pred_check_branch
          %304 = sbr.rel (%p302) target = $region40
        $region39: #{conv2d.1} parent=35 // pred_region
          %vm305 = vcmask 523264
          %306 = vst.msk [vmem:[#allocation2] sm:$0xff] %vm305, 0.0
          %307 = vst.msk [vmem:[#allocation2 + $0x8] sm:$0xff] %vm305, 0.0
          %308 = vst.msk [vmem:[#allocation2 + $0x10] sm:$0xff] %vm305, 0.0
          %309 = vst.msk [vmem:[#allocation2 + $0x18] sm:$0xff] %vm305, 0.0
          %310 = vst.msk [vmem:[#allocation2 + $0x20] sm:$0xff] %vm305, 0.0
          %311 = vst.msk [vmem:[#allocation2 + $0x28] sm:$0xff] %vm305, 0.0
          %312 = vst.msk [vmem:[#allocation2 + $0x30] sm:$0xff] %vm305, 0.0
          %313 = vst.msk [vmem:[#allocation2 + $0x38] sm:$0xff] %vm305, 0.0
          %314 = vst.msk [vmem:[#allocation2 + $0x40] sm:$0xff] %vm305, 0.0
          %315 = vst.msk [vmem:[#allocation2 + $0x48] sm:$0xff] %vm305, 0.0
          %316 = vst.msk [vmem:[#allocation2 + $0x50] sm:$0xff] %vm305, 0.0
          %317 = vst.msk [vmem:[#allocation2 + $0x58] sm:$0xff] %vm305, 0.0
          %318 = vst.msk [vmem:[#allocation2 + $0x60] sm:$0xff] %vm305, 0.0
          %319 = vst.msk [vmem:[#allocation2 + $0x68] sm:$0xff] %vm305, 0.0
          %320 = vst.msk [vmem:[#allocation2 + $0x70] sm:$0xff] %vm305, 0.0
          %321 = vst.msk [vmem:[#allocation2 + $0x78] sm:$0xff] %vm305, 0.0
          %322 = vst.msk [vmem:[#allocation2 + $0x80] sm:$0xff] %vm305, 0.0
          %323 = vst.msk [vmem:[#allocation2 + $0x88] sm:$0xff] %vm305, 0.0
          %324 = vst.msk [vmem:[#allocation2 + $0x90] sm:$0xff] %vm305, 0.0
          %325 = vst.msk [vmem:[#allocation2 + $0x98] sm:$0xff] %vm305, 0.0
          %326 = vst.msk [vmem:[#allocation2 + $0xa0] sm:$0xff] %vm305, 0.0
          %327 = vst.msk [vmem:[#allocation2 + $0xa8] sm:$0xff] %vm305, 0.0
          %328 = vst.msk [vmem:[#allocation2 + $0xb0] sm:$0xff] %vm305, 0.0
          %329 = vst.msk [vmem:[#allocation2 + $0xb8] sm:$0xff] %vm305, 0.0
          %330 = vst.msk [vmem:[#allocation2 + $0xc0] sm:$0xff] %vm305, 0.0
          %331 = vst.msk [vmem:[#allocation2 + $0xc8] sm:$0xff] %vm305, 0.0
          %332 = vst.msk [vmem:[#allocation2 + $0xd0] sm:$0xff] %vm305, 0.0
          %333 = vst.msk [vmem:[#allocation2 + $0xd8] sm:$0xff] %vm305, 0.0
          %334 = vst.msk [vmem:[#allocation2 + $0xe0] sm:$0xff] %vm305, 0.0
          %335 = vst.msk [vmem:[#allocation2 + $0xe8] sm:$0xff] %vm305, 0.0
          %336 = vst.msk [vmem:[#allocation2 + $0xf0] sm:$0xff] %vm305, 0.0
          %337 = vst.msk [vmem:[#allocation2 + $0xf8] sm:$0xff] %vm305, 0.0
          %338 = vst.msk [vmem:[#allocation2 + $0x100] sm:$0xff] %vm305, 0.0
          %339 = vst.msk [vmem:[#allocation2 + $0x108] sm:$0xff] %vm305, 0.0
          %340 = vst.msk [vmem:[#allocation2 + $0x110] sm:$0xff] %vm305, 0.0
          %341 = vst.msk [vmem:[#allocation2 + $0x118] sm:$0xff] %vm305, 0.0
          %342 = vst.msk [vmem:[#allocation2 + $0x120] sm:$0xff] %vm305, 0.0
          %343 = vst.msk [vmem:[#allocation2 + $0x128] sm:$0xff] %vm305, 0.0
          %344 = vst.msk [vmem:[#allocation2 + $0x130] sm:$0xff] %vm305, 0.0
          %345 = vst.msk [vmem:[#allocation2 + $0x138] sm:$0xff] %vm305, 0.0
          %346 = vst.msk [vmem:[#allocation2 + $0x140] sm:$0xff] %vm305, 0.0
          %347 = vst.msk [vmem:[#allocation2 + $0x148] sm:$0xff] %vm305, 0.0
          %348 = vst.msk [vmem:[#allocation2 + $0x150] sm:$0xff] %vm305, 0.0
          %349 = vst.msk [vmem:[#allocation2 + $0x158] sm:$0xff] %vm305, 0.0
          %350 = vst.msk [vmem:[#allocation2 + $0x160] sm:$0xff] %vm305, 0.0
          %351 = vst.msk [vmem:[#allocation2 + $0x168] sm:$0xff] %vm305, 0.0
          %352 = vst.msk [vmem:[#allocation2 + $0x170] sm:$0xff] %vm305, 0.0
          %353 = vst.msk [vmem:[#allocation2 + $0x178] sm:$0xff] %vm305, 0.0
          %354 = vst.msk [vmem:[#allocation2 + $0x180] sm:$0xff] %vm305, 0.0
          %355 = vst.msk [vmem:[#allocation2 + $0x188] sm:$0xff] %vm305, 0.0
          %356 = vst.msk [vmem:[#allocation2 + $0x190] sm:$0xff] %vm305, 0.0
          %357 = vst.msk [vmem:[#allocation2 + $0x198] sm:$0xff] %vm305, 0.0
          %358 = vst.msk [vmem:[#allocation2 + $0x1a0] sm:$0xff] %vm305, 0.0
          %359 = vst.msk [vmem:[#allocation2 + $0x1a8] sm:$0xff] %vm305, 0.0
          %360 = vst.msk [vmem:[#allocation2 + $0x1b0] sm:$0xff] %vm305, 0.0
          %361 = vst.msk [vmem:[#allocation2 + $0x1b8] sm:$0xff] %vm305, 0.0
          %362 = vst.msk [vmem:[#allocation2 + $0x1c0] sm:$0xff] %vm305, 0.0
          %363 = vst.msk [vmem:[#allocation2 + $0x1c8] sm:$0xff] %vm305, 0.0
          %364 = vst.msk [vmem:[#allocation2 + $0x1d0] sm:$0xff] %vm305, 0.0
          %365 = vst.msk [vmem:[#allocation2 + $0x1d8] sm:$0xff] %vm305, 0.0
          %366 = vst.msk [vmem:[#allocation2 + $0x1e0] sm:$0xff] %vm305, 0.0
          %367 = vst.msk [vmem:[#allocation2 + $0x1e8] sm:$0xff] %vm305, 0.0
          %368 = vst.msk [vmem:[#allocation2 + $0x1f0] sm:$0xff] %vm305, 0.0
          %369 = vst.msk [vmem:[#allocation2 + $0x1f8] sm:$0xff] %vm305, 0.0
          %370 = vst.msk [vmem:[#allocation2 + $0x200] sm:$0xff] %vm305, 0.0
          %371 = vst.msk [vmem:[#allocation2 + $0x208] sm:$0xff] %vm305, 0.0
          %372 = vst.msk [vmem:[#allocation2 + $0x210] sm:$0xff] %vm305, 0.0
          %373 = vst.msk [vmem:[#allocation2 + $0x218] sm:$0xff] %vm305, 0.0
          %374 = vst.msk [vmem:[#allocation2 + $0x220] sm:$0xff] %vm305, 0.0
          %375 = vst.msk [vmem:[#allocation2 + $0x228] sm:$0xff] %vm305, 0.0
          %376 = vst.msk [vmem:[#allocation2 + $0x230] sm:$0xff] %vm305, 0.0
          %377 = vst.msk [vmem:[#allocation2 + $0x238] sm:$0xff] %vm305, 0.0
          %378 = vst.msk [vmem:[#allocation2 + $0x240] sm:$0xff] %vm305, 0.0
          %379 = vst.msk [vmem:[#allocation2 + $0x248] sm:$0xff] %vm305, 0.0
          %380 = vst.msk [vmem:[#allocation2 + $0x250] sm:$0xff] %vm305, 0.0
          %381 = vst.msk [vmem:[#allocation2 + $0x258] sm:$0xff] %vm305, 0.0
          %382 = vst.msk [vmem:[#allocation2 + $0x260] sm:$0xff] %vm305, 0.0
          %383 = vst.msk [vmem:[#allocation2 + $0x268] sm:$0xff] %vm305, 0.0
          %384 = vst.msk [vmem:[#allocation2 + $0x270] sm:$0xff] %vm305, 0.0
          %385 = vst.msk [vmem:[#allocation2 + $0x278] sm:$0xff] %vm305, 0.0
          %386 = vst.msk [vmem:[#allocation2 + $0x280] sm:$0xff] %vm305, 0.0
          %387 = vst.msk [vmem:[#allocation2 + $0x288] sm:$0xff] %vm305, 0.0
          %388 = vst.msk [vmem:[#allocation2 + $0x290] sm:$0xff] %vm305, 0.0
          %389 = vst.msk [vmem:[#allocation2 + $0x298] sm:$0xff] %vm305, 0.0
          %390 = vst.msk [vmem:[#allocation2 + $0x2a0] sm:$0xff] %vm305, 0.0
          %391 = vst.msk [vmem:[#allocation2 + $0x2a8] sm:$0xff] %vm305, 0.0
          %392 = vst.msk [vmem:[#allocation2 + $0x2b0] sm:$0xff] %vm305, 0.0
          %393 = vst.msk [vmem:[#allocation2 + $0x2b8] sm:$0xff] %vm305, 0.0
          %394 = vst.msk [vmem:[#allocation2 + $0x2c0] sm:$0xff] %vm305, 0.0
          %395 = vst.msk [vmem:[#allocation2 + $0x2c8] sm:$0xff] %vm305, 0.0
          %396 = vst.msk [vmem:[#allocation2 + $0x2d0] sm:$0xff] %vm305, 0.0
          %397 = vst.msk [vmem:[#allocation2 + $0x2d8] sm:$0xff] %vm305, 0.0
          %398 = vst.msk [vmem:[#allocation2 + $0x2e0] sm:$0xff] %vm305, 0.0
          %399 = vst.msk [vmem:[#allocation2 + $0x2e8] sm:$0xff] %vm305, 0.0
          %400 = vst.msk [vmem:[#allocation2 + $0x2f0] sm:$0xff] %vm305, 0.0
          %401 = vst.msk [vmem:[#allocation2 + $0x2f8] sm:$0xff] %vm305, 0.0
          %402 = vst.msk [vmem:[#allocation2 + $0x300] sm:$0xff] %vm305, 0.0
          %403 = vst.msk [vmem:[#allocation2 + $0x308] sm:$0xff] %vm305, 0.0
          %404 = vst.msk [vmem:[#allocation2 + $0x310] sm:$0xff] %vm305, 0.0
          %405 = vst.msk [vmem:[#allocation2 + $0x318] sm:$0xff] %vm305, 0.0
          %406 = vst.msk [vmem:[#allocation2 + $0x320] sm:$0xff] %vm305, 0.0
          %407 = vst.msk [vmem:[#allocation2 + $0x328] sm:$0xff] %vm305, 0.0
          %408 = vst.msk [vmem:[#allocation2 + $0x330] sm:$0xff] %vm305, 0.0
          %409 = vst.msk [vmem:[#allocation2 + $0x338] sm:$0xff] %vm305, 0.0
          %410 = vst.msk [vmem:[#allocation2 + $0x340] sm:$0xff] %vm305, 0.0
          %411 = vst.msk [vmem:[#allocation2 + $0x348] sm:$0xff] %vm305, 0.0
          %412 = vst.msk [vmem:[#allocation2 + $0x350] sm:$0xff] %vm305, 0.0
          %413 = vst.msk [vmem:[#allocation2 + $0x358] sm:$0xff] %vm305, 0.0
          %414 = vst.msk [vmem:[#allocation2 + $0x360] sm:$0xff] %vm305, 0.0
          %415 = vst.msk [vmem:[#allocation2 + $0x368] sm:$0xff] %vm305, 0.0
          %416 = vst.msk [vmem:[#allocation2 + $0x370] sm:$0xff] %vm305, 0.0
          %417 = vst.msk [vmem:[#allocation2 + $0x378] sm:$0xff] %vm305, 0.0
          %418 = vst.msk [vmem:[#allocation2 + $0x380] sm:$0xff] %vm305, 0.0
          %419 = vst.msk [vmem:[#allocation2 + $0x388] sm:$0xff] %vm305, 0.0
          %420 = vst.msk [vmem:[#allocation2 + $0x390] sm:$0xff] %vm305, 0.0
          %421 = vst.msk [vmem:[#allocation2 + $0x398] sm:$0xff] %vm305, 0.0
          %422 = vst.msk [vmem:[#allocation2 + $0x3a0] sm:$0xff] %vm305, 0.0
          %423 = vst.msk [vmem:[#allocation2 + $0x3a8] sm:$0xff] %vm305, 0.0
          %424 = vst.msk [vmem:[#allocation2 + $0x3b0] sm:$0xff] %vm305, 0.0
          %425 = vst.msk [vmem:[#allocation2 + $0x3b8] sm:$0xff] %vm305, 0.0
          %426 = vst.msk [vmem:[#allocation2 + $0x3c0] sm:$0xff] %vm305, 0.0
          %427 = vst.msk [vmem:[#allocation2 + $0x3c8] sm:$0xff] %vm305, 0.0
          %428 = vst.msk [vmem:[#allocation2 + $0x3d0] sm:$0xff] %vm305, 0.0
          %429 = vst.msk [vmem:[#allocation2 + $0x3d8] sm:$0xff] %vm305, 0.0
          %430 = vst.msk [vmem:[#allocation2 + $0x3e0] sm:$0xff] %vm305, 0.0
          %431 = vst.msk [vmem:[#allocation2 + $0x3e8] sm:$0xff] %vm305, 0.0
          %432 = vst.msk [vmem:[#allocation2 + $0x3f0] sm:$0xff] %vm305, 0.0
          %433 = vst.msk [vmem:[#allocation2 + $0x3f8] sm:$0xff] %vm305, 0.0
        $region40: #{conv2d.1} parent=35 // pred_fallthru
          _
        %v434 = vld [vmem:[#allocation2] sm:$0xff]
        %v435 = vld [vmem:[#allocation2 + $0x8] sm:$0xff]
        %v436 = vld [vmem:[#allocation2 + $0x10] sm:$0xff]
        %v437 = vld [vmem:[#allocation2 + $0x18] sm:$0xff]
        %v438 = vld [vmem:[#allocation2 + $0x20] sm:$0xff]
        %v439 = vld [vmem:[#allocation2 + $0x28] sm:$0xff]
        %v440 = vld [vmem:[#allocation2 + $0x30] sm:$0xff]
        %v441 = vld [vmem:[#allocation2 + $0x38] sm:$0xff]
        %v442 = vld [vmem:[#allocation2 + $0x40] sm:$0xff]
        %v443 = vld [vmem:[#allocation2 + $0x48] sm:$0xff]
        %v444 = vld [vmem:[#allocation2 + $0x50] sm:$0xff]
        %v445 = vld [vmem:[#allocation2 + $0x58] sm:$0xff]
        %v446 = vld [vmem:[#allocation2 + $0x60] sm:$0xff]
        %v447 = vld [vmem:[#allocation2 + $0x68] sm:$0xff]
        %v448 = vld [vmem:[#allocation2 + $0x70] sm:$0xff]
        %v449 = vld [vmem:[#allocation2 + $0x78] sm:$0xff]
        %v450 = vld [vmem:[#allocation2 + $0x80] sm:$0xff]
        %v451 = vld [vmem:[#allocation2 + $0x88] sm:$0xff]
        %v452 = vld [vmem:[#allocation2 + $0x90] sm:$0xff]
        %v453 = vld [vmem:[#allocation2 + $0x98] sm:$0xff]
        %v454 = vld [vmem:[#allocation2 + $0xa0] sm:$0xff]
        %v455 = vld [vmem:[#allocation2 + $0xa8] sm:$0xff]
        %v456 = vld [vmem:[#allocation2 + $0xb0] sm:$0xff]
        %v457 = vld [vmem:[#allocation2 + $0xb8] sm:$0xff]
        %v458 = vld [vmem:[#allocation2 + $0xc0] sm:$0xff]
        %v459 = vld [vmem:[#allocation2 + $0xc8] sm:$0xff]
        %v460 = vld [vmem:[#allocation2 + $0xd0] sm:$0xff]
        %v461 = vld [vmem:[#allocation2 + $0xd8] sm:$0xff]
        %v462 = vld [vmem:[#allocation2 + $0xe0] sm:$0xff]
        %v463 = vld [vmem:[#allocation2 + $0xe8] sm:$0xff]
        %v464 = vld [vmem:[#allocation2 + $0xf0] sm:$0xff]
        %v465 = vld [vmem:[#allocation2 + $0xf8] sm:$0xff]
        %v466 = vld [vmem:[#allocation2 + $0x100] sm:$0xff]
        %v467 = vld [vmem:[#allocation2 + $0x108] sm:$0xff]
        %v468 = vld [vmem:[#allocation2 + $0x110] sm:$0xff]
        %v469 = vld [vmem:[#allocation2 + $0x118] sm:$0xff]
        %v470 = vld [vmem:[#allocation2 + $0x120] sm:$0xff]
        %v471 = vld [vmem:[#allocation2 + $0x128] sm:$0xff]
        %v472 = vld [vmem:[#allocation2 + $0x130] sm:$0xff]
        %v473 = vld [vmem:[#allocation2 + $0x138] sm:$0xff]
        %v474 = vld [vmem:[#allocation2 + $0x140] sm:$0xff]
        %v475 = vld [vmem:[#allocation2 + $0x148] sm:$0xff]
        %v476 = vld [vmem:[#allocation2 + $0x150] sm:$0xff]
        %v477 = vld [vmem:[#allocation2 + $0x158] sm:$0xff]
        %v478 = vld [vmem:[#allocation2 + $0x160] sm:$0xff]
        %v479 = vld [vmem:[#allocation2 + $0x168] sm:$0xff]
        %v480 = vld [vmem:[#allocation2 + $0x170] sm:$0xff]
        %v481 = vld [vmem:[#allocation2 + $0x178] sm:$0xff]
        %v482 = vld [vmem:[#allocation2 + $0x180] sm:$0xff]
        %v483 = vld [vmem:[#allocation2 + $0x188] sm:$0xff]
        %v484 = vld [vmem:[#allocation2 + $0x190] sm:$0xff]
        %v485 = vld [vmem:[#allocation2 + $0x198] sm:$0xff]
        %v486 = vld [vmem:[#allocation2 + $0x1a0] sm:$0xff]
        %v487 = vld [vmem:[#allocation2 + $0x1a8] sm:$0xff]
        %v488 = vld [vmem:[#allocation2 + $0x1b0] sm:$0xff]
        %v489 = vld [vmem:[#allocation2 + $0x1b8] sm:$0xff]
        %v490 = vld [vmem:[#allocation2 + $0x1c0] sm:$0xff]
        %v491 = vld [vmem:[#allocation2 + $0x1c8] sm:$0xff]
        %v492 = vld [vmem:[#allocation2 + $0x1d0] sm:$0xff]
        %v493 = vld [vmem:[#allocation2 + $0x1d8] sm:$0xff]
        %v494 = vld [vmem:[#allocation2 + $0x1e0] sm:$0xff]
        %v495 = vld [vmem:[#allocation2 + $0x1e8] sm:$0xff]
        %v496 = vld [vmem:[#allocation2 + $0x1f0] sm:$0xff]
        %v497 = vld [vmem:[#allocation2 + $0x1f8] sm:$0xff]
        %v498 = vld [vmem:[#allocation2 + $0x200] sm:$0xff]
        %v499 = vld [vmem:[#allocation2 + $0x208] sm:$0xff]
        %v500 = vld [vmem:[#allocation2 + $0x210] sm:$0xff]
        %v501 = vld [vmem:[#allocation2 + $0x218] sm:$0xff]
        %v502 = vld [vmem:[#allocation2 + $0x220] sm:$0xff]
        %v503 = vld [vmem:[#allocation2 + $0x228] sm:$0xff]
        %v504 = vld [vmem:[#allocation2 + $0x230] sm:$0xff]
        %v505 = vld [vmem:[#allocation2 + $0x238] sm:$0xff]
        %v506 = vld [vmem:[#allocation2 + $0x240] sm:$0xff]
        %v507 = vld [vmem:[#allocation2 + $0x248] sm:$0xff]
        %v508 = vld [vmem:[#allocation2 + $0x250] sm:$0xff]
        %v509 = vld [vmem:[#allocation2 + $0x258] sm:$0xff]
        %v510 = vld [vmem:[#allocation2 + $0x260] sm:$0xff]
        %v511 = vld [vmem:[#allocation2 + $0x268] sm:$0xff]
        %v512 = vld [vmem:[#allocation2 + $0x270] sm:$0xff]
        %v513 = vld [vmem:[#allocation2 + $0x278] sm:$0xff]
        %v514 = vld [vmem:[#allocation2 + $0x280] sm:$0xff]
        %v515 = vld [vmem:[#allocation2 + $0x288] sm:$0xff]
        %v516 = vld [vmem:[#allocation2 + $0x290] sm:$0xff]
        %v517 = vld [vmem:[#allocation2 + $0x298] sm:$0xff]
        %v518 = vld [vmem:[#allocation2 + $0x2a0] sm:$0xff]
        %v519 = vld [vmem:[#allocation2 + $0x2a8] sm:$0xff]
        %v520 = vld [vmem:[#allocation2 + $0x2b0] sm:$0xff]
        %v521 = vld [vmem:[#allocation2 + $0x2b8] sm:$0xff]
        %v522 = vld [vmem:[#allocation2 + $0x2c0] sm:$0xff]
        %v523 = vld [vmem:[#allocation2 + $0x2c8] sm:$0xff]
        %v524 = vld [vmem:[#allocation2 + $0x2d0] sm:$0xff]
        %v525 = vld [vmem:[#allocation2 + $0x2d8] sm:$0xff]
        %v526 = vld [vmem:[#allocation2 + $0x2e0] sm:$0xff]
        %v527 = vld [vmem:[#allocation2 + $0x2e8] sm:$0xff]
        %v528 = vld [vmem:[#allocation2 + $0x2f0] sm:$0xff]
        %v529 = vld [vmem:[#allocation2 + $0x2f8] sm:$0xff]
        %v530 = vld [vmem:[#allocation2 + $0x300] sm:$0xff]
        %v531 = vld [vmem:[#allocation2 + $0x308] sm:$0xff]
        %v532 = vld [vmem:[#allocation2 + $0x310] sm:$0xff]
        %v533 = vld [vmem:[#allocation2 + $0x318] sm:$0xff]
        %v534 = vld [vmem:[#allocation2 + $0x320] sm:$0xff]
        %v535 = vld [vmem:[#allocation2 + $0x328] sm:$0xff]
        %v536 = vld [vmem:[#allocation2 + $0x330] sm:$0xff]
        %v537 = vld [vmem:[#allocation2 + $0x338] sm:$0xff]
        %v538 = vld [vmem:[#allocation2 + $0x340] sm:$0xff]
        %v539 = vld [vmem:[#allocation2 + $0x348] sm:$0xff]
        %v540 = vld [vmem:[#allocation2 + $0x350] sm:$0xff]
        %v541 = vld [vmem:[#allocation2 + $0x358] sm:$0xff]
        %v542 = vld [vmem:[#allocation2 + $0x360] sm:$0xff]
        %v543 = vld [vmem:[#allocation2 + $0x368] sm:$0xff]
        %v544 = vld [vmem:[#allocation2 + $0x370] sm:$0xff]
        %v545 = vld [vmem:[#allocation2 + $0x378] sm:$0xff]
        %v546 = vld [vmem:[#allocation2 + $0x380] sm:$0xff]
        %v547 = vld [vmem:[#allocation2 + $0x388] sm:$0xff]
        %v548 = vld [vmem:[#allocation2 + $0x390] sm:$0xff]
        %v549 = vld [vmem:[#allocation2 + $0x398] sm:$0xff]
        %v550 = vld [vmem:[#allocation2 + $0x3a0] sm:$0xff]
        %v551 = vld [vmem:[#allocation2 + $0x3a8] sm:$0xff]
        %v552 = vld [vmem:[#allocation2 + $0x3b0] sm:$0xff]
        %v553 = vld [vmem:[#allocation2 + $0x3b8] sm:$0xff]
        %v554 = vld [vmem:[#allocation2 + $0x3c0] sm:$0xff]
        %v555 = vld [vmem:[#allocation2 + $0x3c8] sm:$0xff]
        %v556 = vld [vmem:[#allocation2 + $0x3d0] sm:$0xff]
        %v557 = vld [vmem:[#allocation2 + $0x3d8] sm:$0xff]
        %v558 = vld [vmem:[#allocation2 + $0x3e0] sm:$0xff]
        %v559 = vld [vmem:[#allocation2 + $0x3e8] sm:$0xff]
        %v560 = vld [vmem:[#allocation2 + $0x3f0] sm:$0xff]
        %v561 = vld [vmem:[#allocation2 + $0x3f8] sm:$0xff]
        %v562 = vld [vmem:[%s281] sm:$0xff]
        %v563 = vld [vmem:[%s281 + $0x8] sm:$0xff]
        %v564 = vld [vmem:[%s281 + $0x10] sm:$0xff]
        %v565 = vld [vmem:[%s281 + $0x18] sm:$0xff]
        %v566 = vld [vmem:[%s281 + $0x20] sm:$0xff]
        %v567 = vld [vmem:[%s281 + $0x28] sm:$0xff]
        %v568 = vld [vmem:[%s281 + $0x30] sm:$0xff]
        %v569 = vld [vmem:[%s281 + $0x38] sm:$0xff]
        %v570 = vld [vmem:[%s281 + $0x40] sm:$0xff]
        %v571 = vld [vmem:[%s281 + $0x48] sm:$0xff]
        %v572 = vld [vmem:[%s281 + $0x50] sm:$0xff]
        %v573 = vld [vmem:[%s281 + $0x58] sm:$0xff]
        %v574 = vld [vmem:[%s281 + $0x60] sm:$0xff]
        %v575 = vld [vmem:[%s281 + $0x68] sm:$0xff]
        %v576 = vld [vmem:[%s281 + $0x70] sm:$0xff]
        %v577 = vld [vmem:[%s281 + $0x78] sm:$0xff]
        %v578 = vld [vmem:[%s281 + $0x80] sm:$0xff]
        %v579 = vld [vmem:[%s281 + $0x88] sm:$0xff]
        %v580 = vld [vmem:[%s281 + $0x90] sm:$0xff]
        %v581 = vld [vmem:[%s281 + $0x98] sm:$0xff]
        %v582 = vld [vmem:[%s281 + $0xa0] sm:$0xff]
        %v583 = vld [vmem:[%s281 + $0xa8] sm:$0xff]
        %v584 = vld [vmem:[%s281 + $0xb0] sm:$0xff]
        %v585 = vld [vmem:[%s281 + $0xb8] sm:$0xff]
        %v586 = vld [vmem:[%s281 + $0xc0] sm:$0xff]
        %v587 = vld [vmem:[%s281 + $0xc8] sm:$0xff]
        %v588 = vld [vmem:[%s281 + $0xd0] sm:$0xff]
        %v589 = vld [vmem:[%s281 + $0xd8] sm:$0xff]
        %v590 = vld [vmem:[%s281 + $0xe0] sm:$0xff]
        %v591 = vld [vmem:[%s281 + $0xe8] sm:$0xff]
        %v592 = vld [vmem:[%s281 + $0xf0] sm:$0xff]
        %v593 = vld [vmem:[%s281 + $0xf8] sm:$0xff]
        %v594 = vld [vmem:[%s281 + $0x100] sm:$0xff]
        %v595 = vld [vmem:[%s281 + $0x108] sm:$0xff]
        %v596 = vld [vmem:[%s281 + $0x110] sm:$0xff]
        %v597 = vld [vmem:[%s281 + $0x118] sm:$0xff]
        %v598 = vld [vmem:[%s281 + $0x120] sm:$0xff]
        %v599 = vld [vmem:[%s281 + $0x128] sm:$0xff]
        %v600 = vld [vmem:[%s281 + $0x130] sm:$0xff]
        %v601 = vld [vmem:[%s281 + $0x138] sm:$0xff]
        %v602 = vld [vmem:[%s281 + $0x140] sm:$0xff]
        %v603 = vld [vmem:[%s281 + $0x148] sm:$0xff]
        %v604 = vld [vmem:[%s281 + $0x150] sm:$0xff]
        %v605 = vld [vmem:[%s281 + $0x158] sm:$0xff]
        %v606 = vld [vmem:[%s281 + $0x160] sm:$0xff]
        %v607 = vld [vmem:[%s281 + $0x168] sm:$0xff]
        %v608 = vld [vmem:[%s281 + $0x170] sm:$0xff]
        %v609 = vld [vmem:[%s281 + $0x178] sm:$0xff]
        %v610 = vld [vmem:[%s281 + $0x180] sm:$0xff]
        %v611 = vld [vmem:[%s281 + $0x188] sm:$0xff]
        %v612 = vld [vmem:[%s281 + $0x190] sm:$0xff]
        %v613 = vld [vmem:[%s281 + $0x198] sm:$0xff]
        %v614 = vld [vmem:[%s281 + $0x1a0] sm:$0xff]
        %v615 = vld [vmem:[%s281 + $0x1a8] sm:$0xff]
        %v616 = vld [vmem:[%s281 + $0x1b0] sm:$0xff]
        %v617 = vld [vmem:[%s281 + $0x1b8] sm:$0xff]
        %v618 = vld [vmem:[%s281 + $0x1c0] sm:$0xff]
        %v619 = vld [vmem:[%s281 + $0x1c8] sm:$0xff]
        %v620 = vld [vmem:[%s281 + $0x1d0] sm:$0xff]
        %v621 = vld [vmem:[%s281 + $0x1d8] sm:$0xff]
        %v622 = vld [vmem:[%s281 + $0x1e0] sm:$0xff]
        %v623 = vld [vmem:[%s281 + $0x1e8] sm:$0xff]
        %v624 = vld [vmem:[%s281 + $0x1f0] sm:$0xff]
        %v625 = vld [vmem:[%s281 + $0x1f8] sm:$0xff]
        %v626 = vld [vmem:[%s281 + $0x200] sm:$0xff]
        %v627 = vld [vmem:[%s281 + $0x208] sm:$0xff]
        %v628 = vld [vmem:[%s281 + $0x210] sm:$0xff]
        %v629 = vld [vmem:[%s281 + $0x218] sm:$0xff]
        %v630 = vld [vmem:[%s281 + $0x220] sm:$0xff]
        %v631 = vld [vmem:[%s281 + $0x228] sm:$0xff]
        %v632 = vld [vmem:[%s281 + $0x230] sm:$0xff]
        %v633 = vld [vmem:[%s281 + $0x238] sm:$0xff]
        %v634 = vld [vmem:[%s281 + $0x240] sm:$0xff]
        %v635 = vld [vmem:[%s281 + $0x248] sm:$0xff]
        %v636 = vld [vmem:[%s281 + $0x250] sm:$0xff]
        %v637 = vld [vmem:[%s281 + $0x258] sm:$0xff]
        %v638 = vld [vmem:[%s281 + $0x260] sm:$0xff]
        %v639 = vld [vmem:[%s281 + $0x268] sm:$0xff]
        %v640 = vld [vmem:[%s281 + $0x270] sm:$0xff]
        %v641 = vld [vmem:[%s281 + $0x278] sm:$0xff]
        %v642 = vld [vmem:[%s281 + $0x280] sm:$0xff]
        %v643 = vld [vmem:[%s281 + $0x288] sm:$0xff]
        %v644 = vld [vmem:[%s281 + $0x290] sm:$0xff]
        %v645 = vld [vmem:[%s281 + $0x298] sm:$0xff]
        %v646 = vld [vmem:[%s281 + $0x2a0] sm:$0xff]
        %v647 = vld [vmem:[%s281 + $0x2a8] sm:$0xff]
        %v648 = vld [vmem:[%s281 + $0x2b0] sm:$0xff]
        %v649 = vld [vmem:[%s281 + $0x2b8] sm:$0xff]
        %v650 = vld [vmem:[%s281 + $0x2c0] sm:$0xff]
        %v651 = vld [vmem:[%s281 + $0x2c8] sm:$0xff]
        %v652 = vld [vmem:[%s281 + $0x2d0] sm:$0xff]
        %v653 = vld [vmem:[%s281 + $0x2d8] sm:$0xff]
        %v654 = vld [vmem:[%s281 + $0x2e0] sm:$0xff]
        %v655 = vld [vmem:[%s281 + $0x2e8] sm:$0xff]
        %v656 = vld [vmem:[%s281 + $0x2f0] sm:$0xff]
        %v657 = vld [vmem:[%s281 + $0x2f8] sm:$0xff]
        %v658 = vld [vmem:[%s281 + $0x300] sm:$0xff]
        %v659 = vld [vmem:[%s281 + $0x308] sm:$0xff]
        %v660 = vld [vmem:[%s281 + $0x310] sm:$0xff]
        %v661 = vld [vmem:[%s281 + $0x318] sm:$0xff]
        %v662 = vld [vmem:[%s281 + $0x320] sm:$0xff]
        %v663 = vld [vmem:[%s281 + $0x328] sm:$0xff]
        %v664 = vld [vmem:[%s281 + $0x330] sm:$0xff]
        %v665 = vld [vmem:[%s281 + $0x338] sm:$0xff]
        %v666 = vld [vmem:[%s281 + $0x340] sm:$0xff]
        %v667 = vld [vmem:[%s281 + $0x348] sm:$0xff]
        %v668 = vld [vmem:[%s281 + $0x350] sm:$0xff]
        %v669 = vld [vmem:[%s281 + $0x358] sm:$0xff]
        %v670 = vld [vmem:[%s281 + $0x360] sm:$0xff]
        %v671 = vld [vmem:[%s281 + $0x368] sm:$0xff]
        %v672 = vld [vmem:[%s281 + $0x370] sm:$0xff]
        %v673 = vld [vmem:[%s281 + $0x378] sm:$0xff]
        %v674 = vld [vmem:[%s281 + $0x380] sm:$0xff]
        %v675 = vld [vmem:[%s281 + $0x388] sm:$0xff]
        %v676 = vld [vmem:[%s281 + $0x390] sm:$0xff]
        %v677 = vld [vmem:[%s281 + $0x398] sm:$0xff]
        %v678 = vld [vmem:[%s281 + $0x3a0] sm:$0xff]
        %v679 = vld [vmem:[%s281 + $0x3a8] sm:$0xff]
        %v680 = vld [vmem:[%s281 + $0x3b0] sm:$0xff]
        %v681 = vld [vmem:[%s281 + $0x3b8] sm:$0xff]
        %v682 = vld [vmem:[%s281 + $0x3c0] sm:$0xff]
        %v683 = vld [vmem:[%s281 + $0x3c8] sm:$0xff]
        %v684 = vld [vmem:[%s281 + $0x3d0] sm:$0xff]
        %v685 = vld [vmem:[%s281 + $0x3d8] sm:$0xff]
        %v686 = vld [vmem:[%s281 + $0x3e0] sm:$0xff]
        %v687 = vld [vmem:[%s281 + $0x3e8] sm:$0xff]
        %v688 = vld [vmem:[%s281 + $0x3f0] sm:$0xff]
        %v689 = vld [vmem:[%s281 + $0x3f8] sm:$0xff]
        %v690 = vld [vmem:[%s291] sm:$0xf]
        %v691 = vld [vmem:[%s291 + $0x4] sm:$0xf]
        %v692 = vld [vmem:[%s291 + $0x8] sm:$0xf]
        %v693 = vld [vmem:[%s291 + $0xc] sm:$0xf]
        %v694 = vld [vmem:[%s291 + $0x10] sm:$0xf]
        %v695 = vld [vmem:[%s291 + $0x14] sm:$0xf]
        %v696 = vld [vmem:[%s291 + $0x18] sm:$0xf]
        %v697 = vld [vmem:[%s291 + $0x1c] sm:$0xf]
        %v698 = vld [vmem:[%s291 + $0x20] sm:$0xf]
        %v699 = vld [vmem:[%s291 + $0x24] sm:$0xf]
        %v700 = vld [vmem:[%s291 + $0x28] sm:$0xf]
        %v701 = vld [vmem:[%s291 + $0x2c] sm:$0xf]
        %v702 = vld [vmem:[%s291 + $0x30] sm:$0xf]
        %v703 = vld [vmem:[%s291 + $0x34] sm:$0xf]
        %v704 = vld [vmem:[%s291 + $0x38] sm:$0xf]
        %v705 = vld [vmem:[%s291 + $0x3c] sm:$0xf]
        %v706 = vld [vmem:[%s291 + $0x40] sm:$0xf]
        %v707 = vld [vmem:[%s291 + $0x44] sm:$0xf]
        %v708 = vld [vmem:[%s291 + $0x48] sm:$0x3]
        %v837 = vunpack.c.l.b16 %v562
        %v838 = vunpack.c.h.b16 %v562
        %v839 = vunpack.c.l.b16 %v563
        %v840 = vunpack.c.h.b16 %v563
        %v841 = vunpack.c.l.b16 %v564
        %v842 = vunpack.c.h.b16 %v564
        %v843 = vunpack.c.l.b16 %v565
        %v844 = vunpack.c.h.b16 %v565
        %v845 = vunpack.c.l.b16 %v566
        %v846 = vunpack.c.h.b16 %v566
        %v847 = vunpack.c.l.b16 %v567
        %v848 = vunpack.c.h.b16 %v567
        %v849 = vunpack.c.l.b16 %v568
        %v850 = vunpack.c.h.b16 %v568
        %v851 = vunpack.c.l.b16 %v569
        %v852 = vunpack.c.h.b16 %v569
        %v853 = vunpack.c.l.b16 %v570
        %v854 = vunpack.c.h.b16 %v570
        %v855 = vunpack.c.l.b16 %v571
        %v856 = vunpack.c.h.b16 %v571
        %v857 = vunpack.c.l.b16 %v572
        %v858 = vunpack.c.h.b16 %v572
        %v859 = vunpack.c.l.b16 %v573
        %v860 = vunpack.c.h.b16 %v573
        %v861 = vunpack.c.l.b16 %v574
        %v862 = vunpack.c.h.b16 %v574
        %v863 = vunpack.c.l.b16 %v575
        %v864 = vunpack.c.h.b16 %v575
        %v865 = vunpack.c.l.b16 %v576
        %v866 = vunpack.c.h.b16 %v576
        %v867 = vunpack.c.l.b16 %v577
        %v868 = vunpack.c.h.b16 %v577
        %v869 = vunpack.c.l.b16 %v578
        %v870 = vunpack.c.h.b16 %v578
        %v871 = vunpack.c.l.b16 %v579
        %v872 = vunpack.c.h.b16 %v579
        %v873 = vunpack.c.l.b16 %v580
        %v874 = vunpack.c.h.b16 %v580
        %v875 = vunpack.c.l.b16 %v581
        %v876 = vunpack.c.h.b16 %v581
        %v877 = vunpack.c.l.b16 %v582
        %v878 = vunpack.c.h.b16 %v582
        %v879 = vunpack.c.l.b16 %v583
        %v880 = vunpack.c.h.b16 %v583
        %v881 = vunpack.c.l.b16 %v584
        %v882 = vunpack.c.h.b16 %v584
        %v883 = vunpack.c.l.b16 %v585
        %v884 = vunpack.c.h.b16 %v585
        %v885 = vunpack.c.l.b16 %v586
        %v886 = vunpack.c.h.b16 %v586
        %v887 = vunpack.c.l.b16 %v587
        %v888 = vunpack.c.h.b16 %v587
        %v889 = vunpack.c.l.b16 %v588
        %v890 = vunpack.c.h.b16 %v588
        %v891 = vunpack.c.l.b16 %v589
        %v892 = vunpack.c.h.b16 %v589
        %v893 = vunpack.c.l.b16 %v590
        %v894 = vunpack.c.h.b16 %v590
        %v895 = vunpack.c.l.b16 %v591
        %v896 = vunpack.c.h.b16 %v591
        %v897 = vunpack.c.l.b16 %v592
        %v898 = vunpack.c.h.b16 %v592
        %v899 = vunpack.c.l.b16 %v593
        %v900 = vunpack.c.h.b16 %v593
        %v901 = vunpack.c.l.b16 %v594
        %v902 = vunpack.c.h.b16 %v594
        %v903 = vunpack.c.l.b16 %v595
        %v904 = vunpack.c.h.b16 %v595
        %v905 = vunpack.c.l.b16 %v596
        %v906 = vunpack.c.h.b16 %v596
        %v907 = vunpack.c.l.b16 %v597
        %v908 = vunpack.c.h.b16 %v597
        %v909 = vunpack.c.l.b16 %v598
        %v910 = vunpack.c.h.b16 %v598
        %v911 = vunpack.c.l.b16 %v599
        %v912 = vunpack.c.h.b16 %v599
        %v913 = vunpack.c.l.b16 %v600
        %v914 = vunpack.c.h.b16 %v600
        %v915 = vunpack.c.l.b16 %v601
        %v916 = vunpack.c.h.b16 %v601
        %v917 = vunpack.c.l.b16 %v602
        %v918 = vunpack.c.h.b16 %v602
        %v919 = vunpack.c.l.b16 %v603
        %v920 = vunpack.c.h.b16 %v603
        %v921 = vunpack.c.l.b16 %v604
        %v922 = vunpack.c.h.b16 %v604
        %v923 = vunpack.c.l.b16 %v605
        %v924 = vunpack.c.h.b16 %v605
        %v925 = vunpack.c.l.b16 %v606
        %v926 = vunpack.c.h.b16 %v606
        %v927 = vunpack.c.l.b16 %v607
        %v928 = vunpack.c.h.b16 %v607
        %v929 = vunpack.c.l.b16 %v608
        %v930 = vunpack.c.h.b16 %v608
        %v931 = vunpack.c.l.b16 %v609
        %v932 = vunpack.c.h.b16 %v609
        %v933 = vunpack.c.l.b16 %v610
        %v934 = vunpack.c.h.b16 %v610
        %v935 = vunpack.c.l.b16 %v611
        %v936 = vunpack.c.h.b16 %v611
        %v937 = vunpack.c.l.b16 %v612
        %v938 = vunpack.c.h.b16 %v612
        %v939 = vunpack.c.l.b16 %v613
        %v940 = vunpack.c.h.b16 %v613
        %v941 = vunpack.c.l.b16 %v614
        %v942 = vunpack.c.h.b16 %v614
        %v943 = vunpack.c.l.b16 %v615
        %v944 = vunpack.c.h.b16 %v615
        %v945 = vunpack.c.l.b16 %v616
        %v946 = vunpack.c.h.b16 %v616
        %v947 = vunpack.c.l.b16 %v617
        %v948 = vunpack.c.h.b16 %v617
        %v949 = vunpack.c.l.b16 %v618
        %v950 = vunpack.c.h.b16 %v618
        %v951 = vunpack.c.l.b16 %v619
        %v952 = vunpack.c.h.b16 %v619
        %v953 = vunpack.c.l.b16 %v620
        %v954 = vunpack.c.h.b16 %v620
        %v955 = vunpack.c.l.b16 %v621
        %v956 = vunpack.c.h.b16 %v621
        %v957 = vunpack.c.l.b16 %v622
        %v958 = vunpack.c.h.b16 %v622
        %v959 = vunpack.c.l.b16 %v623
        %v960 = vunpack.c.h.b16 %v623
        %v961 = vunpack.c.l.b16 %v624
        %v962 = vunpack.c.h.b16 %v624
        %v963 = vunpack.c.l.b16 %v625
        %v964 = vunpack.c.h.b16 %v625
        %v965 = vunpack.c.l.b16 %v626
        %v966 = vunpack.c.h.b16 %v626
        %v967 = vunpack.c.l.b16 %v627
        %v968 = vunpack.c.h.b16 %v627
        %v969 = vunpack.c.l.b16 %v628
        %v970 = vunpack.c.h.b16 %v628
        %v971 = vunpack.c.l.b16 %v629
        %v972 = vunpack.c.h.b16 %v629
        %v973 = vunpack.c.l.b16 %v630
        %v974 = vunpack.c.h.b16 %v630
        %v975 = vunpack.c.l.b16 %v631
        %v976 = vunpack.c.h.b16 %v631
        %v977 = vunpack.c.l.b16 %v632
        %v978 = vunpack.c.h.b16 %v632
        %v979 = vunpack.c.l.b16 %v633
        %v980 = vunpack.c.h.b16 %v633
        %v981 = vunpack.c.l.b16 %v634
        %v982 = vunpack.c.h.b16 %v634
        %v983 = vunpack.c.l.b16 %v635
        %v984 = vunpack.c.h.b16 %v635
        %v985 = vunpack.c.l.b16 %v636
        %v986 = vunpack.c.h.b16 %v636
        %v987 = vunpack.c.l.b16 %v637
        %v988 = vunpack.c.h.b16 %v637
        %v989 = vunpack.c.l.b16 %v638
        %v990 = vunpack.c.h.b16 %v638
        %v991 = vunpack.c.l.b16 %v639
        %v992 = vunpack.c.h.b16 %v639
        %v993 = vunpack.c.l.b16 %v640
        %v994 = vunpack.c.h.b16 %v640
        %v995 = vunpack.c.l.b16 %v641
        %v996 = vunpack.c.h.b16 %v641
        %v997 = vunpack.c.l.b16 %v642
        %v998 = vunpack.c.h.b16 %v642
        %v999 = vunpack.c.l.b16 %v643
        %v1000 = vunpack.c.h.b16 %v643
        %v1001 = vunpack.c.l.b16 %v644
        %v1002 = vunpack.c.h.b16 %v644
        %v1003 = vunpack.c.l.b16 %v645
        %v1004 = vunpack.c.h.b16 %v645
        %v1005 = vunpack.c.l.b16 %v646
        %v1006 = vunpack.c.h.b16 %v646
        %v1007 = vunpack.c.l.b16 %v647
        %v1008 = vunpack.c.h.b16 %v647
        %v1009 = vunpack.c.l.b16 %v648
        %v1010 = vunpack.c.h.b16 %v648
        %v1011 = vunpack.c.l.b16 %v649
        %v1012 = vunpack.c.h.b16 %v649
        %v1013 = vunpack.c.l.b16 %v650
        %v1014 = vunpack.c.h.b16 %v650
        %v1015 = vunpack.c.l.b16 %v651
        %v1016 = vunpack.c.h.b16 %v651
        %v1017 = vunpack.c.l.b16 %v652
        %v1018 = vunpack.c.h.b16 %v652
        %v1019 = vunpack.c.l.b16 %v653
        %v1020 = vunpack.c.h.b16 %v653
        %v1021 = vunpack.c.l.b16 %v654
        %v1022 = vunpack.c.h.b16 %v654
        %v1023 = vunpack.c.l.b16 %v655
        %v1024 = vunpack.c.h.b16 %v655
        %v1025 = vunpack.c.l.b16 %v656
        %v1026 = vunpack.c.h.b16 %v656
        %v1027 = vunpack.c.l.b16 %v657
        %v1028 = vunpack.c.h.b16 %v657
        %v1029 = vunpack.c.l.b16 %v658
        %v1030 = vunpack.c.h.b16 %v658
        %v1031 = vunpack.c.l.b16 %v659
        %v1032 = vunpack.c.h.b16 %v659
        %v1033 = vunpack.c.l.b16 %v660
        %v1034 = vunpack.c.h.b16 %v660
        %v1035 = vunpack.c.l.b16 %v661
        %v1036 = vunpack.c.h.b16 %v661
        %v1037 = vunpack.c.l.b16 %v662
        %v1038 = vunpack.c.h.b16 %v662
        %v1039 = vunpack.c.l.b16 %v663
        %v1040 = vunpack.c.h.b16 %v663
        %v1041 = vunpack.c.l.b16 %v664
        %v1042 = vunpack.c.h.b16 %v664
        %v1043 = vunpack.c.l.b16 %v665
        %v1044 = vunpack.c.h.b16 %v665
        %v1045 = vunpack.c.l.b16 %v666
        %v1046 = vunpack.c.h.b16 %v666
        %v1047 = vunpack.c.l.b16 %v667
        %v1048 = vunpack.c.h.b16 %v667
        %v1049 = vunpack.c.l.b16 %v668
        %v1050 = vunpack.c.h.b16 %v668
        %v1051 = vunpack.c.l.b16 %v669
        %v1052 = vunpack.c.h.b16 %v669
        %v1053 = vunpack.c.l.b16 %v670
        %v1054 = vunpack.c.h.b16 %v670
        %v1055 = vunpack.c.l.b16 %v671
        %v1056 = vunpack.c.h.b16 %v671
        %v1057 = vunpack.c.l.b16 %v672
        %v1058 = vunpack.c.h.b16 %v672
        %v1059 = vunpack.c.l.b16 %v673
        %v1060 = vunpack.c.h.b16 %v673
        %v1061 = vunpack.c.l.b16 %v674
        %v1062 = vunpack.c.h.b16 %v674
        %v1063 = vunpack.c.l.b16 %v675
        %v1064 = vunpack.c.h.b16 %v675
        %v1065 = vunpack.c.l.b16 %v676
        %v1066 = vunpack.c.h.b16 %v676
        %v1067 = vunpack.c.l.b16 %v677
        %v1068 = vunpack.c.h.b16 %v677
        %v1069 = vunpack.c.l.b16 %v678
        %v1070 = vunpack.c.h.b16 %v678
        %v1071 = vunpack.c.l.b16 %v679
        %v1072 = vunpack.c.h.b16 %v679
        %v1073 = vunpack.c.l.b16 %v680
        %v1074 = vunpack.c.h.b16 %v680
        %v1075 = vunpack.c.l.b16 %v681
        %v1076 = vunpack.c.h.b16 %v681
        %v1077 = vunpack.c.l.b16 %v682
        %v1078 = vunpack.c.h.b16 %v682
        %v1079 = vunpack.c.l.b16 %v683
        %v1080 = vunpack.c.h.b16 %v683
        %v1081 = vunpack.c.l.b16 %v684
        %v1082 = vunpack.c.h.b16 %v684
        %v1083 = vunpack.c.l.b16 %v685
        %v1084 = vunpack.c.h.b16 %v685
        %v1085 = vunpack.c.l.b16 %v686
        %v1086 = vunpack.c.h.b16 %v686
        %v1087 = vunpack.c.l.b16 %v687
        %v1088 = vunpack.c.h.b16 %v687
        %v1089 = vunpack.c.l.b16 %v688
        %v1090 = vunpack.c.h.b16 %v688
        %v1091 = vunpack.c.l.b16 %v689
        %v1092 = vunpack.c.h.b16 %v689
        %v1093 = vpack.c.b16 %v839, %v837
        %v1094 = vpack.c.b16 %v840, %v838
        %v1095 = vpack.c.b16 %v843, %v841
        %v1096 = vpack.c.b16 %v844, %v842
        %v1097 = vpack.c.b16 %v847, %v845
        %v1098 = vpack.c.b16 %v848, %v846
        %v1099 = vpack.c.b16 %v851, %v849
        %v1100 = vpack.c.b16 %v852, %v850
        %v1101 = vpack.c.b16 %v855, %v853
        %v1102 = vpack.c.b16 %v856, %v854
        %v1103 = vpack.c.b16 %v859, %v857
        %v1104 = vpack.c.b16 %v860, %v858
        %v1105 = vpack.c.b16 %v863, %v861
        %v1106 = vpack.c.b16 %v864, %v862
        %v1107 = vpack.c.b16 %v867, %v865
        %v1108 = vpack.c.b16 %v868, %v866
        %v1109 = vpack.c.b16 %v871, %v869
        %v1110 = vpack.c.b16 %v872, %v870
        %v1111 = vpack.c.b16 %v875, %v873
        %v1112 = vpack.c.b16 %v876, %v874
        %v1113 = vpack.c.b16 %v879, %v877
        %v1114 = vpack.c.b16 %v880, %v878
        %v1115 = vpack.c.b16 %v883, %v881
        %v1116 = vpack.c.b16 %v884, %v882
        %v1117 = vpack.c.b16 %v887, %v885
        %v1118 = vpack.c.b16 %v888, %v886
        %v1119 = vpack.c.b16 %v891, %v889
        %v1120 = vpack.c.b16 %v892, %v890
        %v1121 = vpack.c.b16 %v895, %v893
        %v1122 = vpack.c.b16 %v896, %v894
        %v1123 = vpack.c.b16 %v899, %v897
        %v1124 = vpack.c.b16 %v900, %v898
        %v1125 = vpack.c.b16 %v903, %v901
        %v1126 = vpack.c.b16 %v904, %v902
        %v1127 = vpack.c.b16 %v907, %v905
        %v1128 = vpack.c.b16 %v908, %v906
        %v1129 = vpack.c.b16 %v911, %v909
        %v1130 = vpack.c.b16 %v912, %v910
        %v1131 = vpack.c.b16 %v915, %v913
        %v1132 = vpack.c.b16 %v916, %v914
        %v1133 = vpack.c.b16 %v919, %v917
        %v1134 = vpack.c.b16 %v920, %v918
        %v1135 = vpack.c.b16 %v923, %v921
        %v1136 = vpack.c.b16 %v924, %v922
        %v1137 = vpack.c.b16 %v927, %v925
        %v1138 = vpack.c.b16 %v928, %v926
        %v1139 = vpack.c.b16 %v931, %v929
        %v1140 = vpack.c.b16 %v932, %v930
        %v1141 = vpack.c.b16 %v935, %v933
        %v1142 = vpack.c.b16 %v936, %v934
        %v1143 = vpack.c.b16 %v939, %v937
        %v1144 = vpack.c.b16 %v940, %v938
        %v1145 = vpack.c.b16 %v943, %v941
        %v1146 = vpack.c.b16 %v944, %v942
        %v1147 = vpack.c.b16 %v947, %v945
        %v1148 = vpack.c.b16 %v948, %v946
        %v1149 = vpack.c.b16 %v951, %v949
        %v1150 = vpack.c.b16 %v952, %v950
        %v1151 = vpack.c.b16 %v955, %v953
        %v1152 = vpack.c.b16 %v956, %v954
        %v1153 = vpack.c.b16 %v959, %v957
        %v1154 = vpack.c.b16 %v960, %v958
        %v1155 = vpack.c.b16 %v963, %v961
        %v1156 = vpack.c.b16 %v964, %v962
        %v1157 = vpack.c.b16 %v967, %v965
        %v1158 = vpack.c.b16 %v968, %v966
        %v1159 = vpack.c.b16 %v971, %v969
        %v1160 = vpack.c.b16 %v972, %v970
        %v1161 = vpack.c.b16 %v975, %v973
        %v1162 = vpack.c.b16 %v976, %v974
        %v1163 = vpack.c.b16 %v979, %v977
        %v1164 = vpack.c.b16 %v980, %v978
        %v1165 = vpack.c.b16 %v983, %v981
        %v1166 = vpack.c.b16 %v984, %v982
        %v1167 = vpack.c.b16 %v987, %v985
        %v1168 = vpack.c.b16 %v988, %v986
        %v1169 = vpack.c.b16 %v991, %v989
        %v1170 = vpack.c.b16 %v992, %v990
        %v1171 = vpack.c.b16 %v995, %v993
        %v1172 = vpack.c.b16 %v996, %v994
        %v1173 = vpack.c.b16 %v999, %v997
        %v1174 = vpack.c.b16 %v1000, %v998
        %v1175 = vpack.c.b16 %v1003, %v1001
        %v1176 = vpack.c.b16 %v1004, %v1002
        %v1177 = vpack.c.b16 %v1007, %v1005
        %v1178 = vpack.c.b16 %v1008, %v1006
        %v1179 = vpack.c.b16 %v1011, %v1009
        %v1180 = vpack.c.b16 %v1012, %v1010
        %v1181 = vpack.c.b16 %v1015, %v1013
        %v1182 = vpack.c.b16 %v1016, %v1014
        %v1183 = vpack.c.b16 %v1019, %v1017
        %v1184 = vpack.c.b16 %v1020, %v1018
        %v1185 = vpack.c.b16 %v1023, %v1021
        %v1186 = vpack.c.b16 %v1024, %v1022
        %v1187 = vpack.c.b16 %v1027, %v1025
        %v1188 = vpack.c.b16 %v1028, %v1026
        %v1189 = vpack.c.b16 %v1031, %v1029
        %v1190 = vpack.c.b16 %v1032, %v1030
        %v1191 = vpack.c.b16 %v1035, %v1033
        %v1192 = vpack.c.b16 %v1036, %v1034
        %v1193 = vpack.c.b16 %v1039, %v1037
        %v1194 = vpack.c.b16 %v1040, %v1038
        %v1195 = vpack.c.b16 %v1043, %v1041
        %v1196 = vpack.c.b16 %v1044, %v1042
        %v1197 = vpack.c.b16 %v1047, %v1045
        %v1198 = vpack.c.b16 %v1048, %v1046
        %v1199 = vpack.c.b16 %v1051, %v1049
        %v1200 = vpack.c.b16 %v1052, %v1050
        %v1201 = vpack.c.b16 %v1055, %v1053
        %v1202 = vpack.c.b16 %v1056, %v1054
        %v1203 = vpack.c.b16 %v1059, %v1057
        %v1204 = vpack.c.b16 %v1060, %v1058
        %v1205 = vpack.c.b16 %v1063, %v1061
        %v1206 = vpack.c.b16 %v1064, %v1062
        %v1207 = vpack.c.b16 %v1067, %v1065
        %v1208 = vpack.c.b16 %v1068, %v1066
        %v1209 = vpack.c.b16 %v1071, %v1069
        %v1210 = vpack.c.b16 %v1072, %v1070
        %v1211 = vpack.c.b16 %v1075, %v1073
        %v1212 = vpack.c.b16 %v1076, %v1074
        %v1213 = vpack.c.b16 %v1079, %v1077
        %v1214 = vpack.c.b16 %v1080, %v1078
        %v1215 = vpack.c.b16 %v1083, %v1081
        %v1216 = vpack.c.b16 %v1084, %v1082
        %v1217 = vpack.c.b16 %v1087, %v1085
        %v1218 = vpack.c.b16 %v1088, %v1086
        %v1219 = vpack.c.b16 %v1091, %v1089
        %v1220 = vpack.c.b16 %v1092, %v1090
        %v1304 = vunpack.c.l.b16 %v690
        %v1305 = vunpack.c.l.b16 %v691
        %v1306 = vunpack.c.l.b16 %v692
        %v1307 = vunpack.c.l.b16 %v693
        %v1308 = vunpack.c.l.b16 %v694
        %v1309 = vunpack.c.l.b16 %v695
        %v1310 = vunpack.c.l.b16 %v696
        %v1311 = vunpack.c.l.b16 %v697
        %v1312 = vunpack.c.l.b16 %v698
        %v1313 = vunpack.c.l.b16 %v699
        %v1314 = vunpack.c.l.b16 %v700
        %v1315 = vunpack.c.l.b16 %v701
        %v1316 = vunpack.c.l.b16 %v702
        %v1317 = vunpack.c.l.b16 %v703
        %v1318 = vunpack.c.l.b16 %v704
        %v1319 = vunpack.c.l.b16 %v705
        %v1320 = vunpack.c.l.b16 %v706
        %v1321 = vunpack.c.l.b16 %v707
        %v1322 = vunpack.c.l.b16 %v708
        %v1323 = vpack.c.b16 %v1305, %v1304
        %v1324 = vpack.c.b16 %v1307, %v1306
        %v1325 = vpack.c.b16 %v1309, %v1308
        %v1326 = vpack.c.b16 %v1311, %v1310
        %v1327 = vpack.c.b16 %v1313, %v1312
        %v1328 = vpack.c.b16 %v1315, %v1314
        %v1329 = vpack.c.b16 %v1317, %v1316
        %v1330 = vpack.c.b16 %v1319, %v1318
        %v1331 = vpack.c.b16 %v1321, %v1320
        %v1332 = vpack.c.b16 %v1322, %v1322
        %vm1342 = vcmask 154624
        %v1344 = vsel %vm1342, %v1094, 0
        %v1347 = vsel %vm1342, %v1096, 0
        %v1350 = vsel %vm1342, %v1098, 0
        %v1353 = vsel %vm1342, %v1100, 0
        %v1356 = vsel %vm1342, %v1102, 0
        %v1359 = vsel %vm1342, %v1104, 0
        %v1362 = vsel %vm1342, %v1106, 0
        %v1365 = vsel %vm1342, %v1108, 0
        %v1368 = vsel %vm1342, %v1110, 0
        %v1371 = vsel %vm1342, %v1112, 0
        %v1374 = vsel %vm1342, %v1114, 0
        %v1377 = vsel %vm1342, %v1116, 0
        %v1380 = vsel %vm1342, %v1118, 0
        %v1383 = vsel %vm1342, %v1120, 0
        %v1386 = vsel %vm1342, %v1122, 0
        %v1389 = vsel %vm1342, %v1124, 0
        %v1392 = vsel %vm1342, %v1126, 0
        %v1395 = vsel %vm1342, %v1128, 0
        %v1398 = vsel %vm1342, %v1130, 0
        %v1401 = vsel %vm1342, %v1132, 0
        %v1404 = vsel %vm1342, %v1134, 0
        %v1407 = vsel %vm1342, %v1136, 0
        %v1410 = vsel %vm1342, %v1138, 0
        %v1413 = vsel %vm1342, %v1140, 0
        %v1416 = vsel %vm1342, %v1142, 0
        %v1419 = vsel %vm1342, %v1144, 0
        %v1422 = vsel %vm1342, %v1146, 0
        %v1425 = vsel %vm1342, %v1148, 0
        %v1428 = vsel %vm1342, %v1150, 0
        %v1431 = vsel %vm1342, %v1152, 0
        %v1434 = vsel %vm1342, %v1154, 0
        %v1437 = vsel %vm1342, %v1156, 0
        %v1440 = vsel %vm1342, %v1158, 0
        %v1443 = vsel %vm1342, %v1160, 0
        %v1446 = vsel %vm1342, %v1162, 0
        %v1449 = vsel %vm1342, %v1164, 0
        %v1452 = vsel %vm1342, %v1166, 0
        %v1455 = vsel %vm1342, %v1168, 0
        %v1458 = vsel %vm1342, %v1170, 0
        %v1461 = vsel %vm1342, %v1172, 0
        %v1464 = vsel %vm1342, %v1174, 0
        %v1467 = vsel %vm1342, %v1176, 0
        %v1470 = vsel %vm1342, %v1178, 0
        %v1473 = vsel %vm1342, %v1180, 0
        %v1476 = vsel %vm1342, %v1182, 0
        %v1479 = vsel %vm1342, %v1184, 0
        %v1482 = vsel %vm1342, %v1186, 0
        %v1485 = vsel %vm1342, %v1188, 0
        %v1488 = vsel %vm1342, %v1190, 0
        %v1491 = vsel %vm1342, %v1192, 0
        %v1494 = vsel %vm1342, %v1194, 0
        %v1497 = vsel %vm1342, %v1196, 0
        %v1500 = vsel %vm1342, %v1198, 0
        %v1503 = vsel %vm1342, %v1200, 0
        %v1506 = vsel %vm1342, %v1202, 0
        %v1509 = vsel %vm1342, %v1204, 0
        %v1512 = vsel %vm1342, %v1206, 0
        %v1515 = vsel %vm1342, %v1208, 0
        %v1518 = vsel %vm1342, %v1210, 0
        %v1521 = vsel %vm1342, %v1212, 0
        %v1524 = vsel %vm1342, %v1214, 0
        %v1527 = vsel %vm1342, %v1216, 0
        %v1530 = vsel %vm1342, %v1218, 0
        %v1533 = vsel %vm1342, %v1220, 0
        %vm1535 = vcmask 1040384
        %vm1536 = vcmask 1041408
        %v1537 = vsel %vm1535, 4294967295, 65535
        %v1538 = vsel %vm1536, %v1537, 0
        %v1540 = vand.u32 %v1332, %v1538
        %1542 = vmatprep.subr.bf16.mxu0 0
        %1543 = vmatpush1.bf16.msra.mxu0 %v1330
        %1544 = vmatprep.subr.bf16.mxu0 0
        %1545 = vmatpush1.bf16.msra.mxu0 %v1329
        %1546 = vmatprep.subr.bf16.mxu0 0
        %1547 = vmatpush1.bf16.msra.mxu0 %v1328
        %1548 = vmatprep.subr.bf16.mxu0 0
        %1549 = vmatpush1.bf16.msra.mxu0 %v1327
        %1550 = vmatprep.subr.bf16.mxu0 0
        %1551 = vmatpush1.bf16.msra.mxu0 %v1326
        %1552 = vmatprep.subr.bf16.mxu0 0
        %1553 = vmatpush1.bf16.msra.mxu0 %v1325
        %1554 = vmatprep.subr.bf16.mxu0 0
        %1555 = vmatpush1.bf16.msra.mxu0 %v1324
        %1556 = vmatprep.subr.bf16.mxu0 0
        %1557 = vmatpush1.bf16.msra.mxu0 %v1323
        %1558 = vmatprep.subr.bf16.mxu0 0
        %1559 = vmatpush2.bf16.msra.mxu0 0
        %1560 = vmatprep.subr.bf16.mxu0 0
        %1561 = vmatpush2.bf16.msra.mxu0 0
        %1562 = vmatprep.subr.bf16.mxu0 0
        %1563 = vmatpush2.bf16.msra.mxu0 0
        %1564 = vmatprep.subr.bf16.mxu0 0
        %1565 = vmatpush2.bf16.msra.mxu0 0
        %1566 = vmatprep.subr.bf16.mxu0 0
        %1567 = vmatpush2.bf16.msra.mxu0 0
        %1568 = vmatprep.subr.bf16.mxu0 0
        %1569 = vmatpush2.bf16.msra.mxu0 0
        %1570 = vmatprep.subr.bf16.mxu0 0
        %1571 = vmatpush2.bf16.msra.mxu0 %v1540
        %1572 = vmatprep.subr.bf16.mxu0 0
        %1573 = vmatpush2.bf16.msra.mxu0 %v1331
        %1574 = vmatprep.mubr.bf16.mxu0 %v1344
        %1575 = vmatmul.mubr.bf16.gmra.mxu0 %v1093
        %v1576 = vpop.f32.mrf.mxu0
        %v1577 = vadd.f32 0.0, %v1576
        %v1578 = vpop.f32.mrf.mxu0
        %v1579 = vpop.f32.mrf.mxu0
        %v1580 = vadd.f32 0.0, %v1579
        %v1581 = vpop.f32.mrf.mxu0
        %1582 = vmatprep.mubr.bf16.mxu0 %v1347
        %1583 = vmatmul.mubr.bf16.gmra.mxu0 %v1095
        %v1584 = vpop.f32.mrf.mxu0
        %v1585 = vadd.f32 0.0, %v1584
        %v1586 = vpop.f32.mrf.mxu0
        %v1587 = vpop.f32.mrf.mxu0
        %v1588 = vadd.f32 0.0, %v1587
        %v1589 = vpop.f32.mrf.mxu0
        %1590 = vmatprep.mubr.bf16.mxu0 %v1350
        %1591 = vmatmul.mubr.bf16.gmra.mxu0 %v1097
        %v1592 = vpop.f32.mrf.mxu0
        %v1593 = vadd.f32 0.0, %v1592
        %v1594 = vpop.f32.mrf.mxu0
        %v1595 = vpop.f32.mrf.mxu0
        %v1596 = vadd.f32 0.0, %v1595
        %v1597 = vpop.f32.mrf.mxu0
        %1598 = vmatprep.mubr.bf16.mxu0 %v1353
        %1599 = vmatmul.mubr.bf16.gmra.mxu0 %v1099
        %v1600 = vpop.f32.mrf.mxu0
        %v1601 = vadd.f32 0.0, %v1600
        %v1602 = vpop.f32.mrf.mxu0
        %v1603 = vpop.f32.mrf.mxu0
        %v1604 = vadd.f32 0.0, %v1603
        %v1605 = vpop.f32.mrf.mxu0
        %1606 = vmatprep.mubr.bf16.mxu0 %v1356
        %1607 = vmatmul.mubr.bf16.gmra.mxu0 %v1101
        %v1608 = vpop.f32.mrf.mxu0
        %v1609 = vadd.f32 0.0, %v1608
        %v1610 = vpop.f32.mrf.mxu0
        %v1611 = vpop.f32.mrf.mxu0
        %v1612 = vadd.f32 0.0, %v1611
        %v1613 = vpop.f32.mrf.mxu0
        %1614 = vmatprep.mubr.bf16.mxu0 %v1359
        %1615 = vmatmul.mubr.bf16.gmra.mxu0 %v1103
        %v1616 = vpop.f32.mrf.mxu0
        %v1617 = vadd.f32 0.0, %v1616
        %v1618 = vpop.f32.mrf.mxu0
        %v1619 = vpop.f32.mrf.mxu0
        %v1620 = vadd.f32 0.0, %v1619
        %v1621 = vpop.f32.mrf.mxu0
        %1622 = vmatprep.mubr.bf16.mxu0 %v1362
        %1623 = vmatmul.mubr.bf16.gmra.mxu0 %v1105
        %v1624 = vpop.f32.mrf.mxu0
        %v1625 = vadd.f32 0.0, %v1624
        %v1626 = vpop.f32.mrf.mxu0
        %v1627 = vpop.f32.mrf.mxu0
        %v1628 = vadd.f32 0.0, %v1627
        %v1629 = vpop.f32.mrf.mxu0
        %1630 = vmatprep.mubr.bf16.mxu0 %v1365
        %1631 = vmatmul.mubr.bf16.gmra.mxu0 %v1107
        %v1632 = vpop.f32.mrf.mxu0
        %v1633 = vadd.f32 0.0, %v1632
        %v1634 = vpop.f32.mrf.mxu0
        %v1635 = vpop.f32.mrf.mxu0
        %v1636 = vadd.f32 0.0, %v1635
        %v1637 = vpop.f32.mrf.mxu0
        %1638 = vmatprep.mubr.bf16.mxu0 %v1368
        %1639 = vmatmul.mubr.bf16.gmra.mxu0 %v1109
        %v1640 = vpop.f32.mrf.mxu0
        %v1641 = vadd.f32 0.0, %v1640
        %v1642 = vpop.f32.mrf.mxu0
        %v1643 = vpop.f32.mrf.mxu0
        %v1644 = vadd.f32 0.0, %v1643
        %v1645 = vpop.f32.mrf.mxu0
        %1646 = vmatprep.mubr.bf16.mxu0 %v1371
        %1647 = vmatmul.mubr.bf16.gmra.mxu0 %v1111
        %v1648 = vpop.f32.mrf.mxu0
        %v1649 = vadd.f32 0.0, %v1648
        %v1650 = vpop.f32.mrf.mxu0
        %v1651 = vpop.f32.mrf.mxu0
        %v1652 = vadd.f32 0.0, %v1651
        %v1653 = vpop.f32.mrf.mxu0
        %1654 = vmatprep.mubr.bf16.mxu0 %v1374
        %1655 = vmatmul.mubr.bf16.gmra.mxu0 %v1113
        %v1656 = vpop.f32.mrf.mxu0
        %v1657 = vadd.f32 0.0, %v1656
        %v1658 = vpop.f32.mrf.mxu0
        %v1659 = vpop.f32.mrf.mxu0
        %v1660 = vadd.f32 0.0, %v1659
        %v1661 = vpop.f32.mrf.mxu0
        %1662 = vmatprep.mubr.bf16.mxu0 %v1377
        %1663 = vmatmul.mubr.bf16.gmra.mxu0 %v1115
        %v1664 = vpop.f32.mrf.mxu0
        %v1665 = vadd.f32 0.0, %v1664
        %v1666 = vpop.f32.mrf.mxu0
        %v1667 = vpop.f32.mrf.mxu0
        %v1668 = vadd.f32 0.0, %v1667
        %v1669 = vpop.f32.mrf.mxu0
        %1670 = vmatprep.mubr.bf16.mxu0 %v1380
        %1671 = vmatmul.mubr.bf16.gmra.mxu0 %v1117
        %v1672 = vpop.f32.mrf.mxu0
        %v1673 = vadd.f32 0.0, %v1672
        %v1674 = vpop.f32.mrf.mxu0
        %v1675 = vpop.f32.mrf.mxu0
        %v1676 = vadd.f32 0.0, %v1675
        %v1677 = vpop.f32.mrf.mxu0
        %1678 = vmatprep.mubr.bf16.mxu0 %v1383
        %1679 = vmatmul.mubr.bf16.gmra.mxu0 %v1119
        %v1680 = vpop.f32.mrf.mxu0
        %v1681 = vadd.f32 0.0, %v1680
        %v1682 = vpop.f32.mrf.mxu0
        %v1683 = vpop.f32.mrf.mxu0
        %v1684 = vadd.f32 0.0, %v1683
        %v1685 = vpop.f32.mrf.mxu0
        %1686 = vmatprep.mubr.bf16.mxu0 %v1386
        %1687 = vmatmul.mubr.bf16.gmra.mxu0 %v1121
        %v1688 = vpop.f32.mrf.mxu0
        %v1689 = vadd.f32 0.0, %v1688
        %v1690 = vpop.f32.mrf.mxu0
        %v1691 = vpop.f32.mrf.mxu0
        %v1692 = vadd.f32 0.0, %v1691
        %v1693 = vpop.f32.mrf.mxu0
        %1694 = vmatprep.mubr.bf16.mxu0 %v1389
        %1695 = vmatmul.mubr.bf16.gmra.mxu0 %v1123
        %v1696 = vpop.f32.mrf.mxu0
        %v1697 = vadd.f32 0.0, %v1696
        %v1698 = vpop.f32.mrf.mxu0
        %v1699 = vpop.f32.mrf.mxu0
        %v1700 = vadd.f32 0.0, %v1699
        %v1701 = vpop.f32.mrf.mxu0
        %1702 = vmatprep.mubr.bf16.mxu0 %v1392
        %1703 = vmatmul.mubr.bf16.gmra.mxu0 %v1125
        %v1704 = vpop.f32.mrf.mxu0
        %v1705 = vadd.f32 0.0, %v1704
        %v1706 = vpop.f32.mrf.mxu0
        %v1707 = vpop.f32.mrf.mxu0
        %v1708 = vadd.f32 0.0, %v1707
        %v1709 = vpop.f32.mrf.mxu0
        %1710 = vmatprep.mubr.bf16.mxu0 %v1395
        %1711 = vmatmul.mubr.bf16.gmra.mxu0 %v1127
        %v1712 = vpop.f32.mrf.mxu0
        %v1713 = vadd.f32 0.0, %v1712
        %v1714 = vpop.f32.mrf.mxu0
        %v1715 = vpop.f32.mrf.mxu0
        %v1716 = vadd.f32 0.0, %v1715
        %v1717 = vpop.f32.mrf.mxu0
        %1718 = vmatprep.mubr.bf16.mxu0 %v1398
        %1719 = vmatmul.mubr.bf16.gmra.mxu0 %v1129
        %v1720 = vpop.f32.mrf.mxu0
        %v1721 = vadd.f32 0.0, %v1720
        %v1722 = vpop.f32.mrf.mxu0
        %v1723 = vpop.f32.mrf.mxu0
        %v1724 = vadd.f32 0.0, %v1723
        %v1725 = vpop.f32.mrf.mxu0
        %1726 = vmatprep.mubr.bf16.mxu0 %v1401
        %1727 = vmatmul.mubr.bf16.gmra.mxu0 %v1131
        %v1728 = vpop.f32.mrf.mxu0
        %v1729 = vadd.f32 0.0, %v1728
        %v1730 = vpop.f32.mrf.mxu0
        %v1731 = vpop.f32.mrf.mxu0
        %v1732 = vadd.f32 0.0, %v1731
        %v1733 = vpop.f32.mrf.mxu0
        %1734 = vmatprep.mubr.bf16.mxu0 %v1404
        %1735 = vmatmul.mubr.bf16.gmra.mxu0 %v1133
        %v1736 = vpop.f32.mrf.mxu0
        %v1737 = vadd.f32 0.0, %v1736
        %v1738 = vpop.f32.mrf.mxu0
        %v1739 = vpop.f32.mrf.mxu0
        %v1740 = vadd.f32 0.0, %v1739
        %v1741 = vpop.f32.mrf.mxu0
        %1742 = vmatprep.mubr.bf16.mxu0 %v1407
        %1743 = vmatmul.mubr.bf16.gmra.mxu0 %v1135
        %v1744 = vpop.f32.mrf.mxu0
        %v1745 = vadd.f32 0.0, %v1744
        %v1746 = vpop.f32.mrf.mxu0
        %v1747 = vpop.f32.mrf.mxu0
        %v1748 = vadd.f32 0.0, %v1747
        %v1749 = vpop.f32.mrf.mxu0
        %1750 = vmatprep.mubr.bf16.mxu0 %v1410
        %1751 = vmatmul.mubr.bf16.gmra.mxu0 %v1137
        %v1752 = vpop.f32.mrf.mxu0
        %v1753 = vadd.f32 0.0, %v1752
        %v1754 = vpop.f32.mrf.mxu0
        %v1755 = vpop.f32.mrf.mxu0
        %v1756 = vadd.f32 0.0, %v1755
        %v1757 = vpop.f32.mrf.mxu0
        %1758 = vmatprep.mubr.bf16.mxu0 %v1413
        %1759 = vmatmul.mubr.bf16.gmra.mxu0 %v1139
        %v1760 = vpop.f32.mrf.mxu0
        %v1761 = vadd.f32 0.0, %v1760
        %v1762 = vpop.f32.mrf.mxu0
        %v1763 = vpop.f32.mrf.mxu0
        %v1764 = vadd.f32 0.0, %v1763
        %v1765 = vpop.f32.mrf.mxu0
        %1766 = vmatprep.mubr.bf16.mxu0 %v1416
        %1767 = vmatmul.mubr.bf16.gmra.mxu0 %v1141
        %v1768 = vpop.f32.mrf.mxu0
        %v1769 = vadd.f32 0.0, %v1768
        %v1770 = vpop.f32.mrf.mxu0
        %v1771 = vpop.f32.mrf.mxu0
        %v1772 = vadd.f32 0.0, %v1771
        %v1773 = vpop.f32.mrf.mxu0
        %1774 = vmatprep.mubr.bf16.mxu0 %v1419
        %1775 = vmatmul.mubr.bf16.gmra.mxu0 %v1143
        %v1776 = vpop.f32.mrf.mxu0
        %v1777 = vadd.f32 0.0, %v1776
        %v1778 = vpop.f32.mrf.mxu0
        %v1779 = vpop.f32.mrf.mxu0
        %v1780 = vadd.f32 0.0, %v1779
        %v1781 = vpop.f32.mrf.mxu0
        %1782 = vmatprep.mubr.bf16.mxu0 %v1422
        %1783 = vmatmul.mubr.bf16.gmra.mxu0 %v1145
        %v1784 = vpop.f32.mrf.mxu0
        %v1785 = vadd.f32 0.0, %v1784
        %v1786 = vpop.f32.mrf.mxu0
        %v1787 = vpop.f32.mrf.mxu0
        %v1788 = vadd.f32 0.0, %v1787
        %v1789 = vpop.f32.mrf.mxu0
        %1790 = vmatprep.mubr.bf16.mxu0 %v1425
        %1791 = vmatmul.mubr.bf16.gmra.mxu0 %v1147
        %v1792 = vpop.f32.mrf.mxu0
        %v1793 = vadd.f32 0.0, %v1792
        %v1794 = vpop.f32.mrf.mxu0
        %v1795 = vpop.f32.mrf.mxu0
        %v1796 = vadd.f32 0.0, %v1795
        %v1797 = vpop.f32.mrf.mxu0
        %1798 = vmatprep.mubr.bf16.mxu0 %v1428
        %1799 = vmatmul.mubr.bf16.gmra.mxu0 %v1149
        %v1800 = vpop.f32.mrf.mxu0
        %v1801 = vadd.f32 0.0, %v1800
        %v1802 = vpop.f32.mrf.mxu0
        %v1803 = vpop.f32.mrf.mxu0
        %v1804 = vadd.f32 0.0, %v1803
        %v1805 = vpop.f32.mrf.mxu0
        %1806 = vmatprep.mubr.bf16.mxu0 %v1431
        %1807 = vmatmul.mubr.bf16.gmra.mxu0 %v1151
        %v1808 = vpop.f32.mrf.mxu0
        %v1809 = vadd.f32 0.0, %v1808
        %v1810 = vpop.f32.mrf.mxu0
        %v1811 = vpop.f32.mrf.mxu0
        %v1812 = vadd.f32 0.0, %v1811
        %v1813 = vpop.f32.mrf.mxu0
        %1814 = vmatprep.mubr.bf16.mxu0 %v1434
        %1815 = vmatmul.mubr.bf16.gmra.mxu0 %v1153
        %v1816 = vpop.f32.mrf.mxu0
        %v1817 = vadd.f32 0.0, %v1816
        %v1818 = vpop.f32.mrf.mxu0
        %v1819 = vpop.f32.mrf.mxu0
        %v1820 = vadd.f32 0.0, %v1819
        %v1821 = vpop.f32.mrf.mxu0
        %1822 = vmatprep.mubr.bf16.mxu0 %v1437
        %1823 = vmatmul.mubr.bf16.gmra.mxu0 %v1155
        %v1824 = vpop.f32.mrf.mxu0
        %v1825 = vadd.f32 0.0, %v1824
        %v1826 = vpop.f32.mrf.mxu0
        %v1827 = vpop.f32.mrf.mxu0
        %v1828 = vadd.f32 0.0, %v1827
        %v1829 = vpop.f32.mrf.mxu0
        %1830 = vmatprep.mubr.bf16.mxu0 %v1440
        %1831 = vmatmul.mubr.bf16.gmra.mxu0 %v1157
        %v1832 = vpop.f32.mrf.mxu0
        %v1833 = vadd.f32 0.0, %v1832
        %v1834 = vpop.f32.mrf.mxu0
        %v1835 = vpop.f32.mrf.mxu0
        %v1836 = vadd.f32 0.0, %v1835
        %v1837 = vpop.f32.mrf.mxu0
        %1838 = vmatprep.mubr.bf16.mxu0 %v1443
        %1839 = vmatmul.mubr.bf16.gmra.mxu0 %v1159
        %v1840 = vpop.f32.mrf.mxu0
        %v1841 = vadd.f32 0.0, %v1840
        %v1842 = vpop.f32.mrf.mxu0
        %v1843 = vpop.f32.mrf.mxu0
        %v1844 = vadd.f32 0.0, %v1843
        %v1845 = vpop.f32.mrf.mxu0
        %1846 = vmatprep.mubr.bf16.mxu0 %v1446
        %1847 = vmatmul.mubr.bf16.gmra.mxu0 %v1161
        %v1848 = vpop.f32.mrf.mxu0
        %v1849 = vadd.f32 0.0, %v1848
        %v1850 = vpop.f32.mrf.mxu0
        %v1851 = vpop.f32.mrf.mxu0
        %v1852 = vadd.f32 0.0, %v1851
        %v1853 = vpop.f32.mrf.mxu0
        %1854 = vmatprep.mubr.bf16.mxu0 %v1449
        %1855 = vmatmul.mubr.bf16.gmra.mxu0 %v1163
        %v1856 = vpop.f32.mrf.mxu0
        %v1857 = vadd.f32 0.0, %v1856
        %v1858 = vpop.f32.mrf.mxu0
        %v1859 = vpop.f32.mrf.mxu0
        %v1860 = vadd.f32 0.0, %v1859
        %v1861 = vpop.f32.mrf.mxu0
        %1862 = vmatprep.mubr.bf16.mxu0 %v1452
        %1863 = vmatmul.mubr.bf16.gmra.mxu0 %v1165
        %v1864 = vpop.f32.mrf.mxu0
        %v1865 = vadd.f32 0.0, %v1864
        %v1866 = vpop.f32.mrf.mxu0
        %v1867 = vpop.f32.mrf.mxu0
        %v1868 = vadd.f32 0.0, %v1867
        %v1869 = vpop.f32.mrf.mxu0
        %1870 = vmatprep.mubr.bf16.mxu0 %v1455
        %1871 = vmatmul.mubr.bf16.gmra.mxu0 %v1167
        %v1872 = vpop.f32.mrf.mxu0
        %v1873 = vadd.f32 0.0, %v1872
        %v1874 = vpop.f32.mrf.mxu0
        %v1875 = vpop.f32.mrf.mxu0
        %v1876 = vadd.f32 0.0, %v1875
        %v1877 = vpop.f32.mrf.mxu0
        %1878 = vmatprep.mubr.bf16.mxu0 %v1458
        %1879 = vmatmul.mubr.bf16.gmra.mxu0 %v1169
        %v1880 = vpop.f32.mrf.mxu0
        %v1881 = vadd.f32 0.0, %v1880
        %v1882 = vpop.f32.mrf.mxu0
        %v1883 = vpop.f32.mrf.mxu0
        %v1884 = vadd.f32 0.0, %v1883
        %v1885 = vpop.f32.mrf.mxu0
        %1886 = vmatprep.mubr.bf16.mxu0 %v1461
        %1887 = vmatmul.mubr.bf16.gmra.mxu0 %v1171
        %v1888 = vpop.f32.mrf.mxu0
        %v1889 = vadd.f32 0.0, %v1888
        %v1890 = vpop.f32.mrf.mxu0
        %v1891 = vpop.f32.mrf.mxu0
        %v1892 = vadd.f32 0.0, %v1891
        %v1893 = vpop.f32.mrf.mxu0
        %1894 = vmatprep.mubr.bf16.mxu0 %v1464
        %1895 = vmatmul.mubr.bf16.gmra.mxu0 %v1173
        %v1896 = vpop.f32.mrf.mxu0
        %v1897 = vadd.f32 0.0, %v1896
        %v1898 = vpop.f32.mrf.mxu0
        %v1899 = vpop.f32.mrf.mxu0
        %v1900 = vadd.f32 0.0, %v1899
        %v1901 = vpop.f32.mrf.mxu0
        %1902 = vmatprep.mubr.bf16.mxu0 %v1467
        %1903 = vmatmul.mubr.bf16.gmra.mxu0 %v1175
        %v1904 = vpop.f32.mrf.mxu0
        %v1905 = vadd.f32 0.0, %v1904
        %v1906 = vpop.f32.mrf.mxu0
        %v1907 = vpop.f32.mrf.mxu0
        %v1908 = vadd.f32 0.0, %v1907
        %v1909 = vpop.f32.mrf.mxu0
        %1910 = vmatprep.mubr.bf16.mxu0 %v1470
        %1911 = vmatmul.mubr.bf16.gmra.mxu0 %v1177
        %v1912 = vpop.f32.mrf.mxu0
        %v1913 = vadd.f32 0.0, %v1912
        %v1914 = vpop.f32.mrf.mxu0
        %v1915 = vpop.f32.mrf.mxu0
        %v1916 = vadd.f32 0.0, %v1915
        %v1917 = vpop.f32.mrf.mxu0
        %1918 = vmatprep.mubr.bf16.mxu0 %v1473
        %1919 = vmatmul.mubr.bf16.gmra.mxu0 %v1179
        %v1920 = vpop.f32.mrf.mxu0
        %v1921 = vadd.f32 0.0, %v1920
        %v1922 = vpop.f32.mrf.mxu0
        %v1923 = vpop.f32.mrf.mxu0
        %v1924 = vadd.f32 0.0, %v1923
        %v1925 = vpop.f32.mrf.mxu0
        %1926 = vmatprep.mubr.bf16.mxu0 %v1476
        %1927 = vmatmul.mubr.bf16.gmra.mxu0 %v1181
        %v1928 = vpop.f32.mrf.mxu0
        %v1929 = vadd.f32 0.0, %v1928
        %v1930 = vpop.f32.mrf.mxu0
        %v1931 = vpop.f32.mrf.mxu0
        %v1932 = vadd.f32 0.0, %v1931
        %v1933 = vpop.f32.mrf.mxu0
        %1934 = vmatprep.mubr.bf16.mxu0 %v1479
        %1935 = vmatmul.mubr.bf16.gmra.mxu0 %v1183
        %v1936 = vpop.f32.mrf.mxu0
        %v1937 = vadd.f32 0.0, %v1936
        %v1938 = vpop.f32.mrf.mxu0
        %v1939 = vpop.f32.mrf.mxu0
        %v1940 = vadd.f32 0.0, %v1939
        %v1941 = vpop.f32.mrf.mxu0
        %1942 = vmatprep.mubr.bf16.mxu0 %v1482
        %1943 = vmatmul.mubr.bf16.gmra.mxu0 %v1185
        %v1944 = vpop.f32.mrf.mxu0
        %v1945 = vadd.f32 0.0, %v1944
        %v1946 = vpop.f32.mrf.mxu0
        %v1947 = vpop.f32.mrf.mxu0
        %v1948 = vadd.f32 0.0, %v1947
        %v1949 = vpop.f32.mrf.mxu0
        %1950 = vmatprep.mubr.bf16.mxu0 %v1485
        %1951 = vmatmul.mubr.bf16.gmra.mxu0 %v1187
        %v1952 = vpop.f32.mrf.mxu0
        %v1953 = vadd.f32 0.0, %v1952
        %v1954 = vpop.f32.mrf.mxu0
        %v1955 = vpop.f32.mrf.mxu0
        %v1956 = vadd.f32 0.0, %v1955
        %v1957 = vpop.f32.mrf.mxu0
        %1958 = vmatprep.mubr.bf16.mxu0 %v1488
        %1959 = vmatmul.mubr.bf16.gmra.mxu0 %v1189
        %v1960 = vpop.f32.mrf.mxu0
        %v1961 = vadd.f32 0.0, %v1960
        %v1962 = vpop.f32.mrf.mxu0
        %v1963 = vpop.f32.mrf.mxu0
        %v1964 = vadd.f32 0.0, %v1963
        %v1965 = vpop.f32.mrf.mxu0
        %1966 = vmatprep.mubr.bf16.mxu0 %v1491
        %1967 = vmatmul.mubr.bf16.gmra.mxu0 %v1191
        %v1968 = vpop.f32.mrf.mxu0
        %v1969 = vadd.f32 0.0, %v1968
        %v1970 = vpop.f32.mrf.mxu0
        %v1971 = vpop.f32.mrf.mxu0
        %v1972 = vadd.f32 0.0, %v1971
        %v1973 = vpop.f32.mrf.mxu0
        %1974 = vmatprep.mubr.bf16.mxu0 %v1494
        %1975 = vmatmul.mubr.bf16.gmra.mxu0 %v1193
        %v1976 = vpop.f32.mrf.mxu0
        %v1977 = vadd.f32 0.0, %v1976
        %v1978 = vpop.f32.mrf.mxu0
        %v1979 = vpop.f32.mrf.mxu0
        %v1980 = vadd.f32 0.0, %v1979
        %v1981 = vpop.f32.mrf.mxu0
        %1982 = vmatprep.mubr.bf16.mxu0 %v1497
        %1983 = vmatmul.mubr.bf16.gmra.mxu0 %v1195
        %v1984 = vpop.f32.mrf.mxu0
        %v1985 = vadd.f32 0.0, %v1984
        %v1986 = vpop.f32.mrf.mxu0
        %v1987 = vpop.f32.mrf.mxu0
        %v1988 = vadd.f32 0.0, %v1987
        %v1989 = vpop.f32.mrf.mxu0
        %1990 = vmatprep.mubr.bf16.mxu0 %v1500
        %1991 = vmatmul.mubr.bf16.gmra.mxu0 %v1197
        %v1992 = vpop.f32.mrf.mxu0
        %v1993 = vadd.f32 0.0, %v1992
        %v1994 = vpop.f32.mrf.mxu0
        %v1995 = vpop.f32.mrf.mxu0
        %v1996 = vadd.f32 0.0, %v1995
        %v1997 = vpop.f32.mrf.mxu0
        %1998 = vmatprep.mubr.bf16.mxu0 %v1503
        %1999 = vmatmul.mubr.bf16.gmra.mxu0 %v1199
        %v2000 = vpop.f32.mrf.mxu0
        %v2001 = vadd.f32 0.0, %v2000
        %v2002 = vpop.f32.mrf.mxu0
        %v2003 = vpop.f32.mrf.mxu0
        %v2004 = vadd.f32 0.0, %v2003
        %v2005 = vpop.f32.mrf.mxu0
        %2006 = vmatprep.mubr.bf16.mxu0 %v1506
        %2007 = vmatmul.mubr.bf16.gmra.mxu0 %v1201
        %v2008 = vpop.f32.mrf.mxu0
        %v2009 = vadd.f32 0.0, %v2008
        %v2010 = vpop.f32.mrf.mxu0
        %v2011 = vpop.f32.mrf.mxu0
        %v2012 = vadd.f32 0.0, %v2011
        %v2013 = vpop.f32.mrf.mxu0
        %2014 = vmatprep.mubr.bf16.mxu0 %v1509
        %2015 = vmatmul.mubr.bf16.gmra.mxu0 %v1203
        %v2016 = vpop.f32.mrf.mxu0
        %v2017 = vadd.f32 0.0, %v2016
        %v2018 = vpop.f32.mrf.mxu0
        %v2019 = vpop.f32.mrf.mxu0
        %v2020 = vadd.f32 0.0, %v2019
        %v2021 = vpop.f32.mrf.mxu0
        %2022 = vmatprep.mubr.bf16.mxu0 %v1512
        %2023 = vmatmul.mubr.bf16.gmra.mxu0 %v1205
        %v2024 = vpop.f32.mrf.mxu0
        %v2025 = vadd.f32 0.0, %v2024
        %v2026 = vpop.f32.mrf.mxu0
        %v2027 = vpop.f32.mrf.mxu0
        %v2028 = vadd.f32 0.0, %v2027
        %v2029 = vpop.f32.mrf.mxu0
        %2030 = vmatprep.mubr.bf16.mxu0 %v1515
        %2031 = vmatmul.mubr.bf16.gmra.mxu0 %v1207
        %v2032 = vpop.f32.mrf.mxu0
        %v2033 = vadd.f32 0.0, %v2032
        %v2034 = vpop.f32.mrf.mxu0
        %v2035 = vpop.f32.mrf.mxu0
        %v2036 = vadd.f32 0.0, %v2035
        %v2037 = vpop.f32.mrf.mxu0
        %2038 = vmatprep.mubr.bf16.mxu0 %v1518
        %2039 = vmatmul.mubr.bf16.gmra.mxu0 %v1209
        %v2040 = vpop.f32.mrf.mxu0
        %v2041 = vadd.f32 0.0, %v2040
        %v2042 = vpop.f32.mrf.mxu0
        %v2043 = vpop.f32.mrf.mxu0
        %v2044 = vadd.f32 0.0, %v2043
        %v2045 = vpop.f32.mrf.mxu0
        %2046 = vmatprep.mubr.bf16.mxu0 %v1521
        %2047 = vmatmul.mubr.bf16.gmra.mxu0 %v1211
        %v2048 = vpop.f32.mrf.mxu0
        %v2049 = vadd.f32 0.0, %v2048
        %v2050 = vpop.f32.mrf.mxu0
        %v2051 = vpop.f32.mrf.mxu0
        %v2052 = vadd.f32 0.0, %v2051
        %v2053 = vpop.f32.mrf.mxu0
        %2054 = vmatprep.mubr.bf16.mxu0 %v1524
        %2055 = vmatmul.mubr.bf16.gmra.mxu0 %v1213
        %v2056 = vpop.f32.mrf.mxu0
        %v2057 = vadd.f32 0.0, %v2056
        %v2058 = vpop.f32.mrf.mxu0
        %v2059 = vpop.f32.mrf.mxu0
        %v2060 = vadd.f32 0.0, %v2059
        %v2061 = vpop.f32.mrf.mxu0
        %2062 = vmatprep.mubr.bf16.mxu0 %v1527
        %2063 = vmatmul.mubr.bf16.gmra.mxu0 %v1215
        %v2064 = vpop.f32.mrf.mxu0
        %v2065 = vadd.f32 0.0, %v2064
        %v2066 = vpop.f32.mrf.mxu0
        %v2067 = vpop.f32.mrf.mxu0
        %v2068 = vadd.f32 0.0, %v2067
        %v2069 = vpop.f32.mrf.mxu0
        %2070 = vmatprep.mubr.bf16.mxu0 %v1530
        %2071 = vmatmul.mubr.bf16.gmra.mxu0 %v1217
        %v2072 = vpop.f32.mrf.mxu0
        %v2073 = vadd.f32 0.0, %v2072
        %v2074 = vpop.f32.mrf.mxu0
        %v2075 = vpop.f32.mrf.mxu0
        %v2076 = vadd.f32 0.0, %v2075
        %v2077 = vpop.f32.mrf.mxu0
        %2078 = vmatprep.mubr.bf16.mxu0 %v1533
        %2079 = vmatmul.mubr.bf16.gmra.mxu0 %v1219
        %v2080 = vpop.f32.mrf.mxu0
        %v2081 = vadd.f32 0.0, %v2080
        %v2082 = vpop.f32.mrf.mxu0
        %v2083 = vpop.f32.mrf.mxu0
        %v2084 = vadd.f32 0.0, %v2083
        %v2085 = vpop.f32.mrf.mxu0
        %2086 = vdwg.mxu0
        %v2087 = vadd.f32 %v434, %v1577
        %v2088 = vadd.f32 %v435, %v1580
        %v2089 = vadd.f32 %v436, %v1585
        %v2090 = vadd.f32 %v437, %v1588
        %v2091 = vadd.f32 %v438, %v1593
        %v2092 = vadd.f32 %v439, %v1596
        %v2093 = vadd.f32 %v440, %v1601
        %v2094 = vadd.f32 %v441, %v1604
        %v2095 = vadd.f32 %v442, %v1609
        %v2096 = vadd.f32 %v443, %v1612
        %v2097 = vadd.f32 %v444, %v1617
        %v2098 = vadd.f32 %v445, %v1620
        %v2099 = vadd.f32 %v446, %v1625
        %v2100 = vadd.f32 %v447, %v1628
        %v2101 = vadd.f32 %v448, %v1633
        %v2102 = vadd.f32 %v449, %v1636
        %v2103 = vadd.f32 %v450, %v1641
        %v2104 = vadd.f32 %v451, %v1644
        %v2105 = vadd.f32 %v452, %v1649
        %v2106 = vadd.f32 %v453, %v1652
        %v2107 = vadd.f32 %v454, %v1657
        %v2108 = vadd.f32 %v455, %v1660
        %v2109 = vadd.f32 %v456, %v1665
        %v2110 = vadd.f32 %v457, %v1668
        %v2111 = vadd.f32 %v458, %v1673
        %v2112 = vadd.f32 %v459, %v1676
        %v2113 = vadd.f32 %v460, %v1681
        %v2114 = vadd.f32 %v461, %v1684
        %v2115 = vadd.f32 %v462, %v1689
        %v2116 = vadd.f32 %v463, %v1692
        %v2117 = vadd.f32 %v464, %v1697
        %v2118 = vadd.f32 %v465, %v1700
        %v2119 = vadd.f32 %v466, %v1705
        %v2120 = vadd.f32 %v467, %v1708
        %v2121 = vadd.f32 %v468, %v1713
        %v2122 = vadd.f32 %v469, %v1716
        %v2123 = vadd.f32 %v470, %v1721
        %v2124 = vadd.f32 %v471, %v1724
        %v2125 = vadd.f32 %v472, %v1729
        %v2126 = vadd.f32 %v473, %v1732
        %v2127 = vadd.f32 %v474, %v1737
        %v2128 = vadd.f32 %v475, %v1740
        %v2129 = vadd.f32 %v476, %v1745
        %v2130 = vadd.f32 %v477, %v1748
        %v2131 = vadd.f32 %v478, %v1753
        %v2132 = vadd.f32 %v479, %v1756
        %v2133 = vadd.f32 %v480, %v1761
        %v2134 = vadd.f32 %v481, %v1764
        %v2135 = vadd.f32 %v482, %v1769
        %v2136 = vadd.f32 %v483, %v1772
        %v2137 = vadd.f32 %v484, %v1777
        %v2138 = vadd.f32 %v485, %v1780
        %v2139 = vadd.f32 %v486, %v1785
        %v2140 = vadd.f32 %v487, %v1788
        %v2141 = vadd.f32 %v488, %v1793
        %v2142 = vadd.f32 %v489, %v1796
        %v2143 = vadd.f32 %v490, %v1801
        %v2144 = vadd.f32 %v491, %v1804
        %v2145 = vadd.f32 %v492, %v1809
        %v2146 = vadd.f32 %v493, %v1812
        %v2147 = vadd.f32 %v494, %v1817
        %v2148 = vadd.f32 %v495, %v1820
        %v2149 = vadd.f32 %v496, %v1825
        %v2150 = vadd.f32 %v497, %v1828
        %v2151 = vadd.f32 %v498, %v1833
        %v2152 = vadd.f32 %v499, %v1836
        %v2153 = vadd.f32 %v500, %v1841
        %v2154 = vadd.f32 %v501, %v1844
        %v2155 = vadd.f32 %v502, %v1849
        %v2156 = vadd.f32 %v503, %v1852
        %v2157 = vadd.f32 %v504, %v1857
        %v2158 = vadd.f32 %v505, %v1860
        %v2159 = vadd.f32 %v506, %v1865
        %v2160 = vadd.f32 %v507, %v1868
        %v2161 = vadd.f32 %v508, %v1873
        %v2162 = vadd.f32 %v509, %v1876
        %v2163 = vadd.f32 %v510, %v1881
        %v2164 = vadd.f32 %v511, %v1884
        %v2165 = vadd.f32 %v512, %v1889
        %v2166 = vadd.f32 %v513, %v1892
        %v2167 = vadd.f32 %v514, %v1897
        %v2168 = vadd.f32 %v515, %v1900
        %v2169 = vadd.f32 %v516, %v1905
        %v2170 = vadd.f32 %v517, %v1908
        %v2171 = vadd.f32 %v518, %v1913
        %v2172 = vadd.f32 %v519, %v1916
        %v2173 = vadd.f32 %v520, %v1921
        %v2174 = vadd.f32 %v521, %v1924
        %v2175 = vadd.f32 %v522, %v1929
        %v2176 = vadd.f32 %v523, %v1932
        %v2177 = vadd.f32 %v524, %v1937
        %v2178 = vadd.f32 %v525, %v1940
        %v2179 = vadd.f32 %v526, %v1945
        %v2180 = vadd.f32 %v527, %v1948
        %v2181 = vadd.f32 %v528, %v1953
        %v2182 = vadd.f32 %v529, %v1956
        %v2183 = vadd.f32 %v530, %v1961
        %v2184 = vadd.f32 %v531, %v1964
        %v2185 = vadd.f32 %v532, %v1969
        %v2186 = vadd.f32 %v533, %v1972
        %v2187 = vadd.f32 %v534, %v1977
        %v2188 = vadd.f32 %v535, %v1980
        %v2189 = vadd.f32 %v536, %v1985
        %v2190 = vadd.f32 %v537, %v1988
        %v2191 = vadd.f32 %v538, %v1993
        %v2192 = vadd.f32 %v539, %v1996
        %v2193 = vadd.f32 %v540, %v2001
        %v2194 = vadd.f32 %v541, %v2004
        %v2195 = vadd.f32 %v542, %v2009
        %v2196 = vadd.f32 %v543, %v2012
        %v2197 = vadd.f32 %v544, %v2017
        %v2198 = vadd.f32 %v545, %v2020
        %v2199 = vadd.f32 %v546, %v2025
        %v2200 = vadd.f32 %v547, %v2028
        %v2201 = vadd.f32 %v548, %v2033
        %v2202 = vadd.f32 %v549, %v2036
        %v2203 = vadd.f32 %v550, %v2041
        %v2204 = vadd.f32 %v551, %v2044
        %v2205 = vadd.f32 %v552, %v2049
        %v2206 = vadd.f32 %v553, %v2052
        %v2207 = vadd.f32 %v554, %v2057
        %v2208 = vadd.f32 %v555, %v2060
        %v2209 = vadd.f32 %v556, %v2065
        %v2210 = vadd.f32 %v557, %v2068
        %v2211 = vadd.f32 %v558, %v2073
        %v2212 = vadd.f32 %v559, %v2076
        %v2213 = vadd.f32 %v560, %v2081
        %v2214 = vadd.f32 %v561, %v2084
        %vm2215 = vcmask 523264
        %2216 = vst.msk [vmem:[#allocation2] sm:$0xff] %vm2215, %v2087
        %2217 = vst.msk [vmem:[#allocation2 + $0x8] sm:$0xff] %vm2215, %v2088
        %2218 = vst.msk [vmem:[#allocation2 + $0x10] sm:$0xff] %vm2215, %v2089
        %2219 = vst.msk [vmem:[#allocation2 + $0x18] sm:$0xff] %vm2215, %v2090
        %2220 = vst.msk [vmem:[#allocation2 + $0x20] sm:$0xff] %vm2215, %v2091
        %2221 = vst.msk [vmem:[#allocation2 + $0x28] sm:$0xff] %vm2215, %v2092
        %2222 = vst.msk [vmem:[#allocation2 + $0x30] sm:$0xff] %vm2215, %v2093
        %2223 = vst.msk [vmem:[#allocation2 + $0x38] sm:$0xff] %vm2215, %v2094
        %2224 = vst.msk [vmem:[#allocation2 + $0x40] sm:$0xff] %vm2215, %v2095
        %2225 = vst.msk [vmem:[#allocation2 + $0x48] sm:$0xff] %vm2215, %v2096
        %2226 = vst.msk [vmem:[#allocation2 + $0x50] sm:$0xff] %vm2215, %v2097
        %2227 = vst.msk [vmem:[#allocation2 + $0x58] sm:$0xff] %vm2215, %v2098
        %2228 = vst.msk [vmem:[#allocation2 + $0x60] sm:$0xff] %vm2215, %v2099
        %2229 = vst.msk [vmem:[#allocation2 + $0x68] sm:$0xff] %vm2215, %v2100
        %2230 = vst.msk [vmem:[#allocation2 + $0x70] sm:$0xff] %vm2215, %v2101
        %2231 = vst.msk [vmem:[#allocation2 + $0x78] sm:$0xff] %vm2215, %v2102
        %2232 = vst.msk [vmem:[#allocation2 + $0x80] sm:$0xff] %vm2215, %v2103
        %2233 = vst.msk [vmem:[#allocation2 + $0x88] sm:$0xff] %vm2215, %v2104
        %2234 = vst.msk [vmem:[#allocation2 + $0x90] sm:$0xff] %vm2215, %v2105
        %2235 = vst.msk [vmem:[#allocation2 + $0x98] sm:$0xff] %vm2215, %v2106
        %2236 = vst.msk [vmem:[#allocation2 + $0xa0] sm:$0xff] %vm2215, %v2107
        %2237 = vst.msk [vmem:[#allocation2 + $0xa8] sm:$0xff] %vm2215, %v2108
        %2238 = vst.msk [vmem:[#allocation2 + $0xb0] sm:$0xff] %vm2215, %v2109
        %2239 = vst.msk [vmem:[#allocation2 + $0xb8] sm:$0xff] %vm2215, %v2110
        %2240 = vst.msk [vmem:[#allocation2 + $0xc0] sm:$0xff] %vm2215, %v2111
        %2241 = vst.msk [vmem:[#allocation2 + $0xc8] sm:$0xff] %vm2215, %v2112
        %2242 = vst.msk [vmem:[#allocation2 + $0xd0] sm:$0xff] %vm2215, %v2113
        %2243 = vst.msk [vmem:[#allocation2 + $0xd8] sm:$0xff] %vm2215, %v2114
        %2244 = vst.msk [vmem:[#allocation2 + $0xe0] sm:$0xff] %vm2215, %v2115
        %2245 = vst.msk [vmem:[#allocation2 + $0xe8] sm:$0xff] %vm2215, %v2116
        %2246 = vst.msk [vmem:[#allocation2 + $0xf0] sm:$0xff] %vm2215, %v2117
        %2247 = vst.msk [vmem:[#allocation2 + $0xf8] sm:$0xff] %vm2215, %v2118
        %2248 = vst.msk [vmem:[#allocation2 + $0x100] sm:$0xff] %vm2215, %v2119
        %2249 = vst.msk [vmem:[#allocation2 + $0x108] sm:$0xff] %vm2215, %v2120
        %2250 = vst.msk [vmem:[#allocation2 + $0x110] sm:$0xff] %vm2215, %v2121
        %2251 = vst.msk [vmem:[#allocation2 + $0x118] sm:$0xff] %vm2215, %v2122
        %2252 = vst.msk [vmem:[#allocation2 + $0x120] sm:$0xff] %vm2215, %v2123
        %2253 = vst.msk [vmem:[#allocation2 + $0x128] sm:$0xff] %vm2215, %v2124
        %2254 = vst.msk [vmem:[#allocation2 + $0x130] sm:$0xff] %vm2215, %v2125
        %2255 = vst.msk [vmem:[#allocation2 + $0x138] sm:$0xff] %vm2215, %v2126
        %2256 = vst.msk [vmem:[#allocation2 + $0x140] sm:$0xff] %vm2215, %v2127
        %2257 = vst.msk [vmem:[#allocation2 + $0x148] sm:$0xff] %vm2215, %v2128
        %2258 = vst.msk [vmem:[#allocation2 + $0x150] sm:$0xff] %vm2215, %v2129
        %2259 = vst.msk [vmem:[#allocation2 + $0x158] sm:$0xff] %vm2215, %v2130
        %2260 = vst.msk [vmem:[#allocation2 + $0x160] sm:$0xff] %vm2215, %v2131
        %2261 = vst.msk [vmem:[#allocation2 + $0x168] sm:$0xff] %vm2215, %v2132
        %2262 = vst.msk [vmem:[#allocation2 + $0x170] sm:$0xff] %vm2215, %v2133
        %2263 = vst.msk [vmem:[#allocation2 + $0x178] sm:$0xff] %vm2215, %v2134
        %2264 = vst.msk [vmem:[#allocation2 + $0x180] sm:$0xff] %vm2215, %v2135
        %2265 = vst.msk [vmem:[#allocation2 + $0x188] sm:$0xff] %vm2215, %v2136
        %2266 = vst.msk [vmem:[#allocation2 + $0x190] sm:$0xff] %vm2215, %v2137
        %2267 = vst.msk [vmem:[#allocation2 + $0x198] sm:$0xff] %vm2215, %v2138
        %2268 = vst.msk [vmem:[#allocation2 + $0x1a0] sm:$0xff] %vm2215, %v2139
        %2269 = vst.msk [vmem:[#allocation2 + $0x1a8] sm:$0xff] %vm2215, %v2140
        %2270 = vst.msk [vmem:[#allocation2 + $0x1b0] sm:$0xff] %vm2215, %v2141
        %2271 = vst.msk [vmem:[#allocation2 + $0x1b8] sm:$0xff] %vm2215, %v2142
        %2272 = vst.msk [vmem:[#allocation2 + $0x1c0] sm:$0xff] %vm2215, %v2143
        %2273 = vst.msk [vmem:[#allocation2 + $0x1c8] sm:$0xff] %vm2215, %v2144
        %2274 = vst.msk [vmem:[#allocation2 + $0x1d0] sm:$0xff] %vm2215, %v2145
        %2275 = vst.msk [vmem:[#allocation2 + $0x1d8] sm:$0xff] %vm2215, %v2146
        %2276 = vst.msk [vmem:[#allocation2 + $0x1e0] sm:$0xff] %vm2215, %v2147
        %2277 = vst.msk [vmem:[#allocation2 + $0x1e8] sm:$0xff] %vm2215, %v2148
        %2278 = vst.msk [vmem:[#allocation2 + $0x1f0] sm:$0xff] %vm2215, %v2149
        %2279 = vst.msk [vmem:[#allocation2 + $0x1f8] sm:$0xff] %vm2215, %v2150
        %2280 = vst.msk [vmem:[#allocation2 + $0x200] sm:$0xff] %vm2215, %v2151
        %2281 = vst.msk [vmem:[#allocation2 + $0x208] sm:$0xff] %vm2215, %v2152
        %2282 = vst.msk [vmem:[#allocation2 + $0x210] sm:$0xff] %vm2215, %v2153
        %2283 = vst.msk [vmem:[#allocation2 + $0x218] sm:$0xff] %vm2215, %v2154
        %2284 = vst.msk [vmem:[#allocation2 + $0x220] sm:$0xff] %vm2215, %v2155
        %2285 = vst.msk [vmem:[#allocation2 + $0x228] sm:$0xff] %vm2215, %v2156
        %2286 = vst.msk [vmem:[#allocation2 + $0x230] sm:$0xff] %vm2215, %v2157
        %2287 = vst.msk [vmem:[#allocation2 + $0x238] sm:$0xff] %vm2215, %v2158
        %2288 = vst.msk [vmem:[#allocation2 + $0x240] sm:$0xff] %vm2215, %v2159
        %2289 = vst.msk [vmem:[#allocation2 + $0x248] sm:$0xff] %vm2215, %v2160
        %2290 = vst.msk [vmem:[#allocation2 + $0x250] sm:$0xff] %vm2215, %v2161
        %2291 = vst.msk [vmem:[#allocation2 + $0x258] sm:$0xff] %vm2215, %v2162
        %2292 = vst.msk [vmem:[#allocation2 + $0x260] sm:$0xff] %vm2215, %v2163
        %2293 = vst.msk [vmem:[#allocation2 + $0x268] sm:$0xff] %vm2215, %v2164
        %2294 = vst.msk [vmem:[#allocation2 + $0x270] sm:$0xff] %vm2215, %v2165
        %2295 = vst.msk [vmem:[#allocation2 + $0x278] sm:$0xff] %vm2215, %v2166
        %2296 = vst.msk [vmem:[#allocation2 + $0x280] sm:$0xff] %vm2215, %v2167
        %2297 = vst.msk [vmem:[#allocation2 + $0x288] sm:$0xff] %vm2215, %v2168
        %2298 = vst.msk [vmem:[#allocation2 + $0x290] sm:$0xff] %vm2215, %v2169
        %2299 = vst.msk [vmem:[#allocation2 + $0x298] sm:$0xff] %vm2215, %v2170
        %2300 = vst.msk [vmem:[#allocation2 + $0x2a0] sm:$0xff] %vm2215, %v2171
        %2301 = vst.msk [vmem:[#allocation2 + $0x2a8] sm:$0xff] %vm2215, %v2172
        %2302 = vst.msk [vmem:[#allocation2 + $0x2b0] sm:$0xff] %vm2215, %v2173
        %2303 = vst.msk [vmem:[#allocation2 + $0x2b8] sm:$0xff] %vm2215, %v2174
        %2304 = vst.msk [vmem:[#allocation2 + $0x2c0] sm:$0xff] %vm2215, %v2175
        %2305 = vst.msk [vmem:[#allocation2 + $0x2c8] sm:$0xff] %vm2215, %v2176
        %2306 = vst.msk [vmem:[#allocation2 + $0x2d0] sm:$0xff] %vm2215, %v2177
        %2307 = vst.msk [vmem:[#allocation2 + $0x2d8] sm:$0xff] %vm2215, %v2178
        %2308 = vst.msk [vmem:[#allocation2 + $0x2e0] sm:$0xff] %vm2215, %v2179
        %2309 = vst.msk [vmem:[#allocation2 + $0x2e8] sm:$0xff] %vm2215, %v2180
        %2310 = vst.msk [vmem:[#allocation2 + $0x2f0] sm:$0xff] %vm2215, %v2181
        %2311 = vst.msk [vmem:[#allocation2 + $0x2f8] sm:$0xff] %vm2215, %v2182
        %2312 = vst.msk [vmem:[#allocation2 + $0x300] sm:$0xff] %vm2215, %v2183
        %2313 = vst.msk [vmem:[#allocation2 + $0x308] sm:$0xff] %vm2215, %v2184
        %2314 = vst.msk [vmem:[#allocation2 + $0x310] sm:$0xff] %vm2215, %v2185
        %2315 = vst.msk [vmem:[#allocation2 + $0x318] sm:$0xff] %vm2215, %v2186
        %2316 = vst.msk [vmem:[#allocation2 + $0x320] sm:$0xff] %vm2215, %v2187
        %2317 = vst.msk [vmem:[#allocation2 + $0x328] sm:$0xff] %vm2215, %v2188
        %2318 = vst.msk [vmem:[#allocation2 + $0x330] sm:$0xff] %vm2215, %v2189
        %2319 = vst.msk [vmem:[#allocation2 + $0x338] sm:$0xff] %vm2215, %v2190
        %2320 = vst.msk [vmem:[#allocation2 + $0x340] sm:$0xff] %vm2215, %v2191
        %2321 = vst.msk [vmem:[#allocation2 + $0x348] sm:$0xff] %vm2215, %v2192
        %2322 = vst.msk [vmem:[#allocation2 + $0x350] sm:$0xff] %vm2215, %v2193
        %2323 = vst.msk [vmem:[#allocation2 + $0x358] sm:$0xff] %vm2215, %v2194
        %2324 = vst.msk [vmem:[#allocation2 + $0x360] sm:$0xff] %vm2215, %v2195
        %2325 = vst.msk [vmem:[#allocation2 + $0x368] sm:$0xff] %vm2215, %v2196
        %2326 = vst.msk [vmem:[#allocation2 + $0x370] sm:$0xff] %vm2215, %v2197
        %2327 = vst.msk [vmem:[#allocation2 + $0x378] sm:$0xff] %vm2215, %v2198
        %2328 = vst.msk [vmem:[#allocation2 + $0x380] sm:$0xff] %vm2215, %v2199
        %2329 = vst.msk [vmem:[#allocation2 + $0x388] sm:$0xff] %vm2215, %v2200
        %2330 = vst.msk [vmem:[#allocation2 + $0x390] sm:$0xff] %vm2215, %v2201
        %2331 = vst.msk [vmem:[#allocation2 + $0x398] sm:$0xff] %vm2215, %v2202
        %2332 = vst.msk [vmem:[#allocation2 + $0x3a0] sm:$0xff] %vm2215, %v2203
        %2333 = vst.msk [vmem:[#allocation2 + $0x3a8] sm:$0xff] %vm2215, %v2204
        %2334 = vst.msk [vmem:[#allocation2 + $0x3b0] sm:$0xff] %vm2215, %v2205
        %2335 = vst.msk [vmem:[#allocation2 + $0x3b8] sm:$0xff] %vm2215, %v2206
        %2336 = vst.msk [vmem:[#allocation2 + $0x3c0] sm:$0xff] %vm2215, %v2207
        %2337 = vst.msk [vmem:[#allocation2 + $0x3c8] sm:$0xff] %vm2215, %v2208
        %2338 = vst.msk [vmem:[#allocation2 + $0x3d0] sm:$0xff] %vm2215, %v2209
        %2339 = vst.msk [vmem:[#allocation2 + $0x3d8] sm:$0xff] %vm2215, %v2210
        %2340 = vst.msk [vmem:[#allocation2 + $0x3e0] sm:$0xff] %vm2215, %v2211
        %2341 = vst.msk [vmem:[#allocation2 + $0x3e8] sm:$0xff] %vm2215, %v2212
        %2342 = vst.msk [vmem:[#allocation2 + $0x3f0] sm:$0xff] %vm2215, %v2213
        %2343 = vst.msk [vmem:[#allocation2 + $0x3f8] sm:$0xff] %vm2215, %v2214
        // Predicated region
        $region41: #{conv2d.1} parent=35 // pred_check
          %p2344 = pneg %p301
        $region42: #{conv2d.1} parent=35 // pred_check_branch
          %2346 = sbr.rel (%p2344) target = $region44
        $region43: #{conv2d.1} parent=35 // pred_region
          %v2347 = vld [vmem:[#allocation2] sm:$0xff]
          %v2348 = vld [vmem:[#allocation2 + $0x8] sm:$0xff]
          %v2349 = vld [vmem:[#allocation2 + $0x10] sm:$0xff]
          %v2350 = vld [vmem:[#allocation2 + $0x18] sm:$0xff]
          %v2351 = vld [vmem:[#allocation2 + $0x20] sm:$0xff]
          %v2352 = vld [vmem:[#allocation2 + $0x28] sm:$0xff]
          %v2353 = vld [vmem:[#allocation2 + $0x30] sm:$0xff]
          %v2354 = vld [vmem:[#allocation2 + $0x38] sm:$0xff]
          %v2355 = vld [vmem:[#allocation2 + $0x40] sm:$0xff]
          %v2356 = vld [vmem:[#allocation2 + $0x48] sm:$0xff]
          %v2357 = vld [vmem:[#allocation2 + $0x50] sm:$0xff]
          %v2358 = vld [vmem:[#allocation2 + $0x58] sm:$0xff]
          %v2359 = vld [vmem:[#allocation2 + $0x60] sm:$0xff]
          %v2360 = vld [vmem:[#allocation2 + $0x68] sm:$0xff]
          %v2361 = vld [vmem:[#allocation2 + $0x70] sm:$0xff]
          %v2362 = vld [vmem:[#allocation2 + $0x78] sm:$0xff]
          %v2363 = vld [vmem:[#allocation2 + $0x80] sm:$0xff]
          %v2364 = vld [vmem:[#allocation2 + $0x88] sm:$0xff]
          %v2365 = vld [vmem:[#allocation2 + $0x90] sm:$0xff]
          %v2366 = vld [vmem:[#allocation2 + $0x98] sm:$0xff]
          %v2367 = vld [vmem:[#allocation2 + $0xa0] sm:$0xff]
          %v2368 = vld [vmem:[#allocation2 + $0xa8] sm:$0xff]
          %v2369 = vld [vmem:[#allocation2 + $0xb0] sm:$0xff]
          %v2370 = vld [vmem:[#allocation2 + $0xb8] sm:$0xff]
          %v2371 = vld [vmem:[#allocation2 + $0xc0] sm:$0xff]
          %v2372 = vld [vmem:[#allocation2 + $0xc8] sm:$0xff]
          %v2373 = vld [vmem:[#allocation2 + $0xd0] sm:$0xff]
          %v2374 = vld [vmem:[#allocation2 + $0xd8] sm:$0xff]
          %v2375 = vld [vmem:[#allocation2 + $0xe0] sm:$0xff]
          %v2376 = vld [vmem:[#allocation2 + $0xe8] sm:$0xff]
          %v2377 = vld [vmem:[#allocation2 + $0xf0] sm:$0xff]
          %v2378 = vld [vmem:[#allocation2 + $0xf8] sm:$0xff]
          %v2379 = vld [vmem:[#allocation2 + $0x100] sm:$0xff]
          %v2380 = vld [vmem:[#allocation2 + $0x108] sm:$0xff]
          %v2381 = vld [vmem:[#allocation2 + $0x110] sm:$0xff]
          %v2382 = vld [vmem:[#allocation2 + $0x118] sm:$0xff]
          %v2383 = vld [vmem:[#allocation2 + $0x120] sm:$0xff]
          %v2384 = vld [vmem:[#allocation2 + $0x128] sm:$0xff]
          %v2385 = vld [vmem:[#allocation2 + $0x130] sm:$0xff]
          %v2386 = vld [vmem:[#allocation2 + $0x138] sm:$0xff]
          %v2387 = vld [vmem:[#allocation2 + $0x140] sm:$0xff]
          %v2388 = vld [vmem:[#allocation2 + $0x148] sm:$0xff]
          %v2389 = vld [vmem:[#allocation2 + $0x150] sm:$0xff]
          %v2390 = vld [vmem:[#allocation2 + $0x158] sm:$0xff]
          %v2391 = vld [vmem:[#allocation2 + $0x160] sm:$0xff]
          %v2392 = vld [vmem:[#allocation2 + $0x168] sm:$0xff]
          %v2393 = vld [vmem:[#allocation2 + $0x170] sm:$0xff]
          %v2394 = vld [vmem:[#allocation2 + $0x178] sm:$0xff]
          %v2395 = vld [vmem:[#allocation2 + $0x180] sm:$0xff]
          %v2396 = vld [vmem:[#allocation2 + $0x188] sm:$0xff]
          %v2397 = vld [vmem:[#allocation2 + $0x190] sm:$0xff]
          %v2398 = vld [vmem:[#allocation2 + $0x198] sm:$0xff]
          %v2399 = vld [vmem:[#allocation2 + $0x1a0] sm:$0xff]
          %v2400 = vld [vmem:[#allocation2 + $0x1a8] sm:$0xff]
          %v2401 = vld [vmem:[#allocation2 + $0x1b0] sm:$0xff]
          %v2402 = vld [vmem:[#allocation2 + $0x1b8] sm:$0xff]
          %v2403 = vld [vmem:[#allocation2 + $0x1c0] sm:$0xff]
          %v2404 = vld [vmem:[#allocation2 + $0x1c8] sm:$0xff]
          %v2405 = vld [vmem:[#allocation2 + $0x1d0] sm:$0xff]
          %v2406 = vld [vmem:[#allocation2 + $0x1d8] sm:$0xff]
          %v2407 = vld [vmem:[#allocation2 + $0x1e0] sm:$0xff]
          %v2408 = vld [vmem:[#allocation2 + $0x1e8] sm:$0xff]
          %v2409 = vld [vmem:[#allocation2 + $0x1f0] sm:$0xff]
          %v2410 = vld [vmem:[#allocation2 + $0x1f8] sm:$0xff]
          %v2411 = vld [vmem:[#allocation2 + $0x200] sm:$0xff]
          %v2412 = vld [vmem:[#allocation2 + $0x208] sm:$0xff]
          %v2413 = vld [vmem:[#allocation2 + $0x210] sm:$0xff]
          %v2414 = vld [vmem:[#allocation2 + $0x218] sm:$0xff]
          %v2415 = vld [vmem:[#allocation2 + $0x220] sm:$0xff]
          %v2416 = vld [vmem:[#allocation2 + $0x228] sm:$0xff]
          %v2417 = vld [vmem:[#allocation2 + $0x230] sm:$0xff]
          %v2418 = vld [vmem:[#allocation2 + $0x238] sm:$0xff]
          %v2419 = vld [vmem:[#allocation2 + $0x240] sm:$0xff]
          %v2420 = vld [vmem:[#allocation2 + $0x248] sm:$0xff]
          %v2421 = vld [vmem:[#allocation2 + $0x250] sm:$0xff]
          %v2422 = vld [vmem:[#allocation2 + $0x258] sm:$0xff]
          %v2423 = vld [vmem:[#allocation2 + $0x260] sm:$0xff]
          %v2424 = vld [vmem:[#allocation2 + $0x268] sm:$0xff]
          %v2425 = vld [vmem:[#allocation2 + $0x270] sm:$0xff]
          %v2426 = vld [vmem:[#allocation2 + $0x278] sm:$0xff]
          %v2427 = vld [vmem:[#allocation2 + $0x280] sm:$0xff]
          %v2428 = vld [vmem:[#allocation2 + $0x288] sm:$0xff]
          %v2429 = vld [vmem:[#allocation2 + $0x290] sm:$0xff]
          %v2430 = vld [vmem:[#allocation2 + $0x298] sm:$0xff]
          %v2431 = vld [vmem:[#allocation2 + $0x2a0] sm:$0xff]
          %v2432 = vld [vmem:[#allocation2 + $0x2a8] sm:$0xff]
          %v2433 = vld [vmem:[#allocation2 + $0x2b0] sm:$0xff]
          %v2434 = vld [vmem:[#allocation2 + $0x2b8] sm:$0xff]
          %v2435 = vld [vmem:[#allocation2 + $0x2c0] sm:$0xff]
          %v2436 = vld [vmem:[#allocation2 + $0x2c8] sm:$0xff]
          %v2437 = vld [vmem:[#allocation2 + $0x2d0] sm:$0xff]
          %v2438 = vld [vmem:[#allocation2 + $0x2d8] sm:$0xff]
          %v2439 = vld [vmem:[#allocation2 + $0x2e0] sm:$0xff]
          %v2440 = vld [vmem:[#allocation2 + $0x2e8] sm:$0xff]
          %v2441 = vld [vmem:[#allocation2 + $0x2f0] sm:$0xff]
          %v2442 = vld [vmem:[#allocation2 + $0x2f8] sm:$0xff]
          %v2443 = vld [vmem:[#allocation2 + $0x300] sm:$0xff]
          %v2444 = vld [vmem:[#allocation2 + $0x308] sm:$0xff]
          %v2445 = vld [vmem:[#allocation2 + $0x310] sm:$0xff]
          %v2446 = vld [vmem:[#allocation2 + $0x318] sm:$0xff]
          %v2447 = vld [vmem:[#allocation2 + $0x320] sm:$0xff]
          %v2448 = vld [vmem:[#allocation2 + $0x328] sm:$0xff]
          %v2449 = vld [vmem:[#allocation2 + $0x330] sm:$0xff]
          %v2450 = vld [vmem:[#allocation2 + $0x338] sm:$0xff]
          %v2451 = vld [vmem:[#allocation2 + $0x340] sm:$0xff]
          %v2452 = vld [vmem:[#allocation2 + $0x348] sm:$0xff]
          %v2453 = vld [vmem:[#allocation2 + $0x350] sm:$0xff]
          %v2454 = vld [vmem:[#allocation2 + $0x358] sm:$0xff]
          %v2455 = vld [vmem:[#allocation2 + $0x360] sm:$0xff]
          %v2456 = vld [vmem:[#allocation2 + $0x368] sm:$0xff]
          %v2457 = vld [vmem:[#allocation2 + $0x370] sm:$0xff]
          %v2458 = vld [vmem:[#allocation2 + $0x378] sm:$0xff]
          %v2459 = vld [vmem:[#allocation2 + $0x380] sm:$0xff]
          %v2460 = vld [vmem:[#allocation2 + $0x388] sm:$0xff]
          %v2461 = vld [vmem:[#allocation2 + $0x390] sm:$0xff]
          %v2462 = vld [vmem:[#allocation2 + $0x398] sm:$0xff]
          %v2463 = vld [vmem:[#allocation2 + $0x3a0] sm:$0xff]
          %v2464 = vld [vmem:[#allocation2 + $0x3a8] sm:$0xff]
          %v2465 = vld [vmem:[#allocation2 + $0x3b0] sm:$0xff]
          %v2466 = vld [vmem:[#allocation2 + $0x3b8] sm:$0xff]
          %v2467 = vld [vmem:[#allocation2 + $0x3c0] sm:$0xff]
          %v2468 = vld [vmem:[#allocation2 + $0x3c8] sm:$0xff]
          %v2469 = vld [vmem:[#allocation2 + $0x3d0] sm:$0xff]
          %v2470 = vld [vmem:[#allocation2 + $0x3d8] sm:$0xff]
          %v2471 = vld [vmem:[#allocation2 + $0x3e0] sm:$0xff]
          %v2472 = vld [vmem:[#allocation2 + $0x3e8] sm:$0xff]
          %v2473 = vld [vmem:[#allocation2 + $0x3f0] sm:$0xff]
          %v2474 = vld [vmem:[#allocation2 + $0x3f8] sm:$0xff]
          %v2475 = vld [vmem:[%s295] sm:$0x1]
          %v2477 = vlaneseq
          %v2478 = vshrl.u32 %v2477, 7
          %v2479 = vsub.s32 0, %v2478
          %v2480 = vrot.slane %v2475, %v2479
          %v2482 = vmul.f32 %v2347, %v2480
          %v2483 = vmul.f32 %v2348, %v2480
          %v2484 = vmul.f32 %v2349, %v2480
          %v2485 = vmul.f32 %v2350, %v2480
          %v2486 = vmul.f32 %v2351, %v2480
          %v2487 = vmul.f32 %v2352, %v2480
          %v2488 = vmul.f32 %v2353, %v2480
          %v2489 = vmul.f32 %v2354, %v2480
          %v2490 = vmul.f32 %v2355, %v2480
          %v2491 = vmul.f32 %v2356, %v2480
          %v2492 = vmul.f32 %v2357, %v2480
          %v2493 = vmul.f32 %v2358, %v2480
          %v2494 = vmul.f32 %v2359, %v2480
          %v2495 = vmul.f32 %v2360, %v2480
          %v2496 = vmul.f32 %v2361, %v2480
          %v2497 = vmul.f32 %v2362, %v2480
          %v2498 = vmul.f32 %v2363, %v2480
          %v2499 = vmul.f32 %v2364, %v2480
          %v2500 = vmul.f32 %v2365, %v2480
          %v2501 = vmul.f32 %v2366, %v2480
          %v2502 = vmul.f32 %v2367, %v2480
          %v2503 = vmul.f32 %v2368, %v2480
          %v2504 = vmul.f32 %v2369, %v2480
          %v2505 = vmul.f32 %v2370, %v2480
          %v2506 = vmul.f32 %v2371, %v2480
          %v2507 = vmul.f32 %v2372, %v2480
          %v2508 = vmul.f32 %v2373, %v2480
          %v2509 = vmul.f32 %v2374, %v2480
          %v2510 = vmul.f32 %v2375, %v2480
          %v2511 = vmul.f32 %v2376, %v2480
          %v2512 = vmul.f32 %v2377, %v2480
          %v2513 = vmul.f32 %v2378, %v2480
          %v2514 = vmul.f32 %v2379, %v2480
          %v2515 = vmul.f32 %v2380, %v2480
          %v2516 = vmul.f32 %v2381, %v2480
          %v2517 = vmul.f32 %v2382, %v2480
          %v2518 = vmul.f32 %v2383, %v2480
          %v2519 = vmul.f32 %v2384, %v2480
          %v2520 = vmul.f32 %v2385, %v2480
          %v2521 = vmul.f32 %v2386, %v2480
          %v2522 = vmul.f32 %v2387, %v2480
          %v2523 = vmul.f32 %v2388, %v2480
          %v2524 = vmul.f32 %v2389, %v2480
          %v2525 = vmul.f32 %v2390, %v2480
          %v2526 = vmul.f32 %v2391, %v2480
          %v2527 = vmul.f32 %v2392, %v2480
          %v2528 = vmul.f32 %v2393, %v2480
          %v2529 = vmul.f32 %v2394, %v2480
          %v2530 = vmul.f32 %v2395, %v2480
          %v2531 = vmul.f32 %v2396, %v2480
          %v2532 = vmul.f32 %v2397, %v2480
          %v2533 = vmul.f32 %v2398, %v2480
          %v2534 = vmul.f32 %v2399, %v2480
          %v2535 = vmul.f32 %v2400, %v2480
          %v2536 = vmul.f32 %v2401, %v2480
          %v2537 = vmul.f32 %v2402, %v2480
          %v2538 = vmul.f32 %v2403, %v2480
          %v2539 = vmul.f32 %v2404, %v2480
          %v2540 = vmul.f32 %v2405, %v2480
          %v2541 = vmul.f32 %v2406, %v2480
          %v2542 = vmul.f32 %v2407, %v2480
          %v2543 = vmul.f32 %v2408, %v2480
          %v2544 = vmul.f32 %v2409, %v2480
          %v2545 = vmul.f32 %v2410, %v2480
          %v2546 = vmul.f32 %v2411, %v2480
          %v2547 = vmul.f32 %v2412, %v2480
          %v2548 = vmul.f32 %v2413, %v2480
          %v2549 = vmul.f32 %v2414, %v2480
          %v2550 = vmul.f32 %v2415, %v2480
          %v2551 = vmul.f32 %v2416, %v2480
          %v2552 = vmul.f32 %v2417, %v2480
          %v2553 = vmul.f32 %v2418, %v2480
          %v2554 = vmul.f32 %v2419, %v2480
          %v2555 = vmul.f32 %v2420, %v2480
          %v2556 = vmul.f32 %v2421, %v2480
          %v2557 = vmul.f32 %v2422, %v2480
          %v2558 = vmul.f32 %v2423, %v2480
          %v2559 = vmul.f32 %v2424, %v2480
          %v2560 = vmul.f32 %v2425, %v2480
          %v2561 = vmul.f32 %v2426, %v2480
          %v2562 = vmul.f32 %v2427, %v2480
          %v2563 = vmul.f32 %v2428, %v2480
          %v2564 = vmul.f32 %v2429, %v2480
          %v2565 = vmul.f32 %v2430, %v2480
          %v2566 = vmul.f32 %v2431, %v2480
          %v2567 = vmul.f32 %v2432, %v2480
          %v2568 = vmul.f32 %v2433, %v2480
          %v2569 = vmul.f32 %v2434, %v2480
          %v2570 = vmul.f32 %v2435, %v2480
          %v2571 = vmul.f32 %v2436, %v2480
          %v2572 = vmul.f32 %v2437, %v2480
          %v2573 = vmul.f32 %v2438, %v2480
          %v2574 = vmul.f32 %v2439, %v2480
          %v2575 = vmul.f32 %v2440, %v2480
          %v2576 = vmul.f32 %v2441, %v2480
          %v2577 = vmul.f32 %v2442, %v2480
          %v2578 = vmul.f32 %v2443, %v2480
          %v2579 = vmul.f32 %v2444, %v2480
          %v2580 = vmul.f32 %v2445, %v2480
          %v2581 = vmul.f32 %v2446, %v2480
          %v2582 = vmul.f32 %v2447, %v2480
          %v2583 = vmul.f32 %v2448, %v2480
          %v2584 = vmul.f32 %v2449, %v2480
          %v2585 = vmul.f32 %v2450, %v2480
          %v2586 = vmul.f32 %v2451, %v2480
          %v2587 = vmul.f32 %v2452, %v2480
          %v2588 = vmul.f32 %v2453, %v2480
          %v2589 = vmul.f32 %v2454, %v2480
          %v2590 = vmul.f32 %v2455, %v2480
          %v2591 = vmul.f32 %v2456, %v2480
          %v2592 = vmul.f32 %v2457, %v2480
          %v2593 = vmul.f32 %v2458, %v2480
          %v2594 = vmul.f32 %v2459, %v2480
          %v2595 = vmul.f32 %v2460, %v2480
          %v2596 = vmul.f32 %v2461, %v2480
          %v2597 = vmul.f32 %v2462, %v2480
          %v2598 = vmul.f32 %v2463, %v2480
          %v2599 = vmul.f32 %v2464, %v2480
          %v2600 = vmul.f32 %v2465, %v2480
          %v2601 = vmul.f32 %v2466, %v2480
          %v2602 = vmul.f32 %v2467, %v2480
          %v2603 = vmul.f32 %v2468, %v2480
          %v2604 = vmul.f32 %v2469, %v2480
          %v2605 = vmul.f32 %v2470, %v2480
          %v2606 = vmul.f32 %v2471, %v2480
          %v2607 = vmul.f32 %v2472, %v2480
          %v2608 = vmul.f32 %v2473, %v2480
          %v2609 = vmul.f32 %v2474, %v2480
          %v2610 = vld [vmem:[%s298] sm:$0x1]
          %v2612 = vlaneseq
          %v2613 = vshrl.u32 %v2612, 7
          %v2614 = vsub.s32 0, %v2613
          %v2615 = vrot.slane %v2610, %v2614
          %v2617 = vadd.f32 %v2482, %v2615
          %v2618 = vadd.f32 %v2483, %v2615
          %v2619 = vadd.f32 %v2484, %v2615
          %v2620 = vadd.f32 %v2485, %v2615
          %v2621 = vadd.f32 %v2486, %v2615
          %v2622 = vadd.f32 %v2487, %v2615
          %v2623 = vadd.f32 %v2488, %v2615
          %v2624 = vadd.f32 %v2489, %v2615
          %v2625 = vadd.f32 %v2490, %v2615
          %v2626 = vadd.f32 %v2491, %v2615
          %v2627 = vadd.f32 %v2492, %v2615
          %v2628 = vadd.f32 %v2493, %v2615
          %v2629 = vadd.f32 %v2494, %v2615
          %v2630 = vadd.f32 %v2495, %v2615
          %v2631 = vadd.f32 %v2496, %v2615
          %v2632 = vadd.f32 %v2497, %v2615
          %v2633 = vadd.f32 %v2498, %v2615
          %v2634 = vadd.f32 %v2499, %v2615
          %v2635 = vadd.f32 %v2500, %v2615
          %v2636 = vadd.f32 %v2501, %v2615
          %v2637 = vadd.f32 %v2502, %v2615
          %v2638 = vadd.f32 %v2503, %v2615
          %v2639 = vadd.f32 %v2504, %v2615
          %v2640 = vadd.f32 %v2505, %v2615
          %v2641 = vadd.f32 %v2506, %v2615
          %v2642 = vadd.f32 %v2507, %v2615
          %v2643 = vadd.f32 %v2508, %v2615
          %v2644 = vadd.f32 %v2509, %v2615
          %v2645 = vadd.f32 %v2510, %v2615
          %v2646 = vadd.f32 %v2511, %v2615
          %v2647 = vadd.f32 %v2512, %v2615
          %v2648 = vadd.f32 %v2513, %v2615
          %v2649 = vadd.f32 %v2514, %v2615
          %v2650 = vadd.f32 %v2515, %v2615
          %v2651 = vadd.f32 %v2516, %v2615
          %v2652 = vadd.f32 %v2517, %v2615
          %v2653 = vadd.f32 %v2518, %v2615
          %v2654 = vadd.f32 %v2519, %v2615
          %v2655 = vadd.f32 %v2520, %v2615
          %v2656 = vadd.f32 %v2521, %v2615
          %v2657 = vadd.f32 %v2522, %v2615
          %v2658 = vadd.f32 %v2523, %v2615
          %v2659 = vadd.f32 %v2524, %v2615
          %v2660 = vadd.f32 %v2525, %v2615
          %v2661 = vadd.f32 %v2526, %v2615
          %v2662 = vadd.f32 %v2527, %v2615
          %v2663 = vadd.f32 %v2528, %v2615
          %v2664 = vadd.f32 %v2529, %v2615
          %v2665 = vadd.f32 %v2530, %v2615
          %v2666 = vadd.f32 %v2531, %v2615
          %v2667 = vadd.f32 %v2532, %v2615
          %v2668 = vadd.f32 %v2533, %v2615
          %v2669 = vadd.f32 %v2534, %v2615
          %v2670 = vadd.f32 %v2535, %v2615
          %v2671 = vadd.f32 %v2536, %v2615
          %v2672 = vadd.f32 %v2537, %v2615
          %v2673 = vadd.f32 %v2538, %v2615
          %v2674 = vadd.f32 %v2539, %v2615
          %v2675 = vadd.f32 %v2540, %v2615
          %v2676 = vadd.f32 %v2541, %v2615
          %v2677 = vadd.f32 %v2542, %v2615
          %v2678 = vadd.f32 %v2543, %v2615
          %v2679 = vadd.f32 %v2544, %v2615
          %v2680 = vadd.f32 %v2545, %v2615
          %v2681 = vadd.f32 %v2546, %v2615
          %v2682 = vadd.f32 %v2547, %v2615
          %v2683 = vadd.f32 %v2548, %v2615
          %v2684 = vadd.f32 %v2549, %v2615
          %v2685 = vadd.f32 %v2550, %v2615
          %v2686 = vadd.f32 %v2551, %v2615
          %v2687 = vadd.f32 %v2552, %v2615
          %v2688 = vadd.f32 %v2553, %v2615
          %v2689 = vadd.f32 %v2554, %v2615
          %v2690 = vadd.f32 %v2555, %v2615
          %v2691 = vadd.f32 %v2556, %v2615
          %v2692 = vadd.f32 %v2557, %v2615
          %v2693 = vadd.f32 %v2558, %v2615
          %v2694 = vadd.f32 %v2559, %v2615
          %v2695 = vadd.f32 %v2560, %v2615
          %v2696 = vadd.f32 %v2561, %v2615
          %v2697 = vadd.f32 %v2562, %v2615
          %v2698 = vadd.f32 %v2563, %v2615
          %v2699 = vadd.f32 %v2564, %v2615
          %v2700 = vadd.f32 %v2565, %v2615
          %v2701 = vadd.f32 %v2566, %v2615
          %v2702 = vadd.f32 %v2567, %v2615
          %v2703 = vadd.f32 %v2568, %v2615
          %v2704 = vadd.f32 %v2569, %v2615
          %v2705 = vadd.f32 %v2570, %v2615
          %v2706 = vadd.f32 %v2571, %v2615
          %v2707 = vadd.f32 %v2572, %v2615
          %v2708 = vadd.f32 %v2573, %v2615
          %v2709 = vadd.f32 %v2574, %v2615
          %v2710 = vadd.f32 %v2575, %v2615
          %v2711 = vadd.f32 %v2576, %v2615
          %v2712 = vadd.f32 %v2577, %v2615
          %v2713 = vadd.f32 %v2578, %v2615
          %v2714 = vadd.f32 %v2579, %v2615
          %v2715 = vadd.f32 %v2580, %v2615
          %v2716 = vadd.f32 %v2581, %v2615
          %v2717 = vadd.f32 %v2582, %v2615
          %v2718 = vadd.f32 %v2583, %v2615
          %v2719 = vadd.f32 %v2584, %v2615
          %v2720 = vadd.f32 %v2585, %v2615
          %v2721 = vadd.f32 %v2586, %v2615
          %v2722 = vadd.f32 %v2587, %v2615
          %v2723 = vadd.f32 %v2588, %v2615
          %v2724 = vadd.f32 %v2589, %v2615
          %v2725 = vadd.f32 %v2590, %v2615
          %v2726 = vadd.f32 %v2591, %v2615
          %v2727 = vadd.f32 %v2592, %v2615
          %v2728 = vadd.f32 %v2593, %v2615
          %v2729 = vadd.f32 %v2594, %v2615
          %v2730 = vadd.f32 %v2595, %v2615
          %v2731 = vadd.f32 %v2596, %v2615
          %v2732 = vadd.f32 %v2597, %v2615
          %v2733 = vadd.f32 %v2598, %v2615
          %v2734 = vadd.f32 %v2599, %v2615
          %v2735 = vadd.f32 %v2600, %v2615
          %v2736 = vadd.f32 %v2601, %v2615
          %v2737 = vadd.f32 %v2602, %v2615
          %v2738 = vadd.f32 %v2603, %v2615
          %v2739 = vadd.f32 %v2604, %v2615
          %v2740 = vadd.f32 %v2605, %v2615
          %v2741 = vadd.f32 %v2606, %v2615
          %v2742 = vadd.f32 %v2607, %v2615
          %v2743 = vadd.f32 %v2608, %v2615
          %v2744 = vadd.f32 %v2609, %v2615
          %v2745 = vmax.f32 %v2617, 0.0
          %v2746 = vmax.f32 %v2618, 0.0
          %v2747 = vmax.f32 %v2619, 0.0
          %v2748 = vmax.f32 %v2620, 0.0
          %v2749 = vmax.f32 %v2621, 0.0
          %v2750 = vmax.f32 %v2622, 0.0
          %v2751 = vmax.f32 %v2623, 0.0
          %v2752 = vmax.f32 %v2624, 0.0
          %v2753 = vmax.f32 %v2625, 0.0
          %v2754 = vmax.f32 %v2626, 0.0
          %v2755 = vmax.f32 %v2627, 0.0
          %v2756 = vmax.f32 %v2628, 0.0
          %v2757 = vmax.f32 %v2629, 0.0
          %v2758 = vmax.f32 %v2630, 0.0
          %v2759 = vmax.f32 %v2631, 0.0
          %v2760 = vmax.f32 %v2632, 0.0
          %v2761 = vmax.f32 %v2633, 0.0
          %v2762 = vmax.f32 %v2634, 0.0
          %v2763 = vmax.f32 %v2635, 0.0
          %v2764 = vmax.f32 %v2636, 0.0
          %v2765 = vmax.f32 %v2637, 0.0
          %v2766 = vmax.f32 %v2638, 0.0
          %v2767 = vmax.f32 %v2639, 0.0
          %v2768 = vmax.f32 %v2640, 0.0
          %v2769 = vmax.f32 %v2641, 0.0
          %v2770 = vmax.f32 %v2642, 0.0
          %v2771 = vmax.f32 %v2643, 0.0
          %v2772 = vmax.f32 %v2644, 0.0
          %v2773 = vmax.f32 %v2645, 0.0
          %v2774 = vmax.f32 %v2646, 0.0
          %v2775 = vmax.f32 %v2647, 0.0
          %v2776 = vmax.f32 %v2648, 0.0
          %v2777 = vmax.f32 %v2649, 0.0
          %v2778 = vmax.f32 %v2650, 0.0
          %v2779 = vmax.f32 %v2651, 0.0
          %v2780 = vmax.f32 %v2652, 0.0
          %v2781 = vmax.f32 %v2653, 0.0
          %v2782 = vmax.f32 %v2654, 0.0
          %v2783 = vmax.f32 %v2655, 0.0
          %v2784 = vmax.f32 %v2656, 0.0
          %v2785 = vmax.f32 %v2657, 0.0
          %v2786 = vmax.f32 %v2658, 0.0
          %v2787 = vmax.f32 %v2659, 0.0
          %v2788 = vmax.f32 %v2660, 0.0
          %v2789 = vmax.f32 %v2661, 0.0
          %v2790 = vmax.f32 %v2662, 0.0
          %v2791 = vmax.f32 %v2663, 0.0
          %v2792 = vmax.f32 %v2664, 0.0
          %v2793 = vmax.f32 %v2665, 0.0
          %v2794 = vmax.f32 %v2666, 0.0
          %v2795 = vmax.f32 %v2667, 0.0
          %v2796 = vmax.f32 %v2668, 0.0
          %v2797 = vmax.f32 %v2669, 0.0
          %v2798 = vmax.f32 %v2670, 0.0
          %v2799 = vmax.f32 %v2671, 0.0
          %v2800 = vmax.f32 %v2672, 0.0
          %v2801 = vmax.f32 %v2673, 0.0
          %v2802 = vmax.f32 %v2674, 0.0
          %v2803 = vmax.f32 %v2675, 0.0
          %v2804 = vmax.f32 %v2676, 0.0
          %v2805 = vmax.f32 %v2677, 0.0
          %v2806 = vmax.f32 %v2678, 0.0
          %v2807 = vmax.f32 %v2679, 0.0
          %v2808 = vmax.f32 %v2680, 0.0
          %v2809 = vmax.f32 %v2681, 0.0
          %v2810 = vmax.f32 %v2682, 0.0
          %v2811 = vmax.f32 %v2683, 0.0
          %v2812 = vmax.f32 %v2684, 0.0
          %v2813 = vmax.f32 %v2685, 0.0
          %v2814 = vmax.f32 %v2686, 0.0
          %v2815 = vmax.f32 %v2687, 0.0
          %v2816 = vmax.f32 %v2688, 0.0
          %v2817 = vmax.f32 %v2689, 0.0
          %v2818 = vmax.f32 %v2690, 0.0
          %v2819 = vmax.f32 %v2691, 0.0
          %v2820 = vmax.f32 %v2692, 0.0
          %v2821 = vmax.f32 %v2693, 0.0
          %v2822 = vmax.f32 %v2694, 0.0
          %v2823 = vmax.f32 %v2695, 0.0
          %v2824 = vmax.f32 %v2696, 0.0
          %v2825 = vmax.f32 %v2697, 0.0
          %v2826 = vmax.f32 %v2698, 0.0
          %v2827 = vmax.f32 %v2699, 0.0
          %v2828 = vmax.f32 %v2700, 0.0
          %v2829 = vmax.f32 %v2701, 0.0
          %v2830 = vmax.f32 %v2702, 0.0
          %v2831 = vmax.f32 %v2703, 0.0
          %v2832 = vmax.f32 %v2704, 0.0
          %v2833 = vmax.f32 %v2705, 0.0
          %v2834 = vmax.f32 %v2706, 0.0
          %v2835 = vmax.f32 %v2707, 0.0
          %v2836 = vmax.f32 %v2708, 0.0
          %v2837 = vmax.f32 %v2709, 0.0
          %v2838 = vmax.f32 %v2710, 0.0
          %v2839 = vmax.f32 %v2711, 0.0
          %v2840 = vmax.f32 %v2712, 0.0
          %v2841 = vmax.f32 %v2713, 0.0
          %v2842 = vmax.f32 %v2714, 0.0
          %v2843 = vmax.f32 %v2715, 0.0
          %v2844 = vmax.f32 %v2716, 0.0
          %v2845 = vmax.f32 %v2717, 0.0
          %v2846 = vmax.f32 %v2718, 0.0
          %v2847 = vmax.f32 %v2719, 0.0
          %v2848 = vmax.f32 %v2720, 0.0
          %v2849 = vmax.f32 %v2721, 0.0
          %v2850 = vmax.f32 %v2722, 0.0
          %v2851 = vmax.f32 %v2723, 0.0
          %v2852 = vmax.f32 %v2724, 0.0
          %v2853 = vmax.f32 %v2725, 0.0
          %v2854 = vmax.f32 %v2726, 0.0
          %v2855 = vmax.f32 %v2727, 0.0
          %v2856 = vmax.f32 %v2728, 0.0
          %v2857 = vmax.f32 %v2729, 0.0
          %v2858 = vmax.f32 %v2730, 0.0
          %v2859 = vmax.f32 %v2731, 0.0
          %v2860 = vmax.f32 %v2732, 0.0
          %v2861 = vmax.f32 %v2733, 0.0
          %v2862 = vmax.f32 %v2734, 0.0
          %v2863 = vmax.f32 %v2735, 0.0
          %v2864 = vmax.f32 %v2736, 0.0
          %v2865 = vmax.f32 %v2737, 0.0
          %v2866 = vmax.f32 %v2738, 0.0
          %v2867 = vmax.f32 %v2739, 0.0
          %v2868 = vmax.f32 %v2740, 0.0
          %v2869 = vmax.f32 %v2741, 0.0
          %v2870 = vmax.f32 %v2742, 0.0
          %v2871 = vmax.f32 %v2743, 0.0
          %v2872 = vmax.f32 %v2744, 0.0
          %v2873 = vpack.c.bf16 %v2746, %v2745
          %v2874 = vpack.c.bf16 %v2748, %v2747
          %v2875 = vpack.c.bf16 %v2750, %v2749
          %v2876 = vpack.c.bf16 %v2752, %v2751
          %v2877 = vpack.c.bf16 %v2754, %v2753
          %v2878 = vpack.c.bf16 %v2756, %v2755
          %v2879 = vpack.c.bf16 %v2758, %v2757
          %v2880 = vpack.c.bf16 %v2760, %v2759
          %v2881 = vpack.c.bf16 %v2762, %v2761
          %v2882 = vpack.c.bf16 %v2764, %v2763
          %v2883 = vpack.c.bf16 %v2766, %v2765
          %v2884 = vpack.c.bf16 %v2768, %v2767
          %v2885 = vpack.c.bf16 %v2770, %v2769
          %v2886 = vpack.c.bf16 %v2772, %v2771
          %v2887 = vpack.c.bf16 %v2774, %v2773
          %v2888 = vpack.c.bf16 %v2776, %v2775
          %v2889 = vpack.c.bf16 %v2778, %v2777
          %v2890 = vpack.c.bf16 %v2780, %v2779
          %v2891 = vpack.c.bf16 %v2782, %v2781
          %v2892 = vpack.c.bf16 %v2784, %v2783
          %v2893 = vpack.c.bf16 %v2786, %v2785
          %v2894 = vpack.c.bf16 %v2788, %v2787
          %v2895 = vpack.c.bf16 %v2790, %v2789
          %v2896 = vpack.c.bf16 %v2792, %v2791
          %v2897 = vpack.c.bf16 %v2794, %v2793
          %v2898 = vpack.c.bf16 %v2796, %v2795
          %v2899 = vpack.c.bf16 %v2798, %v2797
          %v2900 = vpack.c.bf16 %v2800, %v2799
          %v2901 = vpack.c.bf16 %v2802, %v2801
          %v2902 = vpack.c.bf16 %v2804, %v2803
          %v2903 = vpack.c.bf16 %v2806, %v2805
          %v2904 = vpack.c.bf16 %v2808, %v2807
          %v2905 = vpack.c.bf16 %v2810, %v2809
          %v2906 = vpack.c.bf16 %v2812, %v2811
          %v2907 = vpack.c.bf16 %v2814, %v2813
          %v2908 = vpack.c.bf16 %v2816, %v2815
          %v2909 = vpack.c.bf16 %v2818, %v2817
          %v2910 = vpack.c.bf16 %v2820, %v2819
          %v2911 = vpack.c.bf16 %v2822, %v2821
          %v2912 = vpack.c.bf16 %v2824, %v2823
          %v2913 = vpack.c.bf16 %v2826, %v2825
          %v2914 = vpack.c.bf16 %v2828, %v2827
          %v2915 = vpack.c.bf16 %v2830, %v2829
          %v2916 = vpack.c.bf16 %v2832, %v2831
          %v2917 = vpack.c.bf16 %v2834, %v2833
          %v2918 = vpack.c.bf16 %v2836, %v2835
          %v2919 = vpack.c.bf16 %v2838, %v2837
          %v2920 = vpack.c.bf16 %v2840, %v2839
          %v2921 = vpack.c.bf16 %v2842, %v2841
          %v2922 = vpack.c.bf16 %v2844, %v2843
          %v2923 = vpack.c.bf16 %v2846, %v2845
          %v2924 = vpack.c.bf16 %v2848, %v2847
          %v2925 = vpack.c.bf16 %v2850, %v2849
          %v2926 = vpack.c.bf16 %v2852, %v2851
          %v2927 = vpack.c.bf16 %v2854, %v2853
          %v2928 = vpack.c.bf16 %v2856, %v2855
          %v2929 = vpack.c.bf16 %v2858, %v2857
          %v2930 = vpack.c.bf16 %v2860, %v2859
          %v2931 = vpack.c.bf16 %v2862, %v2861
          %v2932 = vpack.c.bf16 %v2864, %v2863
          %v2933 = vpack.c.bf16 %v2866, %v2865
          %v2934 = vpack.c.bf16 %v2868, %v2867
          %v2935 = vpack.c.bf16 %v2870, %v2869
          %v2936 = vpack.c.bf16 %v2872, %v2871
          %v3001 = vunpack.c.l.b16 %v2873
          %v3002 = vunpack.c.h.b16 %v2873
          %v3003 = vunpack.c.l.b16 %v2874
          %v3004 = vunpack.c.h.b16 %v2874
          %v3005 = vunpack.c.l.b16 %v2875
          %v3006 = vunpack.c.h.b16 %v2875
          %v3007 = vunpack.c.l.b16 %v2876
          %v3008 = vunpack.c.h.b16 %v2876
          %v3009 = vunpack.c.l.b16 %v2877
          %v3010 = vunpack.c.h.b16 %v2877
          %v3011 = vunpack.c.l.b16 %v2878
          %v3012 = vunpack.c.h.b16 %v2878
          %v3013 = vunpack.c.l.b16 %v2879
          %v3014 = vunpack.c.h.b16 %v2879
          %v3015 = vunpack.c.l.b16 %v2880
          %v3016 = vunpack.c.h.b16 %v2880
          %v3017 = vunpack.c.l.b16 %v2881
          %v3018 = vunpack.c.h.b16 %v2881
          %v3019 = vunpack.c.l.b16 %v2882
          %v3020 = vunpack.c.h.b16 %v2882
          %v3021 = vunpack.c.l.b16 %v2883
          %v3022 = vunpack.c.h.b16 %v2883
          %v3023 = vunpack.c.l.b16 %v2884
          %v3024 = vunpack.c.h.b16 %v2884
          %v3025 = vunpack.c.l.b16 %v2885
          %v3026 = vunpack.c.h.b16 %v2885
          %v3027 = vunpack.c.l.b16 %v2886
          %v3028 = vunpack.c.h.b16 %v2886
          %v3029 = vunpack.c.l.b16 %v2887
          %v3030 = vunpack.c.h.b16 %v2887
          %v3031 = vunpack.c.l.b16 %v2888
          %v3032 = vunpack.c.h.b16 %v2888
          %v3033 = vunpack.c.l.b16 %v2889
          %v3034 = vunpack.c.h.b16 %v2889
          %v3035 = vunpack.c.l.b16 %v2890
          %v3036 = vunpack.c.h.b16 %v2890
          %v3037 = vunpack.c.l.b16 %v2891
          %v3038 = vunpack.c.h.b16 %v2891
          %v3039 = vunpack.c.l.b16 %v2892
          %v3040 = vunpack.c.h.b16 %v2892
          %v3041 = vunpack.c.l.b16 %v2893
          %v3042 = vunpack.c.h.b16 %v2893
          %v3043 = vunpack.c.l.b16 %v2894
          %v3044 = vunpack.c.h.b16 %v2894
          %v3045 = vunpack.c.l.b16 %v2895
          %v3046 = vunpack.c.h.b16 %v2895
          %v3047 = vunpack.c.l.b16 %v2896
          %v3048 = vunpack.c.h.b16 %v2896
          %v3049 = vunpack.c.l.b16 %v2897
          %v3050 = vunpack.c.h.b16 %v2897
          %v3051 = vunpack.c.l.b16 %v2898
          %v3052 = vunpack.c.h.b16 %v2898
          %v3053 = vunpack.c.l.b16 %v2899
          %v3054 = vunpack.c.h.b16 %v2899
          %v3055 = vunpack.c.l.b16 %v2900
          %v3056 = vunpack.c.h.b16 %v2900
          %v3057 = vunpack.c.l.b16 %v2901
          %v3058 = vunpack.c.h.b16 %v2901
          %v3059 = vunpack.c.l.b16 %v2902
          %v3060 = vunpack.c.h.b16 %v2902
          %v3061 = vunpack.c.l.b16 %v2903
          %v3062 = vunpack.c.h.b16 %v2903
          %v3063 = vunpack.c.l.b16 %v2904
          %v3064 = vunpack.c.h.b16 %v2904
          %v3065 = vunpack.c.l.b16 %v2905
          %v3066 = vunpack.c.h.b16 %v2905
          %v3067 = vunpack.c.l.b16 %v2906
          %v3068 = vunpack.c.h.b16 %v2906
          %v3069 = vunpack.c.l.b16 %v2907
          %v3070 = vunpack.c.h.b16 %v2907
          %v3071 = vunpack.c.l.b16 %v2908
          %v3072 = vunpack.c.h.b16 %v2908
          %v3073 = vunpack.c.l.b16 %v2909
          %v3074 = vunpack.c.h.b16 %v2909
          %v3075 = vunpack.c.l.b16 %v2910
          %v3076 = vunpack.c.h.b16 %v2910
          %v3077 = vunpack.c.l.b16 %v2911
          %v3078 = vunpack.c.h.b16 %v2911
          %v3079 = vunpack.c.l.b16 %v2912
          %v3080 = vunpack.c.h.b16 %v2912
          %v3081 = vunpack.c.l.b16 %v2913
          %v3082 = vunpack.c.h.b16 %v2913
          %v3083 = vunpack.c.l.b16 %v2914
          %v3084 = vunpack.c.h.b16 %v2914
          %v3085 = vunpack.c.l.b16 %v2915
          %v3086 = vunpack.c.h.b16 %v2915
          %v3087 = vunpack.c.l.b16 %v2916
          %v3088 = vunpack.c.h.b16 %v2916
          %v3089 = vunpack.c.l.b16 %v2917
          %v3090 = vunpack.c.h.b16 %v2917
          %v3091 = vunpack.c.l.b16 %v2918
          %v3092 = vunpack.c.h.b16 %v2918
          %v3093 = vunpack.c.l.b16 %v2919
          %v3094 = vunpack.c.h.b16 %v2919
          %v3095 = vunpack.c.l.b16 %v2920
          %v3096 = vunpack.c.h.b16 %v2920
          %v3097 = vunpack.c.l.b16 %v2921
          %v3098 = vunpack.c.h.b16 %v2921
          %v3099 = vunpack.c.l.b16 %v2922
          %v3100 = vunpack.c.h.b16 %v2922
          %v3101 = vunpack.c.l.b16 %v2923
          %v3102 = vunpack.c.h.b16 %v2923
          %v3103 = vunpack.c.l.b16 %v2924
          %v3104 = vunpack.c.h.b16 %v2924
          %v3105 = vunpack.c.l.b16 %v2925
          %v3106 = vunpack.c.h.b16 %v2925
          %v3107 = vunpack.c.l.b16 %v2926
          %v3108 = vunpack.c.h.b16 %v2926
          %v3109 = vunpack.c.l.b16 %v2927
          %v3110 = vunpack.c.h.b16 %v2927
          %v3111 = vunpack.c.l.b16 %v2928
          %v3112 = vunpack.c.h.b16 %v2928
          %v3113 = vunpack.c.l.b16 %v2929
          %v3114 = vunpack.c.h.b16 %v2929
          %v3115 = vunpack.c.l.b16 %v2930
          %v3116 = vunpack.c.h.b16 %v2930
          %v3117 = vunpack.c.l.b16 %v2931
          %v3118 = vunpack.c.h.b16 %v2931
          %v3119 = vunpack.c.l.b16 %v2932
          %v3120 = vunpack.c.h.b16 %v2932
          %v3121 = vunpack.c.l.b16 %v2933
          %v3122 = vunpack.c.h.b16 %v2933
          %v3123 = vunpack.c.l.b16 %v2934
          %v3124 = vunpack.c.h.b16 %v2934
          %v3125 = vunpack.c.l.b16 %v2935
          %v3126 = vunpack.c.h.b16 %v2935
          %v3127 = vunpack.c.l.b16 %v2936
          %v3128 = vunpack.c.h.b16 %v2936
          %v3129 = vpack.c.b16 %v3001, %v3001
          %v3130 = vpack.c.b16 %v3002, %v3002
          %v3131 = vpack.c.b16 %v3003, %v3003
          %v3132 = vpack.c.b16 %v3004, %v3004
          %v3133 = vpack.c.b16 %v3005, %v3005
          %v3134 = vpack.c.b16 %v3006, %v3006
          %v3135 = vpack.c.b16 %v3007, %v3007
          %v3136 = vpack.c.b16 %v3008, %v3008
          %v3137 = vpack.c.b16 %v3009, %v3009
          %v3138 = vpack.c.b16 %v3010, %v3010
          %v3139 = vpack.c.b16 %v3011, %v3011
          %v3140 = vpack.c.b16 %v3012, %v3012
          %v3141 = vpack.c.b16 %v3013, %v3013
          %v3142 = vpack.c.b16 %v3014, %v3014
          %v3143 = vpack.c.b16 %v3015, %v3015
          %v3144 = vpack.c.b16 %v3016, %v3016
          %v3145 = vpack.c.b16 %v3017, %v3017
          %v3146 = vpack.c.b16 %v3018, %v3018
          %v3147 = vpack.c.b16 %v3019, %v3019
          %v3148 = vpack.c.b16 %v3020, %v3020
          %v3149 = vpack.c.b16 %v3021, %v3021
          %v3150 = vpack.c.b16 %v3022, %v3022
          %v3151 = vpack.c.b16 %v3023, %v3023
          %v3152 = vpack.c.b16 %v3024, %v3024
          %v3153 = vpack.c.b16 %v3025, %v3025
          %v3154 = vpack.c.b16 %v3026, %v3026
          %v3155 = vpack.c.b16 %v3027, %v3027
          %v3156 = vpack.c.b16 %v3028, %v3028
          %v3157 = vpack.c.b16 %v3029, %v3029
          %v3158 = vpack.c.b16 %v3030, %v3030
          %v3159 = vpack.c.b16 %v3031, %v3031
          %v3160 = vpack.c.b16 %v3032, %v3032
          %v3161 = vpack.c.b16 %v3033, %v3033
          %v3162 = vpack.c.b16 %v3034, %v3034
          %v3163 = vpack.c.b16 %v3035, %v3035
          %v3164 = vpack.c.b16 %v3036, %v3036
          %v3165 = vpack.c.b16 %v3037, %v3037
          %v3166 = vpack.c.b16 %v3038, %v3038
          %v3167 = vpack.c.b16 %v3039, %v3039
          %v3168 = vpack.c.b16 %v3040, %v3040
          %v3169 = vpack.c.b16 %v3041, %v3041
          %v3170 = vpack.c.b16 %v3042, %v3042
          %v3171 = vpack.c.b16 %v3043, %v3043
          %v3172 = vpack.c.b16 %v3044, %v3044
          %v3173 = vpack.c.b16 %v3045, %v3045
          %v3174 = vpack.c.b16 %v3046, %v3046
          %v3175 = vpack.c.b16 %v3047, %v3047
          %v3176 = vpack.c.b16 %v3048, %v3048
          %v3177 = vpack.c.b16 %v3049, %v3049
          %v3178 = vpack.c.b16 %v3050, %v3050
          %v3179 = vpack.c.b16 %v3051, %v3051
          %v3180 = vpack.c.b16 %v3052, %v3052
          %v3181 = vpack.c.b16 %v3053, %v3053
          %v3182 = vpack.c.b16 %v3054, %v3054
          %v3183 = vpack.c.b16 %v3055, %v3055
          %v3184 = vpack.c.b16 %v3056, %v3056
          %v3185 = vpack.c.b16 %v3057, %v3057
          %v3186 = vpack.c.b16 %v3058, %v3058
          %v3187 = vpack.c.b16 %v3059, %v3059
          %v3188 = vpack.c.b16 %v3060, %v3060
          %v3189 = vpack.c.b16 %v3061, %v3061
          %v3190 = vpack.c.b16 %v3062, %v3062
          %v3191 = vpack.c.b16 %v3063, %v3063
          %v3192 = vpack.c.b16 %v3064, %v3064
          %v3193 = vpack.c.b16 %v3065, %v3065
          %v3194 = vpack.c.b16 %v3066, %v3066
          %v3195 = vpack.c.b16 %v3067, %v3067
          %v3196 = vpack.c.b16 %v3068, %v3068
          %v3197 = vpack.c.b16 %v3069, %v3069
          %v3198 = vpack.c.b16 %v3070, %v3070
          %v3199 = vpack.c.b16 %v3071, %v3071
          %v3200 = vpack.c.b16 %v3072, %v3072
          %v3201 = vpack.c.b16 %v3073, %v3073
          %v3202 = vpack.c.b16 %v3074, %v3074
          %v3203 = vpack.c.b16 %v3075, %v3075
          %v3204 = vpack.c.b16 %v3076, %v3076
          %v3205 = vpack.c.b16 %v3077, %v3077
          %v3206 = vpack.c.b16 %v3078, %v3078
          %v3207 = vpack.c.b16 %v3079, %v3079
          %v3208 = vpack.c.b16 %v3080, %v3080
          %v3209 = vpack.c.b16 %v3081, %v3081
          %v3210 = vpack.c.b16 %v3082, %v3082
          %v3211 = vpack.c.b16 %v3083, %v3083
          %v3212 = vpack.c.b16 %v3084, %v3084
          %v3213 = vpack.c.b16 %v3085, %v3085
          %v3214 = vpack.c.b16 %v3086, %v3086
          %v3215 = vpack.c.b16 %v3087, %v3087
          %v3216 = vpack.c.b16 %v3088, %v3088
          %v3217 = vpack.c.b16 %v3089, %v3089
          %v3218 = vpack.c.b16 %v3090, %v3090
          %v3219 = vpack.c.b16 %v3091, %v3091
          %v3220 = vpack.c.b16 %v3092, %v3092
          %v3221 = vpack.c.b16 %v3093, %v3093
          %v3222 = vpack.c.b16 %v3094, %v3094
          %v3223 = vpack.c.b16 %v3095, %v3095
          %v3224 = vpack.c.b16 %v3096, %v3096
          %v3225 = vpack.c.b16 %v3097, %v3097
          %v3226 = vpack.c.b16 %v3098, %v3098
          %v3227 = vpack.c.b16 %v3099, %v3099
          %v3228 = vpack.c.b16 %v3100, %v3100
          %v3229 = vpack.c.b16 %v3101, %v3101
          %v3230 = vpack.c.b16 %v3102, %v3102
          %v3231 = vpack.c.b16 %v3103, %v3103
          %v3232 = vpack.c.b16 %v3104, %v3104
          %v3233 = vpack.c.b16 %v3105, %v3105
          %v3234 = vpack.c.b16 %v3106, %v3106
          %v3235 = vpack.c.b16 %v3107, %v3107
          %v3236 = vpack.c.b16 %v3108, %v3108
          %v3237 = vpack.c.b16 %v3109, %v3109
          %v3238 = vpack.c.b16 %v3110, %v3110
          %v3239 = vpack.c.b16 %v3111, %v3111
          %v3240 = vpack.c.b16 %v3112, %v3112
          %v3241 = vpack.c.b16 %v3113, %v3113
          %v3242 = vpack.c.b16 %v3114, %v3114
          %v3243 = vpack.c.b16 %v3115, %v3115
          %v3244 = vpack.c.b16 %v3116, %v3116
          %v3245 = vpack.c.b16 %v3117, %v3117
          %v3246 = vpack.c.b16 %v3118, %v3118
          %v3247 = vpack.c.b16 %v3119, %v3119
          %v3248 = vpack.c.b16 %v3120, %v3120
          %v3249 = vpack.c.b16 %v3121, %v3121
          %v3250 = vpack.c.b16 %v3122, %v3122
          %v3251 = vpack.c.b16 %v3123, %v3123
          %v3252 = vpack.c.b16 %v3124, %v3124
          %v3253 = vpack.c.b16 %v3125, %v3125
          %v3254 = vpack.c.b16 %v3126, %v3126
          %v3255 = vpack.c.b16 %v3127, %v3127
          %v3256 = vpack.c.b16 %v3128, %v3128
          %vm3385 = vcmask 519168
          %3386 = vst.msk [vmem:[%s271] sm:$0xf] %vm3385, %v3129
          %3387 = vst.msk [vmem:[%s271 + $0x4] sm:$0xf] %vm3385, %v3130
          %3388 = vst.msk [vmem:[%s271 + $0x8] sm:$0xf] %vm3385, %v3131
          %3389 = vst.msk [vmem:[%s271 + $0xc] sm:$0xf] %vm3385, %v3132
          %3390 = vst.msk [vmem:[%s271 + $0x10] sm:$0xf] %vm3385, %v3133
          %3391 = vst.msk [vmem:[%s271 + $0x14] sm:$0xf] %vm3385, %v3134
          %3392 = vst.msk [vmem:[%s271 + $0x18] sm:$0xf] %vm3385, %v3135
          %3393 = vst.msk [vmem:[%s271 + $0x1c] sm:$0xf] %vm3385, %v3136
          %3394 = vst.msk [vmem:[%s271 + $0x20] sm:$0xf] %vm3385, %v3137
          %3395 = vst.msk [vmem:[%s271 + $0x24] sm:$0xf] %vm3385, %v3138
          %3396 = vst.msk [vmem:[%s271 + $0x28] sm:$0xf] %vm3385, %v3139
          %3397 = vst.msk [vmem:[%s271 + $0x2c] sm:$0xf] %vm3385, %v3140
          %3398 = vst.msk [vmem:[%s271 + $0x30] sm:$0xf] %vm3385, %v3141
          %3399 = vst.msk [vmem:[%s271 + $0x34] sm:$0xf] %vm3385, %v3142
          %3400 = vst.msk [vmem:[%s271 + $0x38] sm:$0xf] %vm3385, %v3143
          %3401 = vst.msk [vmem:[%s271 + $0x3c] sm:$0xf] %vm3385, %v3144
          %3402 = vst.msk [vmem:[%s271 + $0x40] sm:$0xf] %vm3385, %v3145
          %3403 = vst.msk [vmem:[%s271 + $0x44] sm:$0xf] %vm3385, %v3146
          %3404 = vst.msk [vmem:[%s271 + $0x48] sm:$0xf] %vm3385, %v3147
          %3405 = vst.msk [vmem:[%s271 + $0x4c] sm:$0xf] %vm3385, %v3148
          %3406 = vst.msk [vmem:[%s271 + $0x50] sm:$0xf] %vm3385, %v3149
          %3407 = vst.msk [vmem:[%s271 + $0x54] sm:$0xf] %vm3385, %v3150
          %3408 = vst.msk [vmem:[%s271 + $0x58] sm:$0xf] %vm3385, %v3151
          %3409 = vst.msk [vmem:[%s271 + $0x5c] sm:$0xf] %vm3385, %v3152
          %3410 = vst.msk [vmem:[%s271 + $0x60] sm:$0xf] %vm3385, %v3153
          %3411 = vst.msk [vmem:[%s271 + $0x64] sm:$0xf] %vm3385, %v3154
          %3412 = vst.msk [vmem:[%s271 + $0x68] sm:$0xf] %vm3385, %v3155
          %3413 = vst.msk [vmem:[%s271 + $0x6c] sm:$0xf] %vm3385, %v3156
          %3414 = vst.msk [vmem:[%s271 + $0x70] sm:$0xf] %vm3385, %v3157
          %3415 = vst.msk [vmem:[%s271 + $0x74] sm:$0xf] %vm3385, %v3158
          %3416 = vst.msk [vmem:[%s271 + $0x78] sm:$0xf] %vm3385, %v3159
          %3417 = vst.msk [vmem:[%s271 + $0x7c] sm:$0xf] %vm3385, %v3160
          %3418 = vst.msk [vmem:[%s271 + $0x80] sm:$0xf] %vm3385, %v3161
          %3419 = vst.msk [vmem:[%s271 + $0x84] sm:$0xf] %vm3385, %v3162
          %3420 = vst.msk [vmem:[%s271 + $0x88] sm:$0xf] %vm3385, %v3163
          %3421 = vst.msk [vmem:[%s271 + $0x8c] sm:$0xf] %vm3385, %v3164
          %3422 = vst.msk [vmem:[%s271 + $0x90] sm:$0xf] %vm3385, %v3165
          %3423 = vst.msk [vmem:[%s271 + $0x94] sm:$0xf] %vm3385, %v3166
          %3424 = vst.msk [vmem:[%s271 + $0x98] sm:$0xf] %vm3385, %v3167
          %3425 = vst.msk [vmem:[%s271 + $0x9c] sm:$0xf] %vm3385, %v3168
          %3426 = vst.msk [vmem:[%s271 + $0xa0] sm:$0xf] %vm3385, %v3169
          %3427 = vst.msk [vmem:[%s271 + $0xa4] sm:$0xf] %vm3385, %v3170
          %3428 = vst.msk [vmem:[%s271 + $0xa8] sm:$0xf] %vm3385, %v3171
          %3429 = vst.msk [vmem:[%s271 + $0xac] sm:$0xf] %vm3385, %v3172
          %3430 = vst.msk [vmem:[%s271 + $0xb0] sm:$0xf] %vm3385, %v3173
          %3431 = vst.msk [vmem:[%s271 + $0xb4] sm:$0xf] %vm3385, %v3174
          %3432 = vst.msk [vmem:[%s271 + $0xb8] sm:$0xf] %vm3385, %v3175
          %3433 = vst.msk [vmem:[%s271 + $0xbc] sm:$0xf] %vm3385, %v3176
          %3434 = vst.msk [vmem:[%s271 + $0xc0] sm:$0xf] %vm3385, %v3177
          %3435 = vst.msk [vmem:[%s271 + $0xc4] sm:$0xf] %vm3385, %v3178
          %3436 = vst.msk [vmem:[%s271 + $0xc8] sm:$0xf] %vm3385, %v3179
          %3437 = vst.msk [vmem:[%s271 + $0xcc] sm:$0xf] %vm3385, %v3180
          %3438 = vst.msk [vmem:[%s271 + $0xd0] sm:$0xf] %vm3385, %v3181
          %3439 = vst.msk [vmem:[%s271 + $0xd4] sm:$0xf] %vm3385, %v3182
          %3440 = vst.msk [vmem:[%s271 + $0xd8] sm:$0xf] %vm3385, %v3183
          %3441 = vst.msk [vmem:[%s271 + $0xdc] sm:$0xf] %vm3385, %v3184
          %3442 = vst.msk [vmem:[%s271 + $0xe0] sm:$0xf] %vm3385, %v3185
          %3443 = vst.msk [vmem:[%s271 + $0xe4] sm:$0xf] %vm3385, %v3186
          %3444 = vst.msk [vmem:[%s271 + $0xe8] sm:$0xf] %vm3385, %v3187
          %3445 = vst.msk [vmem:[%s271 + $0xec] sm:$0xf] %vm3385, %v3188
          %3446 = vst.msk [vmem:[%s271 + $0xf0] sm:$0xf] %vm3385, %v3189
          %3447 = vst.msk [vmem:[%s271 + $0xf4] sm:$0xf] %vm3385, %v3190
          %3448 = vst.msk [vmem:[%s271 + $0xf8] sm:$0xf] %vm3385, %v3191
          %3449 = vst.msk [vmem:[%s271 + $0xfc] sm:$0xf] %vm3385, %v3192
          %3450 = vst.msk [vmem:[%s271 + $0x100] sm:$0xf] %vm3385, %v3193
          %3451 = vst.msk [vmem:[%s271 + $0x104] sm:$0xf] %vm3385, %v3194
          %3452 = vst.msk [vmem:[%s271 + $0x108] sm:$0xf] %vm3385, %v3195
          %3453 = vst.msk [vmem:[%s271 + $0x10c] sm:$0xf] %vm3385, %v3196
          %3454 = vst.msk [vmem:[%s271 + $0x110] sm:$0xf] %vm3385, %v3197
          %3455 = vst.msk [vmem:[%s271 + $0x114] sm:$0xf] %vm3385, %v3198
          %3456 = vst.msk [vmem:[%s271 + $0x118] sm:$0xf] %vm3385, %v3199
          %3457 = vst.msk [vmem:[%s271 + $0x11c] sm:$0xf] %vm3385, %v3200
          %3458 = vst.msk [vmem:[%s271 + $0x120] sm:$0xf] %vm3385, %v3201
          %3459 = vst.msk [vmem:[%s271 + $0x124] sm:$0xf] %vm3385, %v3202
          %3460 = vst.msk [vmem:[%s271 + $0x128] sm:$0xf] %vm3385, %v3203
          %3461 = vst.msk [vmem:[%s271 + $0x12c] sm:$0xf] %vm3385, %v3204
          %3462 = vst.msk [vmem:[%s271 + $0x130] sm:$0xf] %vm3385, %v3205
          %3463 = vst.msk [vmem:[%s271 + $0x134] sm:$0xf] %vm3385, %v3206
          %3464 = vst.msk [vmem:[%s271 + $0x138] sm:$0xf] %vm3385, %v3207
          %3465 = vst.msk [vmem:[%s271 + $0x13c] sm:$0xf] %vm3385, %v3208
          %3466 = vst.msk [vmem:[%s271 + $0x140] sm:$0xf] %vm3385, %v3209
          %3467 = vst.msk [vmem:[%s271 + $0x144] sm:$0xf] %vm3385, %v3210
          %3468 = vst.msk [vmem:[%s271 + $0x148] sm:$0xf] %vm3385, %v3211
          %3469 = vst.msk [vmem:[%s271 + $0x14c] sm:$0xf] %vm3385, %v3212
          %3470 = vst.msk [vmem:[%s271 + $0x150] sm:$0xf] %vm3385, %v3213
          %3471 = vst.msk [vmem:[%s271 + $0x154] sm:$0xf] %vm3385, %v3214
          %3472 = vst.msk [vmem:[%s271 + $0x158] sm:$0xf] %vm3385, %v3215
          %3473 = vst.msk [vmem:[%s271 + $0x15c] sm:$0xf] %vm3385, %v3216
          %3474 = vst.msk [vmem:[%s271 + $0x160] sm:$0xf] %vm3385, %v3217
          %3475 = vst.msk [vmem:[%s271 + $0x164] sm:$0xf] %vm3385, %v3218
          %3476 = vst.msk [vmem:[%s271 + $0x168] sm:$0xf] %vm3385, %v3219
          %3477 = vst.msk [vmem:[%s271 + $0x16c] sm:$0xf] %vm3385, %v3220
          %3478 = vst.msk [vmem:[%s271 + $0x170] sm:$0xf] %vm3385, %v3221
          %3479 = vst.msk [vmem:[%s271 + $0x174] sm:$0xf] %vm3385, %v3222
          %3480 = vst.msk [vmem:[%s271 + $0x178] sm:$0xf] %vm3385, %v3223
          %3481 = vst.msk [vmem:[%s271 + $0x17c] sm:$0xf] %vm3385, %v3224
          %3482 = vst.msk [vmem:[%s271 + $0x180] sm:$0xf] %vm3385, %v3225
          %3483 = vst.msk [vmem:[%s271 + $0x184] sm:$0xf] %vm3385, %v3226
          %3484 = vst.msk [vmem:[%s271 + $0x188] sm:$0xf] %vm3385, %v3227
          %3485 = vst.msk [vmem:[%s271 + $0x18c] sm:$0xf] %vm3385, %v3228
          %3486 = vst.msk [vmem:[%s271 + $0x190] sm:$0xf] %vm3385, %v3229
          %3487 = vst.msk [vmem:[%s271 + $0x194] sm:$0xf] %vm3385, %v3230
          %3488 = vst.msk [vmem:[%s271 + $0x198] sm:$0xf] %vm3385, %v3231
          %3489 = vst.msk [vmem:[%s271 + $0x19c] sm:$0xf] %vm3385, %v3232
          %3490 = vst.msk [vmem:[%s271 + $0x1a0] sm:$0xf] %vm3385, %v3233
          %3491 = vst.msk [vmem:[%s271 + $0x1a4] sm:$0xf] %vm3385, %v3234
          %3492 = vst.msk [vmem:[%s271 + $0x1a8] sm:$0xf] %vm3385, %v3235
          %3493 = vst.msk [vmem:[%s271 + $0x1ac] sm:$0xf] %vm3385, %v3236
          %3494 = vst.msk [vmem:[%s271 + $0x1b0] sm:$0xf] %vm3385, %v3237
          %3495 = vst.msk [vmem:[%s271 + $0x1b4] sm:$0xf] %vm3385, %v3238
          %3496 = vst.msk [vmem:[%s271 + $0x1b8] sm:$0xf] %vm3385, %v3239
          %3497 = vst.msk [vmem:[%s271 + $0x1bc] sm:$0xf] %vm3385, %v3240
          %3498 = vst.msk [vmem:[%s271 + $0x1c0] sm:$0xf] %vm3385, %v3241
          %3499 = vst.msk [vmem:[%s271 + $0x1c4] sm:$0xf] %vm3385, %v3242
          %3500 = vst.msk [vmem:[%s271 + $0x1c8] sm:$0xf] %vm3385, %v3243
          %3501 = vst.msk [vmem:[%s271 + $0x1cc] sm:$0xf] %vm3385, %v3244
          %3502 = vst.msk [vmem:[%s271 + $0x1d0] sm:$0xf] %vm3385, %v3245
          %3503 = vst.msk [vmem:[%s271 + $0x1d4] sm:$0xf] %vm3385, %v3246
          %3504 = vst.msk [vmem:[%s271 + $0x1d8] sm:$0xf] %vm3385, %v3247
          %3505 = vst.msk [vmem:[%s271 + $0x1dc] sm:$0xf] %vm3385, %v3248
          %3506 = vst.msk [vmem:[%s271 + $0x1e0] sm:$0xf] %vm3385, %v3249
          %3507 = vst.msk [vmem:[%s271 + $0x1e4] sm:$0xf] %vm3385, %v3250
          %3508 = vst.msk [vmem:[%s271 + $0x1e8] sm:$0xf] %vm3385, %v3251
          %3509 = vst.msk [vmem:[%s271 + $0x1ec] sm:$0xf] %vm3385, %v3252
          %3510 = vst.msk [vmem:[%s271 + $0x1f0] sm:$0xf] %vm3385, %v3253
          %3511 = vst.msk [vmem:[%s271 + $0x1f4] sm:$0xf] %vm3385, %v3254
          %3512 = vst.msk [vmem:[%s271 + $0x1f8] sm:$0xf] %vm3385, %v3255
          %3513 = vst.msk [vmem:[%s271 + $0x1fc] sm:$0xf] %vm3385, %v3256
        $region44: #{conv2d.1} parent=35 // pred_fallthru
          _
        %s3514 = sand.u32 %s155, 1
        %s3515 = scalar_lea.sflag [#allocation4], %s3514
        %s3516 = sand.u32 %s155, 1
        %s3517 = smul.addr %s3516, 512
        %s3518 = scalar_lea.vmem [#allocation3], %s3517
        // Predicated region
        $region45: #{conv2d.1} parent=35 // pred_check
          %p3519 = pneg %p165
        $region46: #{conv2d.1} parent=35 // pred_check_branch
          %3521 = sbr.rel (%p3519) target = $region48
        $region47: #{conv2d.1} parent=35 // pred_region
          %s3522 = smul.u32 128, %s23
          %s3524 = ssub.s32 8192, 8192
          %3525 = vsyncadd %s3515, %s3524
          %s3526 = sadd.s32 %s24, %s3522
          %s3527 = smul.addr %s3526, 64
          %s3528 = scalar_lea.hbm %s4, %s3527
          %s3529 = sshll.u32 %s3518, 4
          %s3530 = int_to_ptr.vmem [resolvable:$true] %s3529
          %3535 = dma.vmem_to_hbm [thread:$0]  %s3530, 8192, %s3528, %s3515, 64, 64, 4
        $region48: #{conv2d.1} parent=35 // pred_fallthru
          _
      $region36: #{conv2d.1} parent=5 // pred_fallthru
        _
      %p3536 = scmp.le.s32.totalorder 2, %s13
      // Predicated region
      $region49: #{conv2d.1} parent=5 // pred_check
        %p3537 = pneg %p3536
      $region50: #{conv2d.1} parent=5 // pred_check_branch
        %3539 = sbr.rel (%p3537) target = $region52
      $region51: #{conv2d.1} parent=5 // pred_region
        %s3540 = ssub.s32 %s13, 2
        // Predicated region
        $region53: #{conv2d.1} parent=51 // pred_check
          %p3541 = pneg %p171
        $region54: #{conv2d.1} parent=51 // pred_check_branch
          %3543 = sbr.rel (%p3541) target = $region56
        $region55: #{conv2d.1} parent=51 // pred_region
          %s3544 = sand.u32 %s156, 1
          %s3545 = scalar_lea.sflag [#allocation4], %s3544
          %s3546 = sand.u32 %s156, 1
          %s3547 = smul.addr %s3546, 512
          %s3548 = scalar_lea.vmem [#allocation3], %s3547
          %3549 = dma.done %s3545, 8192
        $region56: #{conv2d.1} parent=51 // pred_fallthru
          _
      $region52: #{conv2d.1} parent=5 // pred_fallthru
        _
    $region6: #{conv2d.1} parent=1 // loop_footer
      %s17 = sadd.s32 1, %s13
    $region7: #{conv2d.1} parent=1 // loop_footer_branch
      %12 = sbr.rel target = $region3
    $region8: #{conv2d.1} parent=1 // loop_exit
      _
    %3550 = vsyncpa [#allocation4], 1
    %s3551 = scalar_lea.sflag [#allocation4], 1
    %3552 = vsyncpa %s3551, 1

</llo_original>
